<compile_context>
chip_gen: v7x
topology: tpu7x:2x2x1
jax: 0.10.0
libtpu: 0.0.40
codegen_flags: <defaults>
</compile_context>

<pallas_src>
import math

import jax
import jax.numpy as jnp
from jax.experimental import pallas as pl
from jax.experimental.pallas import tpu as pltpu
from jax.scipy.special import digamma

_VMEM_LIMIT_CACHE = None


def _vmem_limit():
    """Per-generation scoped-VMEM request: ~3/4 of physical, capped at 96 MiB."""
    global _VMEM_LIMIT_CACHE
    if _VMEM_LIMIT_CACHE is None:
        lim = 48 * 1024 * 1024                     # safe for v7x (64 MiB physical)
        try:
            if jax.devices()[0].platform == "tpu":
                cap = getattr(pltpu.get_tpu_info(), "vmem_capacity_bytes",
                              128 * 1024 * 1024)
                lim = min(96 * 1024 * 1024, (int(cap) * 3) // 4)
        except Exception:
            pass
        _VMEM_LIMIT_CACHE = lim
    return _VMEM_LIMIT_CACHE


def _pick_tile(n, cap=1024):
    """Largest multiple-of-8 row tile <= cap that evenly divides n."""
    for t in (1024, 512, 256, 128, 64, 32, 16, 8):
        if t <= cap and t <= n and n % t == 0:
            return t
    return n


# ---------------------------------------------------------------------------
# 3x3 conv (stride 1, pad 1), NHWC.  The kx taps are folded into 3 banded
# (block-Toeplitz) weight matrices built ONCE at parameter-prep time, so each
# image is 3 lane-dense MXU matmuls (bf16 operands, f32 accumulate).
# ---------------------------------------------------------------------------
def build_band_weights(w_hwio, width):
    """wband[ky][xw*Cin+ci, w*Cout+co] = w[ky, xw-w, ci, co] for 0 <= xw-w <= 2."""
    w = w_hwio.astype(jnp.float32)
    bands = []
    for ky in range(3):
        m = sum(jnp.kron(jnp.eye(width + 2, width, k=-kx, dtype=jnp.float32),
                         w[ky, kx]) for kx in range(3))
        bands.append(m)
    # TODO(synk): for Cin/Cout >= 128 this band slab is O(W^2*Cin*Cout) bytes;
    # the conv should then switch to 9 exact shifted (rows,Cin)@(Cin,Cout)
    # matmuls with W-axis tiling.  The band trick is only used for the small-C
    # stand-in convs here.
    return jnp.stack(bands).astype(jnp.bfloat16)


def _conv3x3_kernel(x_ref, w_ref, b_ref, o_ref):
    rows = o_ref.shape[1]
    acc = jnp.zeros(o_ref.shape[1:], jnp.float32)
    for ky in range(3):                                   # static, unrolled
        acc = acc + jnp.dot(x_ref[0, ky:ky + rows, :], w_ref[ky],
                            preferred_element_type=jnp.float32)
    acc = acc + b_ref[...]
    o_ref[0] = acc.astype(o_ref.dtype)


def _conv3x3_logcosh_kernel(x_ref, w_ref, b_ref, t_ref, o_ref, lc_ref):
    rows = o_ref.shape[1]
    acc = jnp.zeros(o_ref.shape[1:], jnp.float32)
    for ky in range(3):
        acc = acc + jnp.dot(x_ref[0, ky:ky + rows, :], w_ref[ky],
                            preferred_element_type=jnp.float32)
    acc = acc + b_ref[...]
    o_ref[0] = acc.astype(o_ref.dtype)
    # fused log-cosh partial sum (per image): dec / x never re-read from HBM.
    d = (acc - t_ref[0]) + 1e-12
    ad = jnp.abs(d)
    lc = ad + jnp.log(0.5 * (1.0 + jnp.exp(-2.0 * ad)))   # stable log(cosh)
    lc_ref[...] = jnp.full(lc_ref.shape, jnp.sum(lc), jnp.float32)


def conv3x3(x_nhwc, wband, bias, *, out_dtype=jnp.bfloat16, target_nhwc=None):
    """3x3 / stride-1 / pad-1 conv.  If target_nhwc is given, also returns the
    per-image log-cosh(out - target) partial sums (fused loss epilogue)."""
    B, H, W, Cin = x_nhwc.shape
    WCout = wband.shape[2]
    # TODO(synk): the halo pad is one extra activation pass; for large H/W it
    # should move in-kernel (row-tile grid + zero-filled halo), and multiple
    # images / row tiles should be packed into the matmul M axis.
    xp = jnp.pad(x_nhwc.astype(jnp.bfloat16), ((0, 0), (1, 1), (1, 1), (0, 0)))
    xp2 = xp.reshape(B, H + 2, (W + 2) * Cin)
    bt = jnp.tile(bias.astype(jnp.float32), W).reshape(1, WCout)

    x_spec = pl.BlockSpec((1, H + 2, (W + 2) * Cin), lambda b: (b, 0, 0))
    w_spec = pl.BlockSpec((3, (W + 2) * Cin, WCout), lambda b: (0, 0, 0))
    b_spec = pl.BlockSpec((1, WCout), lambda b: (0, 0))
    o_spec = pl.BlockSpec((1, H, WCout), lambda b: (b, 0, 0))
    cparams = pltpu.CompilerParams(dimension_semantics=("parallel",),
                                   vmem_limit_bytes=_vmem_limit())

    if target_nhwc is None:
        return pl.pallas_call(
            _conv3x3_kernel,
            out_shape=jax.ShapeDtypeStruct((B, H, WCout), out_dtype),
            grid=(B,),
            in_specs=[x_spec, w_spec, b_spec],
            out_specs=o_spec,
            compiler_params=cparams,
        )(xp2, wband, bt)

    t2 = target_nhwc.astype(jnp.float32).reshape(B, H, WCout)
    y, lc = pl.pallas_call(
        _conv3x3_logcosh_kernel,
        out_shape=(jax.ShapeDtypeStruct((B, H, WCout), out_dtype),
                   jax.ShapeDtypeStruct((B, 1, 128), jnp.float32)),
        grid=(B,),
        in_specs=[x_spec, w_spec, b_spec,
                  pl.BlockSpec((1, H, WCout), lambda b: (b, 0, 0))],
        out_specs=[o_spec, pl.BlockSpec((1, 1, 128), lambda b: (b, 0, 0))],
        compiler_params=cparams,
    )(xp2, wband, bt, t2)
    return y, lc


# ---------------------------------------------------------------------------
# Fused quant_conv (1x1) -> student-t reparameterization -> post_quant (1x1),
# with the 4 student-t KL partial sums accumulated per batch element.
# ---------------------------------------------------------------------------
def _quant_sample_pq_kernel(h_ref, qw_ref, qb_ref, pw_ref, pb_ref,
                            eps_ref, expo_ref, zp_ref, zq_ref, klp_ref):
    ed = qw_ref.shape[1] // 3
    zp = (jnp.dot(h_ref[...].astype(jnp.float32), qw_ref[...],
                  preferred_element_type=jnp.float32) + qb_ref[...])
    mu = zp[:, :ed]
    logvar = zp[:, ed:2 * ed]
    logdf = zp[:, 2 * ed:]
    df = jnp.clip(jnp.exp(logdf) + 2.1, 2.1, 50.0)
    scale = jnp.exp(0.5 * logvar)

    # z = mu + scale*eps*sqrt(df / (expo/df)) = mu + scale*eps*df*rsqrt(expo)
    expo = jnp.maximum(expo_ref[...], 1e-20)               # Exp(1) sample, > 0
    z = mu + scale * eps_ref[...] * (df * jax.lax.rsqrt(expo))

    zq_ref[...] = (jnp.dot(z, pw_ref[...], preferred_element_type=jnp.float32)
                   + pb_ref[...]).astype(zq_ref.dtype)
    zp_ref[...] = zp                                       # single wholesale store

    # fused student-t KL partial sums -> per-batch resident accumulator block.
    # lanes [0..3] = [sum logvar, trace term, log term, sum df].
    j = pl.program_id(1)

    @pl.when(j == 0)
    def _init():
        klp_ref[...] = jnp.zeros_like(klp_ref)

    df_kl = jnp.maximum(df, 2.1 + 1e-6)                    # the loss re-clamps df
    var = jnp.exp(logvar)
    inv_denom = 1.0 / (df_kl * var + 1e-6)
    mu2 = mu * mu
    # TODO(synk): jnp.log(1+x) used instead of log1p (equal up to f32 rounding).
    vals = (jnp.sum(logvar),
            jnp.sum((mu2 + var) * inv_denom),
            jnp.sum(jnp.log(1.0 + mu2 * inv_denom)),
            jnp.sum(df_kl))
    lane = jax.lax.broadcasted_iota(jnp.int32, klp_ref.shape, 2)
    contrib = jnp.zeros(klp_ref.shape, jnp.float32)
    for i, v in enumerate(vals):
        contrib = contrib + jnp.where(lane == i, v, 0.0)
    klp_ref[...] += contrib


def quant_sample_postquant(h_flat, quant_w, quant_b, pq_w, pq_b, eps, expo,
                           batch, rows_per_batch):
    M, k_in = h_flat.shape
    n_q = quant_w.shape[1]                 # 3 * embed_dim
    ed = n_q // 3
    zc = pq_w.shape[1]
    assert batch * rows_per_batch == M
    tm = _pick_tile(rows_per_batch, cap=512)
    nt = rows_per_batch // tm

    zp, zq, klp = pl.pallas_call(
        _quant_sample_pq_kernel,
        out_shape=(jax.ShapeDtypeStruct((M, n_q), jnp.float32),
                   jax.ShapeDtypeStruct((M, zc), jnp.bfloat16),
                   jax.ShapeDtypeStruct((batch, 1, 128), jnp.float32)),
        grid=(batch, nt),
        in_specs=[pl.BlockSpec((tm, k_in), lambda b, j: (b * nt + j, 0)),
                  pl.BlockSpec((k_in, n_q), lambda b, j: (0, 0)),
                  pl.BlockSpec((1, n_q), lambda b, j: (0, 0)),
                  pl.BlockSpec((ed, zc), lambda b, j: (0, 0)),
                  pl.BlockSpec((1, zc), lambda b, j: (0, 0)),
                  pl.BlockSpec((tm, ed), lambda b, j: (b * nt + j, 0)),
                  pl.BlockSpec((tm, ed), lambda b, j: (b * nt + j, 0))],
        out_specs=[pl.BlockSpec((tm, n_q), lambda b, j: (b * nt + j, 0)),
                   pl.BlockSpec((tm, zc), lambda b, j: (b * nt + j, 0)),
                   pl.BlockSpec((1, 1, 128), lambda b, j: (b, 0, 0))],
        compiler_params=pltpu.CompilerParams(
            dimension_semantics=("parallel", "arbitrary"),
            vmem_limit_bytes=_vmem_limit()),
    )(h_flat, quant_w, quant_b.reshape(1, n_q), pq_w, pq_b.reshape(1, zc),
      eps, expo)
    return zp, zq, klp


# ---------------------------------------------------------------------------
# Model glue (parameter setup, forward, losses)
# ---------------------------------------------------------------------------
def init_params(key, in_channels, out_ch, z_channels, embed_dim):
    """Xavier-uniform weights, zero biases (matches TVAE._init_weights)."""
    ks = jax.random.split(key, 4)

    def xavier(k, shape, fan_in, fan_out):
        bound = math.sqrt(6.0 / (fan_in + fan_out))
        return jax.random.uniform(k, shape, jnp.float32, -bound, bound)

    return {
        # stand-in Encoder: single 3x3 conv -> 2*z_channels (double_z)
        "enc_w": xavier(ks[0], (3, 3, in_channels, 2 * z_channels),
                        9 * in_channels, 9 * 2 * z_channels),
        "enc_b": jnp.zeros((2 * z_channels,), jnp.float32),
        # quant_conv: 1x1, 2*z_channels -> 3*embed_dim
        "quant_w": xavier(ks[1], (2 * z_channels, 3 * embed_dim),
                          2 * z_channels, 3 * embed_dim),
        "quant_b": jnp.zeros((3 * embed_dim,), jnp.float32),
        # post_quant_conv: 1x1, embed_dim -> z_channels
        "pq_w": xavier(ks[2], (embed_dim, z_channels), embed_dim, z_channels),
        "pq_b": jnp.zeros((z_channels,), jnp.float32),
        # stand-in Decoder: single 3x3 conv -> out_ch
        "dec_w": xavier(ks[3], (3, 3, z_channels, out_ch),
                        9 * z_channels, 9 * out_ch),
        "dec_b": jnp.zeros((out_ch,), jnp.float32),
    }


def prepare_params(params, width):
    """Fold the 3x3 conv weights into banded bf16 matrices ONCE (outside the
    training step) so they are never rebuilt / re-streamed per forward."""
    return {
        "enc_band": build_band_weights(params["enc_w"], width),
        "enc_b": params["enc_b"],
        "dec_band": build_band_weights(params["dec_w"], width),
        "dec_b": params["dec_b"],
        "quant_w": params["quant_w"],
        "quant_b": params["quant_b"],
        "pq_w": params["pq_w"],
        "pq_b": params["pq_b"],
    }


def tvae_apply(prepared, x_nchw, rng):
    B, C, H, W = x_nchw.shape
    x_nhwc = jnp.transpose(x_nchw, (0, 2, 3, 1)).astype(jnp.float32)
    M = B * H * W
    ed = prepared["quant_w"].shape[1] // 3
    zc = prepared["pq_w"].shape[1]

    # encode: stand-in encoder conv, bf16 internal activations
    h = conv3x3(x_nhwc, prepared["enc_band"], prepared["enc_b"],
                out_dtype=jnp.bfloat16)                        # (B,H,W*2zc)
    h_flat = h.reshape(M, -1)

    # Noise from the host RNG so the kernel also runs under the TPU interpreter.
    # TODO(synk): switch to in-kernel pltpu.prng_* generation for Mosaic-only use.
    k_eps, k_expo = jax.random.split(rng)
    eps = jax.random.normal(k_eps, (M, ed), jnp.float32)
    expo = jax.random.exponential(k_expo, (M, ed), jnp.float32)

    zp, zq, klp = quant_sample_postquant(
        h_flat, prepared["quant_w"], prepared["quant_b"],
        prepared["pq_w"], prepared["pq_b"], eps, expo, B, H * W)

    # decode: stand-in decoder conv with the log-cosh reduction fused in
    dec, lc = conv3x3(zq.reshape(B, H, W, zc), prepared["dec_band"],
                      prepared["dec_b"], out_dtype=jnp.float32,
                      target_nhwc=x_nhwc)                      # dec (B,H,W*C)
    return {"dec": dec, "zp": zp, "klp": klp, "lc": lc,
            "shape": (B, C, H, W), "ed": ed}


def _losses_from_apply(a):
    B, C, H, W = a["shape"]
    ed = a["ed"]
    # recon = mean(log(cosh(dec - x + 1e-12)))
    recon = jnp.sum(a["lc"][:, 0, 0]) / float(B * C * H * W)
    # student-t KL from the fused per-batch partial sums
    log_det = a["klp"][:, 0, 0]
    trace = a["klp"][:, 0, 1]
    logterm = a["klp"][:, 0, 2]
    df_sum = a["klp"][:, 0, 3]
    df_mean = df_sum / float(H * W * ed)
    digamma_term = digamma((df_mean + 1.0) / 2.0) - digamma(df_mean / 2.0)
    kl = 0.5 * (log_det + trace + df_mean * logterm + digamma_term)
    kl = jnp.mean(jnp.maximum(kl, 0.0))
    return recon, kl


def tvae_forward(prepared, x_nchw, rng):
    """Mirrors TVAE.forward: returns (input, dec, mu, logvar, df) in NCHW."""
    a = tvae_apply(prepared, x_nchw, rng)
    B, C, H, W = a["shape"]
    ed = a["ed"]
    zp = a["zp"]
    mu = zp[:, :ed]
    logvar = zp[:, ed:2 * ed]
    df = jnp.clip(jnp.exp(zp[:, 2 * ed:]) + 2.1, 2.1, 50.0)

    def to_nchw(flat, c):
        return jnp.transpose(flat.reshape(B, H, W, c), (0, 3, 1, 2))

    return (x_nchw, to_nchw(a["dec"], C), to_nchw(mu, ed),
            to_nchw(logvar, ed), to_nchw(df, ed))


def training_step(prepared, x_nchw, rng, lambda_recon=1000.0, lambda_kl=0.1):
    # loss-only path: no NCHW transposes of dec/mu/logvar/df are materialized.
    a = tvae_apply(prepared, x_nchw, rng)
    recon_loss, kl_loss = _losses_from_apply(a)
    return lambda_recon * recon_loss + lambda_kl * kl_loss


# ---------------------------------------------------------------------------
if __name__ == "__main__":
    key = jax.random.PRNGKey(0)
    k_params, k_x, k_sample = jax.random.split(key, 3)

    # ddconfig(in_channels=4, out_ch=4, z_channels=4, double_z=True),
    # embed_dim=4, resolution=16, batch=2
    in_channels = out_ch = 4
    z_channels = 4
    embed_dim = 4
    B, H, W = 2, 16, 16

    raw_params = init_params(k_params, in_channels, out_ch, z_channels, embed_dim)
    prepared = prepare_params(raw_params, W)   # banded conv weights built once
    x = jax.random.normal(k_x, (B, in_channels, H, W), jnp.float32)

    loss = jax.jit(training_step)(prepared, x, k_sample)
    outs = jax.jit(tvae_forward)(prepared, x, k_sample)
    jax.block_until_ready((loss, outs))
    print("KERNEL_OK")
</pallas_src>

<mosaic_0001>
module attributes {stable_mosaic.version = 11 : i64} {
  func.func @_conv3x3_kernel(%arg0: i32, %arg1: memref<1x18x72xbf16, #tpu.memory_space<vmem>>, %arg2: memref<3x72x128xbf16, #tpu.memory_space<vmem>>, %arg3: memref<1x128xf32, #tpu.memory_space<vmem>>, %arg4: memref<1x16x128xbf16, #tpu.memory_space<vmem>>) attributes {dimension_semantics = [#tpu.dimension_semantics<parallel>], iteration_bounds = array<i64: 2>, scalar_prefetch = 0 : i64, scratch_operands = 0 : i64, tpu.core_type = #tpu.core_type<tc>, window_params = [{transform_indices = @transform_0, window_bounds = array<i64: 1, 18, 72>}, {pipeline_mode = #tpu.pipeline_mode<synchronous>, transform_indices = @transform_1, window_bounds = array<i64: 3, 72, 128>}, {pipeline_mode = #tpu.pipeline_mode<synchronous>, transform_indices = @transform_2, window_bounds = array<i64: 1, 128>}, {transform_indices = @transform_3, window_bounds = array<i64: 1, 16, 128>}]} {
    %cst = arith.constant 0.000000e+00 : f32
    %0 = vector.broadcast %cst : f32 to vector<16x128xf32>
    %c0 = arith.constant 0 : index
    %c0_0 = arith.constant 0 : index
    %c0_1 = arith.constant 0 : index
    %1 = vector.load %arg1[%c0, %c0_0, %c0_1] : memref<1x18x72xbf16, #tpu.memory_space<vmem>>, vector<1x16x72xbf16>
    %2 = vector.shape_cast %1 : vector<1x16x72xbf16> to vector<16x72xbf16>
    %c0_2 = arith.constant 0 : index
    %c0_3 = arith.constant 0 : index
    %c0_4 = arith.constant 0 : index
    %3 = vector.load %arg2[%c0_2, %c0_3, %c0_4] : memref<3x72x128xbf16, #tpu.memory_space<vmem>>, vector<1x72x128xbf16>
    %4 = vector.shape_cast %3 : vector<1x72x128xbf16> to vector<72x128xbf16>
    %cst_5 = arith.constant dense<0.000000e+00> : vector<16x128xf32>
    %5 = tpu.matmul %2, %4, %cst_5 {dimension_numbers = #tpu.dot_dimension_numbers<[1], [0], [0], [1], [0, 0, 1, 1], [], []>} : vector<16x72xbf16>, vector<72x128xbf16>, vector<16x128xf32> -> vector<16x128xf32>
    %6 = arith.addf %0, %5 : vector<16x128xf32>
    %c0_6 = arith.constant 0 : index
    %c1 = arith.constant 1 : index
    %c0_7 = arith.constant 0 : index
    %7 = vector.load %arg1[%c0_6, %c1, %c0_7] : memref<1x18x72xbf16, #tpu.memory_space<vmem>>, vector<1x16x72xbf16>
    %8 = vector.shape_cast %7 : vector<1x16x72xbf16> to vector<16x72xbf16>
    %c1_8 = arith.constant 1 : index
    %c0_9 = arith.constant 0 : index
    %c0_10 = arith.constant 0 : index
    %9 = vector.load %arg2[%c1_8, %c0_9, %c0_10] : memref<3x72x128xbf16, #tpu.memory_space<vmem>>, vector<1x72x128xbf16>
    %10 = vector.shape_cast %9 : vector<1x72x128xbf16> to vector<72x128xbf16>
    %cst_11 = arith.constant dense<0.000000e+00> : vector<16x128xf32>
    %11 = tpu.matmul %8, %10, %cst_11 {dimension_numbers = #tpu.dot_dimension_numbers<[1], [0], [0], [1], [0, 0, 1, 1], [], []>} : vector<16x72xbf16>, vector<72x128xbf16>, vector<16x128xf32> -> vector<16x128xf32>
    %12 = arith.addf %6, %11 : vector<16x128xf32>
    %c0_12 = arith.constant 0 : index
    %c2 = arith.constant 2 : index
    %c0_13 = arith.constant 0 : index
    %13 = vector.load %arg1[%c0_12, %c2, %c0_13] : memref<1x18x72xbf16, #tpu.memory_space<vmem>>, vector<1x16x72xbf16>
    %14 = vector.shape_cast %13 : vector<1x16x72xbf16> to vector<16x72xbf16>
    %c2_14 = arith.constant 2 : index
    %c0_15 = arith.constant 0 : index
    %c0_16 = arith.constant 0 : index
    %15 = vector.load %arg2[%c2_14, %c0_15, %c0_16] : memref<3x72x128xbf16, #tpu.memory_space<vmem>>, vector<1x72x128xbf16>
    %16 = vector.shape_cast %15 : vector<1x72x128xbf16> to vector<72x128xbf16>
    %cst_17 = arith.constant dense<0.000000e+00> : vector<16x128xf32>
    %17 = tpu.matmul %14, %16, %cst_17 {dimension_numbers = #tpu.dot_dimension_numbers<[1], [0], [0], [1], [0, 0, 1, 1], [], []>} : vector<16x72xbf16>, vector<72x128xbf16>, vector<16x128xf32> -> vector<16x128xf32>
    %18 = arith.addf %12, %17 : vector<16x128xf32>
    %c0_18 = arith.constant 0 : index
    %c0_19 = arith.constant 0 : index
    %19 = vector.load %arg3[%c0_18, %c0_19] : memref<1x128xf32, #tpu.memory_space<vmem>>, vector<1x128xf32>
    %20 = vector.broadcast %19 : vector<1x128xf32> to vector<16x128xf32>
    %21 = arith.addf %18, %20 : vector<16x128xf32>
    %22 = arith.truncf %21 : vector<16x128xf32> to vector<16x128xbf16>
    %c0_20 = arith.constant 0 : index
    %c0_21 = arith.constant 0 : index
    %c0_22 = arith.constant 0 : index
    %23 = vector.load %arg4[%c0_20, %c0_21, %c0_22] : memref<1x16x128xbf16, #tpu.memory_space<vmem>>, vector<1x16x128xbf16>
    %24 = vector.shape_cast %23 : vector<1x16x128xbf16> to vector<16x128xbf16>
    %25 = vector.shape_cast %22 : vector<16x128xbf16> to vector<1x16x128xbf16>
    tpu.vector_store %arg4[%c0_20, %c0_21, %c0_22], %25 {strides = array<i32>} : memref<1x16x128xbf16, #tpu.memory_space<vmem>>, vector<1x16x128xbf16>,
    return
  }
  func.func @transform_0(%arg0: i32) -> (i32, i32, i32) {
    %c0_i32 = arith.constant 0 : i32
    %c0_i32_0 = arith.constant 0 : i32
    %c0_i32_1 = arith.constant 0 : i32
    return %arg0, %c0_i32, %c0_i32_0 : i32, i32, i32
  }
  func.func @transform_1(%arg0: i32) -> (i32, i32, i32) {
    %c0_i32 = arith.constant 0 : i32
    %c0_i32_0 = arith.constant 0 : i32
    %c0_i32_1 = arith.constant 0 : i32
    %c0_i32_2 = arith.constant 0 : i32
    return %c0_i32, %c0_i32_0, %c0_i32_1 : i32, i32, i32
  }
  func.func @transform_2(%arg0: i32) -> (i32, i32) {
    %c0_i32 = arith.constant 0 : i32
    %c0_i32_0 = arith.constant 0 : i32
    %c0_i32_1 = arith.constant 0 : i32
    return %c0_i32, %c0_i32_0 : i32, i32
  }
  func.func @transform_3(%arg0: i32) -> (i32, i32, i32) {
    %c0_i32 = arith.constant 0 : i32
    %c0_i32_0 = arith.constant 0 : i32
    %c0_i32_1 = arith.constant 0 : i32
    return %arg0, %c0_i32, %c0_i32_0 : i32, i32, i32
  }
}

module attributes {stable_mosaic.version = 11 : i64} {
  func.func @_quant_sample_pq_kernel(%arg0: i32, %arg1: i32, %arg2: memref<256x8xbf16, #tpu.memory_space<vmem>>, %arg3: memref<8x12xf32, #tpu.memory_space<vmem>>, %arg4: memref<1x12xf32, #tpu.memory_space<vmem>>, %arg5: memref<4x4xf32, #tpu.memory_space<vmem>>, %arg6: memref<1x4xf32, #tpu.memory_space<vmem>>, %arg7: memref<256x4xf32, #tpu.memory_space<vmem>>, %arg8: memref<256x4xf32, #tpu.memory_space<vmem>>, %arg9: memref<256x12xf32, #tpu.memory_space<vmem>>, %arg10: memref<256x4xbf16, #tpu.memory_space<vmem>>, %arg11: memref<1x1x128xf32, #tpu.memory_space<vmem>>) attributes {dimension_semantics = [#tpu.dimension_semantics<parallel>, #tpu.dimension_semantics<arbitrary>], iteration_bounds = array<i64: 2, 1>, scalar_prefetch = 0 : i64, scratch_operands = 0 : i64, tpu.core_type = #tpu.core_type<tc>, window_params = [{transform_indices = @transform_0, window_bounds = array<i64: 256, 8>}, {pipeline_mode = #tpu.pipeline_mode<synchronous>, transform_indices = @transform_1, window_bounds = array<i64: 8, 12>}, {pipeline_mode = #tpu.pipeline_mode<synchronous>, transform_indices = @transform_2, window_bounds = array<i64: 1, 12>}, {pipeline_mode = #tpu.pipeline_mode<synchronous>, transform_indices = @transform_3, window_bounds = array<i64: 4, 4>}, {pipeline_mode = #tpu.pipeline_mode<synchronous>, transform_indices = @transform_4, window_bounds = array<i64: 1, 4>}, {transform_indices = @transform_5, window_bounds = array<i64: 256, 4>}, {transform_indices = @transform_6, window_bounds = array<i64: 256, 4>}, {transform_indices = @transform_7, window_bounds = array<i64: 256, 12>}, {transform_indices = @transform_8, window_bounds = array<i64: 256, 4>}, {transform_indices = @transform_9, window_bounds = array<i64: 1, 1, 128>}]} {
    %c0 = arith.constant 0 : index
    %c0_0 = arith.constant 0 : index
    %0 = vector.load %arg2[%c0, %c0_0] : memref<256x8xbf16, #tpu.memory_space<vmem>>, vector<256x8xbf16>
    %1 = arith.extf %0 : vector<256x8xbf16> to vector<256x8xf32>
    %c0_1 = arith.constant 0 : index
    %c0_2 = arith.constant 0 : index
    %2 = vector.load %arg3[%c0_1, %c0_2] : memref<8x12xf32, #tpu.memory_space<vmem>>, vector<8x12xf32>
    %cst = arith.constant dense<0.000000e+00> : vector<256x12xf32>
    %3 = tpu.matmul %1, %2, %cst {dimension_numbers = #tpu.dot_dimension_numbers<[1], [0], [0], [1], [0, 0, 1, 1], [], []>} : vector<256x8xf32>, vector<8x12xf32>, vector<256x12xf32> -> vector<256x12xf32>
    %c0_3 = arith.constant 0 : index
    %c0_4 = arith.constant 0 : index
    %4 = vector.load %arg4[%c0_3, %c0_4] : memref<1x12xf32, #tpu.memory_space<vmem>>, vector<1x12xf32>
    %5 = vector.broadcast %4 : vector<1x12xf32> to vector<256x12xf32>
    %6 = arith.addf %3, %5 : vector<256x12xf32>
    %7 = vector.extract_strided_slice %6 {offsets = [0, 0], sizes = [256, 4], strides = [1, 1]} : vector<256x12xf32> to vector<256x4xf32>
    %8 = vector.extract_strided_slice %6 {offsets = [0, 4], sizes = [256, 4], strides = [1, 1]} : vector<256x12xf32> to vector<256x4xf32>
    %9 = vector.extract_strided_slice %6 {offsets = [0, 8], sizes = [256, 4], strides = [1, 1]} : vector<256x12xf32> to vector<256x4xf32>
    %10 = math.exp %9 : vector<256x4xf32>
    %cst_5 = arith.constant 2.100000e+00 : f32
    %11 = vector.broadcast %cst_5 : f32 to vector<256x4xf32>
    %12 = arith.addf %10, %11 : vector<256x4xf32>
    %cst_6 = arith.constant 2.100000e+00 : f32
    %cst_7 = arith.constant 5.000000e+01 : f32
    %13 = vector.broadcast %cst_6 : f32 to vector<256x4xf32>
    %14 = arith.maximumf %13, %12 : vector<256x4xf32>
    %15 = vector.broadcast %cst_7 : f32 to vector<256x4xf32>
    %16 = arith.minimumf %15, %14 : vector<256x4xf32>
    %cst_8 = arith.constant 5.000000e-01 : f32
    %17 = vector.broadcast %cst_8 : f32 to vector<256x4xf32>
    %18 = arith.mulf %17, %8 : vector<256x4xf32>
    %19 = math.exp %18 : vector<256x4xf32>
    %c0_9 = arith.constant 0 : index
    %c0_10 = arith.constant 0 : index
    %20 = vector.load %arg8[%c0_9, %c0_10] : memref<256x4xf32, #tpu.memory_space<vmem>>, vector<256x4xf32>
    %cst_11 = arith.constant 9.99999968E-21 : f32
    %21 = vector.broadcast %cst_11 : f32 to vector<256x4xf32>
    %22 = arith.maximumf %20, %21 : vector<256x4xf32>
    %c0_12 = arith.constant 0 : index
    %c0_13 = arith.constant 0 : index
    %23 = vector.load %arg7[%c0_12, %c0_13] : memref<256x4xf32, #tpu.memory_space<vmem>>, vector<256x4xf32>
    %24 = arith.mulf %19, %23 : vector<256x4xf32>
    %25 = math.rsqrt %22 : vector<256x4xf32>
    %26 = arith.mulf %16, %25 : vector<256x4xf32>
    %27 = arith.mulf %24, %26 : vector<256x4xf32>
    %28 = arith.addf %7, %27 : vector<256x4xf32>
    %c0_14 = arith.constant 0 : index
    %c0_15 = arith.constant 0 : index
    %29 = vector.load %arg5[%c0_14, %c0_15] : memref<4x4xf32, #tpu.memory_space<vmem>>, vector<4x4xf32>
    %cst_16 = arith.constant dense<0.000000e+00> : vector<256x4xf32>
    %30 = tpu.matmul %28, %29, %cst_16 {dimension_numbers = #tpu.dot_dimension_numbers<[1], [0], [0], [1], [0, 0, 1, 1], [], []>} : vector<256x4xf32>, vector<4x4xf32>, vector<256x4xf32> -> vector<256x4xf32>
    %c0_17 = arith.constant 0 : index
    %c0_18 = arith.constant 0 : index
    %31 = vector.load %arg6[%c0_17, %c0_18] : memref<1x4xf32, #tpu.memory_space<vmem>>, vector<1x4xf32>
    %32 = vector.broadcast %31 : vector<1x4xf32> to vector<256x4xf32>
    %33 = arith.addf %30, %32 : vector<256x4xf32>
    %34 = arith.truncf %33 : vector<256x4xf32> to vector<256x4xbf16>
    %c0_19 = arith.constant 0 : index
    %c0_20 = arith.constant 0 : index
    %35 = vector.load %arg10[%c0_19, %c0_20] : memref<256x4xbf16, #tpu.memory_space<vmem>>, vector<256x4xbf16>
    tpu.vector_store %arg10[%c0_19, %c0_20], %34 {strides = array<i32>} : memref<256x4xbf16, #tpu.memory_space<vmem>>, vector<256x4xbf16>,
    %c0_21 = arith.constant 0 : index
    %c0_22 = arith.constant 0 : index
    %36 = vector.load %arg9[%c0_21, %c0_22] : memref<256x12xf32, #tpu.memory_space<vmem>>, vector<256x12xf32>
    tpu.vector_store %arg9[%c0_21, %c0_22], %6 {strides = array<i32>} : memref<256x12xf32, #tpu.memory_space<vmem>>, vector<256x12xf32>,
    %c0_i32 = arith.constant 0 : i32
    %37 = arith.cmpi eq, %arg1, %c0_i32 : i32
    %38 = arith.extui %37 : i1 to i32
    %c0_i32_23 = arith.constant 0 : i32
    %39 = arith.cmpi ne, %38, %c0_i32_23 : i32
    scf.if %39 {
      %cst_44 = arith.constant 0.000000e+00 : f32
      %100 = vector.broadcast %cst_44 : f32 to vector<1x1x128xf32>
      %c0_45 = arith.constant 0 : index
      %c0_46 = arith.constant 0 : index
      %c0_47 = arith.constant 0 : index
      %101 = vector.load %arg11[%c0_45, %c0_46, %c0_47] : memref<1x1x128xf32, #tpu.memory_space<vmem>>, vector<1x1x128xf32>
      tpu.vector_store %arg11[%c0_45, %c0_46, %c0_47], %100 {strides = array<i32>} : memref<1x1x128xf32, #tpu.memory_space<vmem>>, vector<1x1x128xf32>,
    } else {
    }
    %cst_24 = arith.constant 2.1000011 : f32
    %40 = vector.broadcast %cst_24 : f32 to vector<256x4xf32>
    %41 = arith.maximumf %16, %40 : vector<256x4xf32>
    %42 = math.exp %8 : vector<256x4xf32>
    %43 = arith.mulf %41, %42 : vector<256x4xf32>
    %cst_25 = arith.constant 9.99999997E-7 : f32
    %44 = vector.broadcast %cst_25 : f32 to vector<256x4xf32>
    %45 = arith.addf %43, %44 : vector<256x4xf32>
    %cst_26 = arith.constant 1.000000e+00 : f32
    %46 = vector.broadcast %cst_26 : f32 to vector<256x4xf32>
    %47 = arith.divf %46, %45 : vector<256x4xf32>
    %48 = arith.mulf %7, %7 : vector<256x4xf32>
    %49 = vector.shape_cast %8 : vector<256x4xf32> to vector<1x256x4xf32>
    %cst_27 = arith.constant dense<0.000000e+00> : vector<1xf32>
    %50 = vector.multi_reduction <add>, %49, %cst_27 [1, 2] : vector<1x256x4xf32> to vector<1xf32>
    %51 = vector.shape_cast %50 : vector<1xf32> to vector<1x1x1xf32>
    %52 = vector.extract %51[0, 0, 0] : f32 from vector<1x1x1xf32>
    %53 = arith.addf %48, %42 : vector<256x4xf32>
    %54 = arith.mulf %53, %47 : vector<256x4xf32>
    %55 = vector.shape_cast %54 : vector<256x4xf32> to vector<1x256x4xf32>
    %cst_28 = arith.constant dense<0.000000e+00> : vector<1xf32>
    %56 = vector.multi_reduction <add>, %55, %cst_28 [1, 2] : vector<1x256x4xf32> to vector<1xf32>
    %57 = vector.shape_cast %56 : vector<1xf32> to vector<1x1x1xf32>
    %58 = vector.extract %57[0, 0, 0] : f32 from vector<1x1x1xf32>
    %59 = arith.mulf %48, %47 : vector<256x4xf32>
    %cst_29 = arith.constant 1.000000e+00 : f32
    %60 = vector.broadcast %cst_29 : f32 to vector<256x4xf32>
    %61 = arith.addf %60, %59 : vector<256x4xf32>
    %62 = math.log %61 : vector<256x4xf32>
    %63 = vector.shape_cast %62 : vector<256x4xf32> to vector<1x256x4xf32>
    %cst_30 = arith.constant dense<0.000000e+00> : vector<1xf32>
    %64 = vector.multi_reduction <add>, %63, %cst_30 [1, 2] : vector<1x256x4xf32> to vector<1xf32>
    %65 = vector.shape_cast %64 : vector<1xf32> to vector<1x1x1xf32>
    %66 = vector.extract %65[0, 0, 0] : f32 from vector<1x1x1xf32>
    %67 = vector.shape_cast %41 : vector<256x4xf32> to vector<1x256x4xf32>
    %cst_31 = arith.constant dense<0.000000e+00> : vector<1xf32>
    %68 = vector.multi_reduction <add>, %67, %cst_31 [1, 2] : vector<1x256x4xf32> to vector<1xf32>
    %69 = vector.shape_cast %68 : vector<1xf32> to vector<1x1x1xf32>
    %70 = vector.extract %69[0, 0, 0] : f32 from vector<1x1x1xf32>
    %71 = tpu.iota {dimensions = array<i32: 2>} : vector<1x1x128xi32>
    %cst_32 = arith.constant 0.000000e+00 : f32
    %72 = vector.broadcast %cst_32 : f32 to vector<1x1x128xf32>
    %c0_i32_33 = arith.constant 0 : i32
    %73 = vector.broadcast %c0_i32_33 : i32 to vector<1x1x128xi32>
    %74 = arith.cmpi eq, %71, %73 : vector<1x1x128xi32>
    %cst_34 = arith.constant 0.000000e+00 : f32
    %75 = vector.broadcast %52 : f32 to vector<1x1x128xf32>
    %76 = vector.broadcast %cst_34 : f32 to vector<1x1x128xf32>
    %77 = arith.select %74, %75, %76 : vector<1x1x128xi1>, vector<1x1x128xf32>
    %78 = arith.addf %72, %77 : vector<1x1x128xf32>
    %c1_i32 = arith.constant 1 : i32
    %79 = vector.broadcast %c1_i32 : i32 to vector<1x1x128xi32>
    %80 = arith.cmpi eq, %71, %79 : vector<1x1x128xi32>
    %cst_35 = arith.constant 0.000000e+00 : f32
    %81 = vector.broadcast %58 : f32 to vector<1x1x128xf32>
    %82 = vector.broadcast %cst_35 : f32 to vector<1x1x128xf32>
    %83 = arith.select %80, %81, %82 : vector<1x1x128xi1>, vector<1x1x128xf32>
    %84 = arith.addf %78, %83 : vector<1x1x128xf32>
    %c2_i32 = arith.constant 2 : i32
    %85 = vector.broadcast %c2_i32 : i32 to vector<1x1x128xi32>
    %86 = arith.cmpi eq, %71, %85 : vector<1x1x128xi32>
    %cst_36 = arith.constant 0.000000e+00 : f32
    %87 = vector.broadcast %66 : f32 to vector<1x1x128xf32>
    %88 = vector.broadcast %cst_36 : f32 to vector<1x1x128xf32>
    %89 = arith.select %86, %87, %88 : vector<1x1x128xi1>, vector<1x1x128xf32>
    %90 = arith.addf %84, %89 : vector<1x1x128xf32>
    %c3_i32 = arith.constant 3 : i32
    %91 = vector.broadcast %c3_i32 : i32 to vector<1x1x128xi32>
    %92 = arith.cmpi eq, %71, %91 : vector<1x1x128xi32>
    %cst_37 = arith.constant 0.000000e+00 : f32
    %93 = vector.broadcast %70 : f32 to vector<1x1x128xf32>
    %94 = vector.broadcast %cst_37 : f32 to vector<1x1x128xf32>
    %95 = arith.select %92, %93, %94 : vector<1x1x128xi1>, vector<1x1x128xf32>
    %96 = arith.addf %90, %95 : vector<1x1x128xf32>
    %c0_38 = arith.constant 0 : index
    %c0_39 = arith.constant 0 : index
    %c0_40 = arith.constant 0 : index
    %97 = vector.load %arg11[%c0_38, %c0_39, %c0_40] : memref<1x1x128xf32, #tpu.memory_space<vmem>>, vector<1x1x128xf32>
    %98 = arith.addf %97, %96 : vector<1x1x128xf32>
    %c0_41 = arith.constant 0 : index
    %c0_42 = arith.constant 0 : index
    %c0_43 = arith.constant 0 : index
    %99 = vector.load %arg11[%c0_41, %c0_42, %c0_43] : memref<1x1x128xf32, #tpu.memory_space<vmem>>, vector<1x1x128xf32>
    tpu.vector_store %arg11[%c0_41, %c0_42, %c0_43], %98 {strides = array<i32>} : memref<1x1x128xf32, #tpu.memory_space<vmem>>, vector<1x1x128xf32>,
    return
  }
  func.func @transform_0(%arg0: i32, %arg1: i32) -> (i32, i32) {
    %c1_i32 = arith.constant 1 : i32
    %0 = arith.muli %arg0, %c1_i32 : i32
    %1 = arith.addi %0, %arg1 : i32
    %c0_i32 = arith.constant 0 : i32
    %c0_i32_0 = arith.constant 0 : i32
    return %1, %c0_i32 : i32, i32
  }
  func.func @transform_1(%arg0: i32, %arg1: i32) -> (i32, i32) {
    %c0_i32 = arith.constant 0 : i32
    %c0_i32_0 = arith.constant 0 : i32
    %c0_i32_1 = arith.constant 0 : i32
    return %c0_i32, %c0_i32_0 : i32, i32
  }
  func.func @transform_2(%arg0: i32, %arg1: i32) -> (i32, i32) {
    %c0_i32 = arith.constant 0 : i32
    %c0_i32_0 = arith.constant 0 : i32
    %c0_i32_1 = arith.constant 0 : i32
    return %c0_i32, %c0_i32_0 : i32, i32
  }
  func.func @transform_3(%arg0: i32, %arg1: i32) -> (i32, i32) {
    %c0_i32 = arith.constant 0 : i32
    %c0_i32_0 = arith.constant 0 : i32
    %c0_i32_1 = arith.constant 0 : i32
    return %c0_i32, %c0_i32_0 : i32, i32
  }
  func.func @transform_4(%arg0: i32, %arg1: i32) -> (i32, i32) {
    %c0_i32 = arith.constant 0 : i32
    %c0_i32_0 = arith.constant 0 : i32
    %c0_i32_1 = arith.constant 0 : i32
    return %c0_i32, %c0_i32_0 : i32, i32
  }
  func.func @transform_5(%arg0: i32, %arg1: i32) -> (i32, i32) {
    %c1_i32 = arith.constant 1 : i32
    %0 = arith.muli %arg0, %c1_i32 : i32
    %1 = arith.addi %0, %arg1 : i32
    %c0_i32 = arith.constant 0 : i32
    %c0_i32_0 = arith.constant 0 : i32
    return %1, %c0_i32 : i32, i32
  }
  func.func @transform_6(%arg0: i32, %arg1: i32) -> (i32, i32) {
    %c1_i32 = arith.constant 1 : i32
    %0 = arith.muli %arg0, %c1_i32 : i32
    %1 = arith.addi %0, %arg1 : i32
    %c0_i32 = arith.constant 0 : i32
    %c0_i32_0 = arith.constant 0 : i32
    return %1, %c0_i32 : i32, i32
  }
  func.func @transform_7(%arg0: i32, %arg1: i32) -> (i32, i32) {
    %c1_i32 = arith.constant 1 : i32
    %0 = arith.muli %arg0, %c1_i32 : i32
    %1 = arith.addi %0, %arg1 : i32
    %c0_i32 = arith.constant 0 : i32
    %c0_i32_0 = arith.constant 0 : i32
    return %1, %c0_i32 : i32, i32
  }
  func.func @transform_8(%arg0: i32, %arg1: i32) -> (i32, i32) {
    %c1_i32 = arith.constant 1 : i32
    %0 = arith.muli %arg0, %c1_i32 : i32
    %1 = arith.addi %0, %arg1 : i32
    %c0_i32 = arith.constant 0 : i32
    %c0_i32_0 = arith.constant 0 : i32
    return %1, %c0_i32 : i32, i32
  }
  func.func @transform_9(%arg0: i32, %arg1: i32) -> (i32, i32, i32) {
    %c0_i32 = arith.constant 0 : i32
    %c0_i32_0 = arith.constant 0 : i32
    %c0_i32_1 = arith.constant 0 : i32
    return %arg0, %c0_i32, %c0_i32_0 : i32, i32, i32
  }
}

module attributes {stable_mosaic.version = 11 : i64} {
  func.func @_conv3x3_logcosh_kernel(%arg0: i32, %arg1: memref<1x18x72xbf16, #tpu.memory_space<vmem>>, %arg2: memref<3x72x64xbf16, #tpu.memory_space<vmem>>, %arg3: memref<1x64xf32, #tpu.memory_space<vmem>>, %arg4: memref<1x16x64xf32, #tpu.memory_space<vmem>>, %arg5: memref<1x16x64xf32, #tpu.memory_space<vmem>>, %arg6: memref<1x1x128xf32, #tpu.memory_space<vmem>>) attributes {dimension_semantics = [#tpu.dimension_semantics<parallel>], iteration_bounds = array<i64: 2>, scalar_prefetch = 0 : i64, scratch_operands = 0 : i64, tpu.core_type = #tpu.core_type<tc>, window_params = [{transform_indices = @transform_0, window_bounds = array<i64: 1, 18, 72>}, {pipeline_mode = #tpu.pipeline_mode<synchronous>, transform_indices = @transform_1, window_bounds = array<i64: 3, 72, 64>}, {pipeline_mode = #tpu.pipeline_mode<synchronous>, transform_indices = @transform_2, window_bounds = array<i64: 1, 64>}, {transform_indices = @transform_3, window_bounds = array<i64: 1, 16, 64>}, {transform_indices = @transform_4, window_bounds = array<i64: 1, 16, 64>}, {transform_indices = @transform_5, window_bounds = array<i64: 1, 1, 128>}]} {
    %cst = arith.constant 0.000000e+00 : f32
    %0 = vector.broadcast %cst : f32 to vector<16x64xf32>
    %c0 = arith.constant 0 : index
    %c0_0 = arith.constant 0 : index
    %c0_1 = arith.constant 0 : index
    %1 = vector.load %arg1[%c0, %c0_0, %c0_1] : memref<1x18x72xbf16, #tpu.memory_space<vmem>>, vector<1x16x72xbf16>
    %2 = vector.shape_cast %1 : vector<1x16x72xbf16> to vector<16x72xbf16>
    %c0_2 = arith.constant 0 : index
    %c0_3 = arith.constant 0 : index
    %c0_4 = arith.constant 0 : index
    %3 = vector.load %arg2[%c0_2, %c0_3, %c0_4] : memref<3x72x64xbf16, #tpu.memory_space<vmem>>, vector<1x72x64xbf16>
    %4 = vector.shape_cast %3 : vector<1x72x64xbf16> to vector<72x64xbf16>
    %cst_5 = arith.constant dense<0.000000e+00> : vector<16x64xf32>
    %5 = tpu.matmul %2, %4, %cst_5 {dimension_numbers = #tpu.dot_dimension_numbers<[1], [0], [0], [1], [0, 0, 1, 1], [], []>} : vector<16x72xbf16>, vector<72x64xbf16>, vector<16x64xf32> -> vector<16x64xf32>
    %6 = arith.addf %0, %5 : vector<16x64xf32>
    %c0_6 = arith.constant 0 : index
    %c1 = arith.constant 1 : index
    %c0_7 = arith.constant 0 : index
    %7 = vector.load %arg1[%c0_6, %c1, %c0_7] : memref<1x18x72xbf16, #tpu.memory_space<vmem>>, vector<1x16x72xbf16>
    %8 = vector.shape_cast %7 : vector<1x16x72xbf16> to vector<16x72xbf16>
    %c1_8 = arith.constant 1 : index
    %c0_9 = arith.constant 0 : index
    %c0_10 = arith.constant 0 : index
    %9 = vector.load %arg2[%c1_8, %c0_9, %c0_10] : memref<3x72x64xbf16, #tpu.memory_space<vmem>>, vector<1x72x64xbf16>
    %10 = vector.shape_cast %9 : vector<1x72x64xbf16> to vector<72x64xbf16>
    %cst_11 = arith.constant dense<0.000000e+00> : vector<16x64xf32>
    %11 = tpu.matmul %8, %10, %cst_11 {dimension_numbers = #tpu.dot_dimension_numbers<[1], [0], [0], [1], [0, 0, 1, 1], [], []>} : vector<16x72xbf16>, vector<72x64xbf16>, vector<16x64xf32> -> vector<16x64xf32>
    %12 = arith.addf %6, %11 : vector<16x64xf32>
    %c0_12 = arith.constant 0 : index
    %c2 = arith.constant 2 : index
    %c0_13 = arith.constant 0 : index
    %13 = vector.load %arg1[%c0_12, %c2, %c0_13] : memref<1x18x72xbf16, #tpu.memory_space<vmem>>, vector<1x16x72xbf16>
    %14 = vector.shape_cast %13 : vector<1x16x72xbf16> to vector<16x72xbf16>
    %c2_14 = arith.constant 2 : index
    %c0_15 = arith.constant 0 : index
    %c0_16 = arith.constant 0 : index
    %15 = vector.load %arg2[%c2_14, %c0_15, %c0_16] : memref<3x72x64xbf16, #tpu.memory_space<vmem>>, vector<1x72x64xbf16>
    %16 = vector.shape_cast %15 : vector<1x72x64xbf16> to vector<72x64xbf16>
    %cst_17 = arith.constant dense<0.000000e+00> : vector<16x64xf32>
    %17 = tpu.matmul %14, %16, %cst_17 {dimension_numbers = #tpu.dot_dimension_numbers<[1], [0], [0], [1], [0, 0, 1, 1], [], []>} : vector<16x72xbf16>, vector<72x64xbf16>, vector<16x64xf32> -> vector<16x64xf32>
    %18 = arith.addf %12, %17 : vector<16x64xf32>
    %c0_18 = arith.constant 0 : index
    %c0_19 = arith.constant 0 : index
    %19 = vector.load %arg3[%c0_18, %c0_19] : memref<1x64xf32, #tpu.memory_space<vmem>>, vector<1x64xf32>
    %20 = vector.broadcast %19 : vector<1x64xf32> to vector<16x64xf32>
    %21 = arith.addf %18, %20 : vector<16x64xf32>
    %c0_20 = arith.constant 0 : index
    %c0_21 = arith.constant 0 : index
    %c0_22 = arith.constant 0 : index
    %22 = vector.load %arg5[%c0_20, %c0_21, %c0_22] : memref<1x16x64xf32, #tpu.memory_space<vmem>>, vector<1x16x64xf32>
    %23 = vector.shape_cast %22 : vector<1x16x64xf32> to vector<16x64xf32>
    %24 = vector.shape_cast %21 : vector<16x64xf32> to vector<1x16x64xf32>
    tpu.vector_store %arg5[%c0_20, %c0_21, %c0_22], %24 {strides = array<i32>} : memref<1x16x64xf32, #tpu.memory_space<vmem>>, vector<1x16x64xf32>,
    %c0_23 = arith.constant 0 : index
    %c0_24 = arith.constant 0 : index
    %c0_25 = arith.constant 0 : index
    %25 = vector.load %arg4[%c0_23, %c0_24, %c0_25] : memref<1x16x64xf32, #tpu.memory_space<vmem>>, vector<1x16x64xf32>
    %26 = vector.shape_cast %25 : vector<1x16x64xf32> to vector<16x64xf32>
    %27 = arith.subf %21, %26 : vector<16x64xf32>
    %cst_26 = arith.constant 9.99999996E-13 : f32
    %28 = vector.broadcast %cst_26 : f32 to vector<16x64xf32>
    %29 = arith.addf %27, %28 : vector<16x64xf32>
    %30 = math.absf %29 : vector<16x64xf32>
    %cst_27 = arith.constant -2.000000e+00 : f32
    %31 = vector.broadcast %cst_27 : f32 to vector<16x64xf32>
    %32 = arith.mulf %31, %30 : vector<16x64xf32>
    %33 = math.exp %32 : vector<16x64xf32>
    %cst_28 = arith.constant 1.000000e+00 : f32
    %34 = vector.broadcast %cst_28 : f32 to vector<16x64xf32>
    %35 = arith.addf %34, %33 : vector<16x64xf32>
    %cst_29 = arith.constant 5.000000e-01 : f32
    %36 = vector.broadcast %cst_29 : f32 to vector<16x64xf32>
    %37 = arith.mulf %36, %35 : vector<16x64xf32>
    %38 = math.log %37 : vector<16x64xf32>
    %39 = arith.addf %30, %38 : vector<16x64xf32>
    %40 = vector.shape_cast %39 : vector<16x64xf32> to vector<1x16x64xf32>
    %cst_30 = arith.constant dense<0.000000e+00> : vector<1xf32>
    %41 = vector.multi_reduction <add>, %40, %cst_30 [1, 2] : vector<1x16x64xf32> to vector<1xf32>
    %42 = vector.shape_cast %41 : vector<1xf32> to vector<1x1x1xf32>
    %43 = vector.extract %42[0, 0, 0] : f32 from vector<1x1x1xf32>
    %44 = vector.broadcast %43 : f32 to vector<1x1x128xf32>
    %c0_31 = arith.constant 0 : index
    %c0_32 = arith.constant 0 : index
    %c0_33 = arith.constant 0 : index
    %45 = vector.load %arg6[%c0_31, %c0_32, %c0_33] : memref<1x1x128xf32, #tpu.memory_space<vmem>>, vector<1x1x128xf32>
    tpu.vector_store %arg6[%c0_31, %c0_32, %c0_33], %44 {strides = array<i32>} : memref<1x1x128xf32, #tpu.memory_space<vmem>>, vector<1x1x128xf32>,
    return
  }
  func.func @transform_0(%arg0: i32) -> (i32, i32, i32) {
    %c0_i32 = arith.constant 0 : i32
    %c0_i32_0 = arith.constant 0 : i32
    %c0_i32_1 = arith.constant 0 : i32
    return %arg0, %c0_i32, %c0_i32_0 : i32, i32, i32
  }
  func.func @transform_1(%arg0: i32) -> (i32, i32, i32) {
    %c0_i32 = arith.constant 0 : i32
    %c0_i32_0 = arith.constant 0 : i32
    %c0_i32_1 = arith.constant 0 : i32
    %c0_i32_2 = arith.constant 0 : i32
    return %c0_i32, %c0_i32_0, %c0_i32_1 : i32, i32, i32
  }
  func.func @transform_2(%arg0: i32) -> (i32, i32) {
    %c0_i32 = arith.constant 0 : i32
    %c0_i32_0 = arith.constant 0 : i32
    %c0_i32_1 = arith.constant 0 : i32
    return %c0_i32, %c0_i32_0 : i32, i32
  }
  func.func @transform_3(%arg0: i32) -> (i32, i32, i32) {
    %c0_i32 = arith.constant 0 : i32
    %c0_i32_0 = arith.constant 0 : i32
    %c0_i32_1 = arith.constant 0 : i32
    return %arg0, %c0_i32, %c0_i32_0 : i32, i32, i32
  }
  func.func @transform_4(%arg0: i32) -> (i32, i32, i32) {
    %c0_i32 = arith.constant 0 : i32
    %c0_i32_0 = arith.constant 0 : i32
    %c0_i32_1 = arith.constant 0 : i32
    return %arg0, %c0_i32, %c0_i32_0 : i32, i32, i32
  }
  func.func @transform_5(%arg0: i32) -> (i32, i32, i32) {
    %c0_i32 = arith.constant 0 : i32
    %c0_i32_0 = arith.constant 0 : i32
    %c0_i32_1 = arith.constant 0 : i32
    return %arg0, %c0_i32, %c0_i32_0 : i32, i32, i32
  }
}

</mosaic_0001>

<llo_original>
// kernel: tile.13
$region0: #{tile.13}
  #allocation0 [shape = 's32[1]{0}', space=sflag, size = 0x4, scoped, tag = 'scoped memory for tile.13']
  %s0 = inlined_call_operand.vmem [shape: f32[8], index: 0, kind: input, shape index: {}]
  %s1 = inlined_call_operand.vmem [shape: f32[16,8], index: 1, kind: output, shape index: {}]
  // Predicated region
  $region2: #{tile.13} parent=0 // pred_check
    _
  $region3: #{tile.13} parent=0 // pred_check_branch
    %3 = sbr.rel (0) target = $region5
  $region4: #{tile.13} parent=0 // pred_region
    _
  $region5: #{tile.13} parent=0 // pred_fallthru
    _
  %v4 = vld [vmem:[%s0] ss:$0 sm:$0xff]
  %5 = vst [vmem:[%s1] sm:$0xff] %v4
  %s6 = scalar_lea.vmem %s1, 8
  %7 = vst [vmem:[%s6] sm:$0xff] %v4

// kernel: tile.14
$region0: #{tile.14}
  %s0 = inlined_call_operand.vmem [shape: f32[16,8], index: 0, kind: input, shape index: {}]
  %s1 = inlined_call_operand.vmem [shape: f32[1,128], index: 1, kind: output, shape index: {}]
  $region1: #{tile.14} parent=0
    #allocation0 [shape = 'u8[4096]{0}', space=vmem, size = 0x1000, scoped, tag = 'scoped mem for output reshape']
    %v2 = vld [vmem:[%s0] sm:$0x1]
    %vm3 = vcmask 64512
    %4 = vst.msk [vmem:[#allocation0] sm:$0x1] %vm3, %v2
    %s5 = scalar_lea.vmem %s0, 15
    %v6 = vld [vmem:[%s5] sm:$0x1]
    %7 = vrot.lane.b32.xlu0 %v6, 120
    %v8 = vpop.permute.xlu0 %7
    %vm9 = vcmask 1048512
    %10 = vst.msk [vmem:[#allocation0] sm:$0x1] %vm9, %v8
    %s11 = scalar_lea.vmem %s0, 14
    %v12 = vld [vmem:[%s11] sm:$0x1]
    %13 = vrot.lane.b32.xlu0 %v12, 112
    %v14 = vpop.permute.xlu0 %13
    %vm15 = vcmask 982912
    %16 = vst.msk [vmem:[#allocation0] sm:$0x1] %vm15, %v14
    %s17 = scalar_lea.vmem %s0, 13
    %v18 = vld [vmem:[%s17] sm:$0x1]
    %19 = vrot.lane.b32.xlu0 %v18, 104
    %v20 = vpop.permute.xlu0 %19
    %vm21 = vcmask 917312
    %22 = vst.msk [vmem:[#allocation0] sm:$0x1] %vm21, %v20
    %s23 = scalar_lea.vmem %s0, 12
    %v24 = vld [vmem:[%s23] sm:$0x1]
    %25 = vrot.lane.b32.xlu0 %v24, 96
    %v26 = vpop.permute.xlu0 %25
    %vm27 = vcmask 851712
    %28 = vst.msk [vmem:[#allocation0] sm:$0x1] %vm27, %v26
    %s29 = scalar_lea.vmem %s0, 11
    %v30 = vld [vmem:[%s29] sm:$0x1]
    %31 = vrot.lane.b32.xlu0 %v30, 88
    %v32 = vpop.permute.xlu0 %31
    %vm33 = vcmask 786112
    %34 = vst.msk [vmem:[#allocation0] sm:$0x1] %vm33, %v32
    %s35 = scalar_lea.vmem %s0, 10
    %v36 = vld [vmem:[%s35] sm:$0x1]
    %37 = vrot.lane.b32.xlu0 %v36, 80
    %v38 = vpop.permute.xlu0 %37
    %vm39 = vcmask 720512
    %40 = vst.msk [vmem:[#allocation0] sm:$0x1] %vm39, %v38
    %s41 = scalar_lea.vmem %s0, 9
    %v42 = vld [vmem:[%s41] sm:$0x1]
    %43 = vrot.lane.b32.xlu0 %v42, 72
    %v44 = vpop.permute.xlu0 %43
    %vm45 = vcmask 654912
    %46 = vst.msk [vmem:[#allocation0] sm:$0x1] %vm45, %v44
    %s47 = scalar_lea.vmem %s0, 8
    %v48 = vld [vmem:[%s47] sm:$0x1]
    %49 = vrot.lane.b32.xlu0 %v48, 64
    %v50 = vpop.permute.xlu0 %49
    %vm51 = vcmask 589312
    %52 = vst.msk [vmem:[#allocation0] sm:$0x1] %vm51, %v50
    %s53 = scalar_lea.vmem %s0, 7
    %v54 = vld [vmem:[%s53] sm:$0x1]
    %55 = vrot.lane.b32.xlu0 %v54, 56
    %v56 = vpop.permute.xlu0 %55
    %vm57 = vcmask 523712
    %58 = vst.msk [vmem:[#allocation0] sm:$0x1] %vm57, %v56
    %s59 = scalar_lea.vmem %s0, 6
    %v60 = vld [vmem:[%s59] sm:$0x1]
    %61 = vrot.lane.b32.xlu0 %v60, 48
    %v62 = vpop.permute.xlu0 %61
    %vm63 = vcmask 458112
    %64 = vst.msk [vmem:[#allocation0] sm:$0x1] %vm63, %v62
    %s65 = scalar_lea.vmem %s0, 5
    %v66 = vld [vmem:[%s65] sm:$0x1]
    %67 = vrot.lane.b32.xlu0 %v66, 40
    %v68 = vpop.permute.xlu0 %67
    %vm69 = vcmask 392512
    %70 = vst.msk [vmem:[#allocation0] sm:$0x1] %vm69, %v68
    %s71 = scalar_lea.vmem %s0, 4
    %v72 = vld [vmem:[%s71] sm:$0x1]
    %73 = vrot.lane.b32.xlu0 %v72, 32
    %v74 = vpop.permute.xlu0 %73
    %vm75 = vcmask 326912
    %76 = vst.msk [vmem:[#allocation0] sm:$0x1] %vm75, %v74
    %s77 = scalar_lea.vmem %s0, 3
    %v78 = vld [vmem:[%s77] sm:$0x1]
    %79 = vrot.lane.b32.xlu0 %v78, 24
    %v80 = vpop.permute.xlu0 %79
    %vm81 = vcmask 261312
    %82 = vst.msk [vmem:[#allocation0] sm:$0x1] %vm81, %v80
    %s83 = scalar_lea.vmem %s0, 2
    %v84 = vld [vmem:[%s83] sm:$0x1]
    %85 = vrot.lane.b32.xlu0 %v84, 16
    %v86 = vpop.permute.xlu0 %85
    %vm87 = vcmask 195712
    %88 = vst.msk [vmem:[#allocation0] sm:$0x1] %vm87, %v86
    %s89 = scalar_lea.vmem %s0, 1
    %v90 = vld [vmem:[%s89] sm:$0x1]
    %91 = vrot.lane.b32.xlu0 %v90, 8
    %v92 = vpop.permute.xlu0 %91
    %vm93 = vcmask 130112
    %94 = vst.msk [vmem:[#allocation0] sm:$0x1] %vm93, %v92
    %s96 = sshllo.u32 0, 1
    %v98 = vld [vmem:[#allocation0] sm:%s96]
    %s99 = sshllo.u32 0, 1
    %100 = vst [vmem:[%s1] sm:%s99] %v98

// kernel: tile.18
$region0: #{tile.18}
  #allocation0 [shape = 's32[1]{0}', space=sflag, size = 0x4, scoped, tag = 'scoped memory for tile.18']
  %s0 = inlined_call_operand.vmem [shape: f32[4], index: 0, kind: input, shape index: {}]
  %s1 = inlined_call_operand.vmem [shape: f32[16,4], index: 1, kind: output, shape index: {}]
  // Predicated region
  $region2: #{tile.18} parent=0 // pred_check
    _
  $region3: #{tile.18} parent=0 // pred_check_branch
    %3 = sbr.rel (0) target = $region5
  $region4: #{tile.18} parent=0 // pred_region
    _
  $region5: #{tile.18} parent=0 // pred_fallthru
    _
  %v4 = vld [vmem:[%s0] ss:$0 sm:$0xff]
  %5 = vst [vmem:[%s1] sm:$0xff] %v4
  %s6 = scalar_lea.vmem %s1, 8
  %7 = vst [vmem:[%s6] sm:$0xff] %v4

// kernel: tile.19
$region0: #{tile.19}
  %s0 = inlined_call_operand.vmem [shape: f32[16,4], index: 0, kind: input, shape index: {}]
  %s1 = inlined_call_operand.vmem [shape: f32[1,64], index: 1, kind: output, shape index: {}]
  $region1: #{tile.19} parent=0
    #allocation0 [shape = 'u8[4096]{0}', space=vmem, size = 0x1000, scoped, tag = 'scoped mem for output reshape']
    %v2 = vld [vmem:[%s0] sm:$0x1]
    %vm3 = vcmask 31744
    %4 = vst.msk [vmem:[#allocation0] sm:$0x1] %vm3, %v2
    %s5 = scalar_lea.vmem %s0, 15
    %v6 = vld [vmem:[%s5] sm:$0x1]
    %7 = vrot.lane.b32.xlu0 %v6, 60
    %v8 = vpop.permute.xlu0 %7
    %vm9 = vcmask 523744
    %10 = vst.msk [vmem:[#allocation0] sm:$0x1] %vm9, %v8
    %s11 = scalar_lea.vmem %s0, 14
    %v12 = vld [vmem:[%s11] sm:$0x1]
    %13 = vrot.lane.b32.xlu0 %v12, 56
    %v14 = vpop.permute.xlu0 %13
    %vm15 = vcmask 490944
    %16 = vst.msk [vmem:[#allocation0] sm:$0x1] %vm15, %v14
    %s17 = scalar_lea.vmem %s0, 13
    %v18 = vld [vmem:[%s17] sm:$0x1]
    %19 = vrot.lane.b32.xlu0 %v18, 52
    %v20 = vpop.permute.xlu0 %19
    %vm21 = vcmask 458144
    %22 = vst.msk [vmem:[#allocation0] sm:$0x1] %vm21, %v20
    %s23 = scalar_lea.vmem %s0, 12
    %v24 = vld [vmem:[%s23] sm:$0x1]
    %25 = vrot.lane.b32.xlu0 %v24, 48
    %v26 = vpop.permute.xlu0 %25
    %vm27 = vcmask 425344
    %28 = vst.msk [vmem:[#allocation0] sm:$0x1] %vm27, %v26
    %s29 = scalar_lea.vmem %s0, 11
    %v30 = vld [vmem:[%s29] sm:$0x1]
    %31 = vrot.lane.b32.xlu0 %v30, 44
    %v32 = vpop.permute.xlu0 %31
    %vm33 = vcmask 392544
    %34 = vst.msk [vmem:[#allocation0] sm:$0x1] %vm33, %v32
    %s35 = scalar_lea.vmem %s0, 10
    %v36 = vld [vmem:[%s35] sm:$0x1]
    %37 = vrot.lane.b32.xlu0 %v36, 40
    %v38 = vpop.permute.xlu0 %37
    %vm39 = vcmask 359744
    %40 = vst.msk [vmem:[#allocation0] sm:$0x1] %vm39, %v38
    %s41 = scalar_lea.vmem %s0, 9
    %v42 = vld [vmem:[%s41] sm:$0x1]
    %43 = vrot.lane.b32.xlu0 %v42, 36
    %v44 = vpop.permute.xlu0 %43
    %vm45 = vcmask 326944
    %46 = vst.msk [vmem:[#allocation0] sm:$0x1] %vm45, %v44
    %s47 = scalar_lea.vmem %s0, 8
    %v48 = vld [vmem:[%s47] sm:$0x1]
    %49 = vrot.lane.b32.xlu0 %v48, 32
    %v50 = vpop.permute.xlu0 %49
    %vm51 = vcmask 294144
    %52 = vst.msk [vmem:[#allocation0] sm:$0x1] %vm51, %v50
    %s53 = scalar_lea.vmem %s0, 7
    %v54 = vld [vmem:[%s53] sm:$0x1]
    %55 = vrot.lane.b32.xlu0 %v54, 28
    %v56 = vpop.permute.xlu0 %55
    %vm57 = vcmask 261344
    %58 = vst.msk [vmem:[#allocation0] sm:$0x1] %vm57, %v56
    %s59 = scalar_lea.vmem %s0, 6
    %v60 = vld [vmem:[%s59] sm:$0x1]
    %61 = vrot.lane.b32.xlu0 %v60, 24
    %v62 = vpop.permute.xlu0 %61
    %vm63 = vcmask 228544
    %64 = vst.msk [vmem:[#allocation0] sm:$0x1] %vm63, %v62
    %s65 = scalar_lea.vmem %s0, 5
    %v66 = vld [vmem:[%s65] sm:$0x1]
    %67 = vrot.lane.b32.xlu0 %v66, 20
    %v68 = vpop.permute.xlu0 %67
    %vm69 = vcmask 195744
    %70 = vst.msk [vmem:[#allocation0] sm:$0x1] %vm69, %v68
    %s71 = scalar_lea.vmem %s0, 4
    %v72 = vld [vmem:[%s71] sm:$0x1]
    %73 = vrot.lane.b32.xlu0 %v72, 16
    %v74 = vpop.permute.xlu0 %73
    %vm75 = vcmask 162944
    %76 = vst.msk [vmem:[#allocation0] sm:$0x1] %vm75, %v74
    %s77 = scalar_lea.vmem %s0, 3
    %v78 = vld [vmem:[%s77] sm:$0x1]
    %79 = vrot.lane.b32.xlu0 %v78, 12
    %v80 = vpop.permute.xlu0 %79
    %vm81 = vcmask 130144
    %82 = vst.msk [vmem:[#allocation0] sm:$0x1] %vm81, %v80
    %s83 = scalar_lea.vmem %s0, 2
    %v84 = vld [vmem:[%s83] sm:$0x1]
    %85 = vrot.lane.b32.xlu0 %v84, 8
    %v86 = vpop.permute.xlu0 %85
    %vm87 = vcmask 97344
    %88 = vst.msk [vmem:[#allocation0] sm:$0x1] %vm87, %v86
    %s89 = scalar_lea.vmem %s0, 1
    %v90 = vld [vmem:[%s89] sm:$0x1]
    %91 = vrot.lane.b32.xlu0 %v90, 4
    %v92 = vpop.permute.xlu0 %91
    %vm93 = vcmask 64544
    %94 = vst.msk [vmem:[#allocation0] sm:$0x1] %vm93, %v92
    %s96 = sshllo.u32 0, 1
    %v98 = vld [vmem:[#allocation0] sm:%s96]
    %s99 = sshllo.u32 0, 1
    %100 = vst [vmem:[%s1] sm:%s99] %v98

// kernel: training_step.3
$region0: #{training_step.3}
  #allocation0 [shape = 'u32[]', space=smem, size = 0x4, offset = 0x4, fixed_abs, tag = 'smem constant byte address 0x4 - core index']
  #allocation1 [shape = 'u32[144,128]{1,0:T(1,128)}', space=vmem, size = 0x12000, scoped, tag = 'internal scratch']
  %s0 = inlined_call_operand.vmem [shape: bf16[2,18,72], index: 0, kind: input, shape index: {}]
  %s1 = inlined_call_operand.vmem [shape: bf16[3,72,128], index: 1, kind: input, shape index: {}]
  %s2 = inlined_call_operand.vmem [shape: f32[1,128], index: 2, kind: input, shape index: {}]
  %s3 = inlined_call_operand.vmem [shape: bf16[2,16,128], index: 3, kind: output, shape index: {}]
  %s4 = sld [smem:[#allocation0]]
  $region45: #{training_step.3} parent=0
    _
  %s6 = ssub.s32 1, %s4
  %s7 = scalar_select 0, %s6, %s4
  loop: start=0, step=1, limit=4
  $region2: #{training_step.3} parent=0 // loop_pre_header
    _
  $region3: #{training_step.3} parent=0 // loop_header
    %s9 = sphi 0, %s13
    %p10 = scmp.ge.s32.totalorder %s9, 4
    %s19 = sphi 0, %s21
    %s22 = sphi 0, %s19
    %s23 = sphi 0, %s22
    %s39 = sphi 0, %s23
    %s43 = sphi 0, %s43
    %s45 = sphi 0, %s43
    %s46 = sphi 0, %s45
    %s60 = sphi 0, %s46
    %s64 = sphi 0, %s64
    %s66 = sphi 0, %s64
    %s67 = sphi 0, %s66
    %s81 = sphi 0, %s67
    %s87 = sphi 0, %s89
    %s90 = sphi 0, %s87
    %s91 = sphi 0, %s90
    %s107 = sphi 0, %s91
  $region4: #{training_step.3} parent=0 // loop_header_branch
    %12 = sbr.rel (%p10) target = $region8
  $region5: #{training_step.3} parent=0 // loop_body
    %s14 = ssub.s32 %s9, 1
    %s15 = ssub.s32 %s9, 2
    %s16 = sadd.s32 %s9, 1
    %s17 = ssub.s32 %s9, %s16
    %p18 = scmp.eq.s32.totalorder %s17, 0
    %s20 = sadd.s32 %s19, 1
    %s21 = scalar_select %p18, %s19, %s20
    %p24 = pneg %p18
    %p25 = scmp.eq.s32.totalorder %s9, 1
    %p26 = por %p24, %p25
    %p27 = scmp.ne.s32.totalorder %s19, %s22
    %p28 = scmp.eq.s32.totalorder %s9, 0
    %p29 = por %p27, %p28
    %p30 = scmp.ne.s32.totalorder %s19, %s22
    %p31 = scmp.eq.s32.totalorder %s14, 1
    %p32 = por %p30, %p31
    %p33 = scmp.ne.s32.totalorder %s22, %s23
    %p34 = scmp.eq.s32.totalorder %s14, 0
    %p35 = por %p33, %p34
    %p36 = scmp.ne.s32.totalorder %s22, %s23
    %p37 = scmp.eq.s32.totalorder %s15, 1
    %p38 = por %p36, %p37
    %p40 = scmp.ne.s32.totalorder %s23, %s39
    %p41 = scmp.eq.s32.totalorder %s15, 0
    %p42 = por %p40, %p41
    %s44 = sadd.s32 %s43, 1
    %p47 = scmp.eq.s32.totalorder %s9, 1
    %p48 = scmp.ne.s32.totalorder %s43, %s45
    %p49 = scmp.eq.s32.totalorder %s9, 0
    %p50 = por %p48, %p49
    %p51 = scmp.ne.s32.totalorder %s43, %s45
    %p52 = scmp.eq.s32.totalorder %s14, 1
    %p53 = por %p51, %p52
    %p54 = scmp.ne.s32.totalorder %s45, %s46
    %p55 = scmp.eq.s32.totalorder %s14, 0
    %p56 = por %p54, %p55
    %p57 = scmp.ne.s32.totalorder %s45, %s46
    %p58 = scmp.eq.s32.totalorder %s15, 1
    %p59 = por %p57, %p58
    %p61 = scmp.ne.s32.totalorder %s46, %s60
    %p62 = scmp.eq.s32.totalorder %s15, 0
    %p63 = por %p61, %p62
    %s65 = sadd.s32 %s64, 1
    %p68 = scmp.eq.s32.totalorder %s9, 1
    %p69 = scmp.ne.s32.totalorder %s64, %s66
    %p70 = scmp.eq.s32.totalorder %s9, 0
    %p71 = por %p69, %p70
    %p72 = scmp.ne.s32.totalorder %s64, %s66
    %p73 = scmp.eq.s32.totalorder %s14, 1
    %p74 = por %p72, %p73
    %p75 = scmp.ne.s32.totalorder %s66, %s67
    %p76 = scmp.eq.s32.totalorder %s14, 0
    %p77 = por %p75, %p76
    %p78 = scmp.ne.s32.totalorder %s66, %s67
    %p79 = scmp.eq.s32.totalorder %s15, 1
    %p80 = por %p78, %p79
    %p82 = scmp.ne.s32.totalorder %s67, %s81
    %p83 = scmp.eq.s32.totalorder %s15, 0
    %p84 = por %p82, %p83
    %s85 = ssub.s32 %s9, %s16
    %p86 = scmp.eq.s32.totalorder %s85, 0
    %s88 = sadd.s32 %s87, 1
    %s89 = scalar_select %p86, %s87, %s88
    %p92 = pneg %p86
    %p93 = scmp.eq.s32.totalorder %s9, 1
    %p94 = por %p92, %p93
    %p95 = scmp.ne.s32.totalorder %s87, %s90
    %p96 = scmp.eq.s32.totalorder %s9, 0
    %p97 = por %p95, %p96
    %p98 = scmp.ne.s32.totalorder %s87, %s90
    %p99 = scmp.eq.s32.totalorder %s14, 1
    %p100 = por %p98, %p99
    %p101 = scmp.ne.s32.totalorder %s90, %s91
    %p102 = scmp.eq.s32.totalorder %s14, 0
    %p103 = por %p101, %p102
    %p104 = scmp.ne.s32.totalorder %s90, %s91
    %p105 = scmp.eq.s32.totalorder %s15, 1
    %p106 = por %p104, %p105
    %p108 = scmp.ne.s32.totalorder %s91, %s107
    %p109 = scmp.eq.s32.totalorder %s15, 0
    %p110 = por %p108, %p109
    %p111 = scmp.le.s32.totalorder 1, %s9
    %p112 = scmp.lt.s32.totalorder %s9, 3
    %p113 = pnand %p111, %p112
    %p114 = pneg %p113
    // Predicated region
    $region9: #{training_step.3} parent=5 // pred_check
      _
    $region10: #{training_step.3} parent=5 // pred_check_branch
      %116 = sbr.rel (%p113) target = $region12
    $region11: #{training_step.3} parent=5 // pred_region
      %s117 = ssub.s32 %s9, 1
      // Predicated region
      $region13: #{training_step.3} parent=11 // pred_check
        %p118 = pneg %p56
      $region14: #{training_step.3} parent=11 // pred_check_branch
        %120 = sbr.rel (%p118) target = $region16
      $region15: #{training_step.3} parent=11 // pred_region
        _
      $region16: #{training_step.3} parent=11 // pred_fallthru
        _
      // Predicated region
      $region17: #{training_step.3} parent=11 // pred_check
        %p121 = pneg %p77
      $region18: #{training_step.3} parent=11 // pred_check_branch
        %123 = sbr.rel (%p121) target = $region20
      $region19: #{training_step.3} parent=11 // pred_region
        _
      $region20: #{training_step.3} parent=11 // pred_fallthru
        _
    $region12: #{training_step.3} parent=5 // pred_fallthru
      _
    %p124 = scmp.lt.s32.totalorder %s9, 2
    // Predicated region
    $region21: #{training_step.3} parent=5 // pred_check
      %p125 = pneg %p124
    $region22: #{training_step.3} parent=5 // pred_check_branch
      %127 = sbr.rel (%p125) target = $region24
    $region23: #{training_step.3} parent=5 // pred_region
      // Predicated region
      $region25: #{training_step.3} parent=23 // pred_check
        %p128 = pneg %p29
      $region26: #{training_step.3} parent=23 // pred_check_branch
        %130 = sbr.rel (%p128) target = $region28
      $region27: #{training_step.3} parent=23 // pred_region
        %p131 = scmp.lt.s32.totalorder %s9, 1
        %s132 = scalar_select %p131, %s9, 1
        %s133 = smul.addr %s132, 3
        %s134 = smul.addr %s133, 4
        %s135 = scalar_lea.vmem %s0, %s134
      $region28: #{training_step.3} parent=23 // pred_fallthru
        _
    $region24: #{training_step.3} parent=5 // pred_fallthru
      _
    %p136 = scmp.le.s32.totalorder 1, %s9
    %p137 = scmp.lt.s32.totalorder %s9, 3
    %p138 = pnand %p136, %p137
    %p139 = pneg %p138
    // Predicated region
    $region29: #{training_step.3} parent=5 // pred_check
      _
    $region30: #{training_step.3} parent=5 // pred_check_branch
      %141 = sbr.rel (%p138) target = $region32
    $region31: #{training_step.3} parent=5 // pred_region
      %s142 = ssub.s32 %s9, 1
      %p143 = scmp.lt.s32.totalorder %s14, 1
      %s144 = scalar_select %p143, %s14, 1
      %s145 = smul.addr %s144, 3
      %s146 = smul.addr %s145, 4
      %s147 = scalar_lea.vmem %s0, %s146
      %p148 = pneg %p35
      %p149 = pneg %p32
      %p150 = pneg %p56
      %p151 = pneg %p53
      %p152 = pneg %p77
      %p153 = pneg %p74
      %p154 = pneg %p103
      %p155 = pneg %p100
      %p156 = scmp.lt.s32.totalorder %s14, 1
      %s157 = scalar_select %p156, %s14, 1
      %s158 = smul.addr %s157, 2
      %s159 = smul.addr %s158, 4
      %s160 = scalar_lea.vmem %s3, %s159
      %p161 = scmp.lt.s32.totalorder %s14, 1
      %s162 = scalar_select %p161, %s14, 1
      %s163 = smul.addr %s162, 3
      %s164 = smul.addr %s163, 4
      %s165 = scalar_lea.vmem %s0, %s164
      %p166 = scmp.lt.s32.totalorder %s14, 1
      %s167 = scalar_select %p166, %s14, 1
      %s168 = smul.addr %s167, 2
      %s169 = smul.addr %s168, 4
      %s170 = scalar_lea.vmem %s3, %s169
      %v172 = vld [vmem:[%s165] sm:$0xf]
      %v173 = vld [vmem:[%s165 + $0x4] sm:$0xf]
      %v174 = vld [vmem:[%s1] sm:$0xf]
      %v175 = vld [vmem:[%s1 + $0x4] sm:$0xf]
      %v176 = vld [vmem:[%s1 + $0x8] sm:$0xf]
      %v177 = vld [vmem:[%s1 + $0xc] sm:$0xf]
      %v178 = vld [vmem:[%s1 + $0x10] sm:$0xf]
      %v179 = vld [vmem:[%s1 + $0x14] sm:$0xf]
      %v180 = vld [vmem:[%s1 + $0x18] sm:$0xf]
      %v181 = vld [vmem:[%s1 + $0x1c] sm:$0xf]
      %v182 = vld [vmem:[%s1 + $0x20] sm:$0xf]
      %v183 = vld [vmem:[%s165 + $0x8] sm:$0x1]
      %s184 = scalar_lea.vmem %s1, 36
      %v185 = vld [vmem:[%s184] sm:$0xf]
      %v186 = vld [vmem:[%s184 + $0x4] sm:$0xf]
      %v187 = vld [vmem:[%s184 + $0x8] sm:$0xf]
      %v188 = vld [vmem:[%s184 + $0xc] sm:$0xf]
      %v189 = vld [vmem:[%s184 + $0x10] sm:$0xf]
      %v190 = vld [vmem:[%s184 + $0x14] sm:$0xf]
      %v191 = vld [vmem:[%s184 + $0x18] sm:$0xf]
      %v192 = vld [vmem:[%s184 + $0x1c] sm:$0xf]
      %v193 = vld [vmem:[%s184 + $0x20] sm:$0xf]
      %v197 = vunpack.c.l.b16 %v172
      %v198 = vunpack.c.l.b16 %v173
      %v199 = vunpack.c.l.b16 %v183
      %v200 = vpack.c.b16 %v198, %v197
      %v201 = vpack.c.b16 %v199, %v199
      %vm202 = vsmask.f32 7424
      %v204 = vshrl.u32 %v200, 16
      %v206 = vshll.u32 %v200, 16
      %v208 = vrot.slane %v206, 1
      %v209 = vor.u32 %v204, %v208
      %v211 = vshll.u32 %v201, 16
      %v213 = vrot.slane %v211, 1
      %v214 = vsel %vm202, %v209, %v213
      %v224 = vunpack.c.l.b16 %v185
      %v225 = vunpack.c.l.b16 %v186
      %v226 = vunpack.c.l.b16 %v187
      %v227 = vunpack.c.l.b16 %v188
      %v228 = vunpack.c.l.b16 %v189
      %v229 = vunpack.c.l.b16 %v190
      %v230 = vunpack.c.l.b16 %v191
      %v231 = vunpack.c.l.b16 %v192
      %v232 = vunpack.c.l.b16 %v193
      %v233 = vpack.c.b16 %v225, %v224
      %v234 = vpack.c.b16 %v227, %v226
      %v235 = vpack.c.b16 %v229, %v228
      %v236 = vpack.c.b16 %v231, %v230
      %v237 = vpack.c.b16 %v232, %v232
      %vm242 = vcmask 588800
      %v244 = vsel %vm242, %v214, 0
      %vm246 = vcmask 1043456
      %v248 = vsel %vm246, %v237, 0
      %250 = vmatprep.subr.bf16.mxu0 0
      %251 = vmatpush1.bf16.msra.mxu0 %v233
      %252 = vmatprep.subr.bf16.mxu0 0
      %253 = vmatpush1.bf16.msra.mxu0 %v234
      %254 = vmatprep.subr.bf16.mxu0 0
      %255 = vmatpush1.bf16.msra.mxu0 %v235
      %256 = vmatprep.subr.bf16.mxu0 0
      %257 = vmatpush1.bf16.msra.mxu0 %v236
      %258 = vmatprep.subr.bf16.mxu0 0
      %259 = vmatpush1.bf16.msra.mxu0 %v248
      %260 = vmatprep.subr.bf16.mxu0 0
      %261 = vmatpush1.bf16.msra.mxu0 0
      %262 = vmatprep.subr.bf16.mxu0 0
      %263 = vmatpush1.bf16.msra.mxu0 0
      %264 = vmatprep.subr.bf16.mxu0 0
      %265 = vmatpush1.bf16.msra.mxu0 0
      %266 = vmatprep.subr.bf16.mxu0 0
      %267 = vmatpush1.bf16.msra.mxu0 0
      %268 = vmatprep.subr.bf16.mxu0 0
      %269 = vmatpush1.bf16.msra.mxu0 0
      %270 = vmatprep.subr.bf16.mxu0 0
      %271 = vmatpush1.bf16.msra.mxu0 0
      %272 = vmatprep.subr.bf16.mxu0 0
      %273 = vmatpush1.bf16.msra.mxu0 0
      %274 = vmatprep.subr.bf16.mxu0 0
      %275 = vmatpush1.bf16.msra.mxu0 0
      %276 = vmatprep.subr.bf16.mxu0 0
      %277 = vmatpush1.bf16.msra.mxu0 0
      %278 = vmatprep.subr.bf16.mxu0 0
      %279 = vmatpush1.bf16.msra.mxu0 0
      %280 = vmatprep.subr.bf16.mxu0 0
      %281 = vmatpush1.bf16.msra.mxu0 0
      %282 = vmatprep.mubr.bf16.mxu0 0
      %283 = vmatmul.mubr.bf16.gmra.mrb[0].mxu0 %v244
      %v284 = vpop.f32.mrb[0].mxu0
      %v285 = vadd.f32 0.0, %v284
      %v286 = vpop.f32.mrb[0].mxu0
      %v287 = vpop.f32.mrb[0].mxu0
      %v288 = vadd.f32 0.0, %v287
      %v289 = vpop.f32.mrb[0].mxu0
      %290 = vdwg.mxu0
      %v300 = vunpack.c.l.b16 %v174
      %v301 = vunpack.c.l.b16 %v175
      %v302 = vunpack.c.l.b16 %v176
      %v303 = vunpack.c.l.b16 %v177
      %v304 = vunpack.c.l.b16 %v178
      %v305 = vunpack.c.l.b16 %v179
      %v306 = vunpack.c.l.b16 %v180
      %v307 = vunpack.c.l.b16 %v181
      %v308 = vunpack.c.l.b16 %v182
      %v309 = vpack.c.b16 %v301, %v300
      %v310 = vpack.c.b16 %v303, %v302
      %v311 = vpack.c.b16 %v305, %v304
      %v312 = vpack.c.b16 %v307, %v306
      %v313 = vpack.c.b16 %v308, %v308
      %v318 = vsel %vm242, %v200, 0
      %v321 = vsel %vm246, %v313, 0
      %323 = vmatprep.subr.bf16.mxu0 0
      %324 = vmatpush1.bf16.msra.mxu0 %v309
      %325 = vmatprep.subr.bf16.mxu0 0
      %326 = vmatpush1.bf16.msra.mxu0 %v310
      %327 = vmatprep.subr.bf16.mxu0 0
      %328 = vmatpush1.bf16.msra.mxu0 %v311
      %329 = vmatprep.subr.bf16.mxu0 0
      %330 = vmatpush1.bf16.msra.mxu0 %v312
      %331 = vmatprep.subr.bf16.mxu0 0
      %332 = vmatpush1.bf16.msra.mxu0 %v321
      %333 = vmatprep.subr.bf16.mxu0 0
      %334 = vmatpush1.bf16.msra.mxu0 0
      %335 = vmatprep.subr.bf16.mxu0 0
      %336 = vmatpush1.bf16.msra.mxu0 0
      %337 = vmatprep.subr.bf16.mxu0 0
      %338 = vmatpush1.bf16.msra.mxu0 0
      %339 = vmatprep.subr.bf16.mxu0 0
      %340 = vmatpush1.bf16.msra.mxu0 0
      %341 = vmatprep.subr.bf16.mxu0 0
      %342 = vmatpush1.bf16.msra.mxu0 0
      %343 = vmatprep.subr.bf16.mxu0 0
      %344 = vmatpush1.bf16.msra.mxu0 0
      %345 = vmatprep.subr.bf16.mxu0 0
      %346 = vmatpush1.bf16.msra.mxu0 0
      %347 = vmatprep.subr.bf16.mxu0 0
      %348 = vmatpush1.bf16.msra.mxu0 0
      %349 = vmatprep.subr.bf16.mxu0 0
      %350 = vmatpush1.bf16.msra.mxu0 0
      %351 = vmatprep.subr.bf16.mxu0 0
      %352 = vmatpush1.bf16.msra.mxu0 0
      %353 = vmatprep.subr.bf16.mxu0 0
      %354 = vmatpush1.bf16.msra.mxu0 0
      %355 = vmatprep.mubr.bf16.mxu0 0
      %356 = vmatmul.mubr.bf16.gmra.mrb[0].mxu0 %v318
      %v357 = vpop.f32.mrb[0].mxu0
      %v358 = vadd.f32 %v285, %v357
      %v359 = vpop.f32.mrb[0].mxu0
      %v360 = vpop.f32.mrb[0].mxu0
      %v361 = vadd.f32 %v288, %v360
      %v362 = vpop.f32.mrb[0].mxu0
      %363 = vdwg.mxu0
      %v364 = vld [vmem:[%s165] sm:$0xe]
      %s365 = scalar_lea.vmem %s1, 72
      %v366 = vld [vmem:[%s365] sm:$0xf]
      %v367 = vld [vmem:[%s365 + $0x4] sm:$0xf]
      %v368 = vld [vmem:[%s365 + $0x8] sm:$0xf]
      %v369 = vld [vmem:[%s365 + $0xc] sm:$0xf]
      %v370 = vld [vmem:[%s365 + $0x10] sm:$0xf]
      %v371 = vld [vmem:[%s365 + $0x14] sm:$0xf]
      %v372 = vld [vmem:[%s365 + $0x18] sm:$0xf]
      %v373 = vld [vmem:[%s365 + $0x1c] sm:$0xf]
      %v374 = vld [vmem:[%s365 + $0x20] sm:$0xf]
      %v376 = vunpack.c.l.b16 %v364
      %v377 = vpack.c.b16 %v198, %v376
      %vm378 = vcmask 1046528
      %v379 = vrot.slane %v377, 1
      %v380 = vrot.slane %v201, 1
      %v381 = vsel %vm378, %v379, %v380
      %v391 = vunpack.c.l.b16 %v366
      %v392 = vunpack.c.l.b16 %v367
      %v393 = vunpack.c.l.b16 %v368
      %v394 = vunpack.c.l.b16 %v369
      %v395 = vunpack.c.l.b16 %v370
      %v396 = vunpack.c.l.b16 %v371
      %v397 = vunpack.c.l.b16 %v372
      %v398 = vunpack.c.l.b16 %v373
      %v399 = vunpack.c.l.b16 %v374
      %v400 = vpack.c.b16 %v392, %v391
      %v401 = vpack.c.b16 %v394, %v393
      %v402 = vpack.c.b16 %v396, %v395
      %v403 = vpack.c.b16 %v398, %v397
      %v404 = vpack.c.b16 %v399, %v399
      %v410 = vsel %vm242, %v381, 0
      %v413 = vsel %vm246, %v404, 0
      %415 = vmatprep.subr.bf16.mxu0 0
      %416 = vmatpush1.bf16.msra.mxu0 %v400
      %417 = vmatprep.subr.bf16.mxu0 0
      %418 = vmatpush1.bf16.msra.mxu0 %v401
      %419 = vmatprep.subr.bf16.mxu0 0
      %420 = vmatpush1.bf16.msra.mxu0 %v402
      %421 = vmatprep.subr.bf16.mxu0 0
      %422 = vmatpush1.bf16.msra.mxu0 %v403
      %423 = vmatprep.subr.bf16.mxu0 0
      %424 = vmatpush1.bf16.msra.mxu0 %v413
      %425 = vmatprep.subr.bf16.mxu0 0
      %426 = vmatpush1.bf16.msra.mxu0 0
      %427 = vmatprep.subr.bf16.mxu0 0
      %428 = vmatpush1.bf16.msra.mxu0 0
      %429 = vmatprep.subr.bf16.mxu0 0
      %430 = vmatpush1.bf16.msra.mxu0 0
      %431 = vmatprep.subr.bf16.mxu0 0
      %432 = vmatpush1.bf16.msra.mxu0 0
      %433 = vmatprep.subr.bf16.mxu0 0
      %434 = vmatpush1.bf16.msra.mxu0 0
      %435 = vmatprep.subr.bf16.mxu0 0
      %436 = vmatpush1.bf16.msra.mxu0 0
      %437 = vmatprep.subr.bf16.mxu0 0
      %438 = vmatpush1.bf16.msra.mxu0 0
      %439 = vmatprep.subr.bf16.mxu0 0
      %440 = vmatpush1.bf16.msra.mxu0 0
      %441 = vmatprep.subr.bf16.mxu0 0
      %442 = vmatpush1.bf16.msra.mxu0 0
      %443 = vmatprep.subr.bf16.mxu0 0
      %444 = vmatpush1.bf16.msra.mxu0 0
      %445 = vmatprep.subr.bf16.mxu0 0
      %446 = vmatpush1.bf16.msra.mxu0 0
      %447 = vmatprep.mubr.bf16.mxu0 0
      %448 = vmatmul.mubr.bf16.gmra.mrb[0].mxu0 %v410
      %v449 = vpop.f32.mrb[0].mxu0
      %v450 = vadd.f32 0.0, %v449
      %v451 = vpop.f32.mrb[0].mxu0
      %v452 = vpop.f32.mrb[0].mxu0
      %v453 = vadd.f32 0.0, %v452
      %v454 = vpop.f32.mrb[0].mxu0
      %455 = vdwg.mxu0
      %v456 = vadd.f32 %v358, %v450
      %v457 = vadd.f32 %v361, %v453
      %v458 = vld [vmem:[%s2] sm:$0x1]
      %v460 = vlaneseq
      %v461 = vshrl.u32 %v460, 7
      %v462 = vsub.s32 0, %v461
      %v463 = vrot.slane %v458, %v462
      %v465 = vadd.f32 %v456, %v463
      %v466 = vadd.f32 %v457, %v463
      %v467 = vpack.c.bf16 %v466, %v465
      %v469 = vunpack.c.l.b16 %v467
      %v470 = vunpack.c.h.b16 %v467
      %v471 = vpack.c.b16 %v469, %v469
      %v472 = vpack.c.b16 %v470, %v470
      %475 = vst [vmem:[%s170] sm:$0xf] %v471
      %476 = vst [vmem:[%s170 + $0x4] sm:$0xf] %v472
      %p477 = scmp.lt.s32.totalorder %s14, 1
      %s478 = scalar_select %p477, %s14, 1
      %s479 = smul.addr %s478, 2
      %s480 = smul.addr %s479, 4
      %s481 = scalar_lea.vmem %s3, %s480
      // Predicated region
      $region33: #{training_step.3} parent=31 // pred_check
        %p482 = pneg %p100
      $region34: #{training_step.3} parent=31 // pred_check_branch
        %484 = sbr.rel (%p482) target = $region36
      $region35: #{training_step.3} parent=31 // pred_region
        _
      $region36: #{training_step.3} parent=31 // pred_fallthru
        _
    $region32: #{training_step.3} parent=5 // pred_fallthru
      _
    %p485 = scmp.le.s32.totalorder 2, %s9
    // Predicated region
    $region37: #{training_step.3} parent=5 // pred_check
      %p486 = pneg %p485
    $region38: #{training_step.3} parent=5 // pred_check_branch
      %488 = sbr.rel (%p486) target = $region40
    $region39: #{training_step.3} parent=5 // pred_region
      %s489 = ssub.s32 %s9, 2
      // Predicated region
      $region41: #{training_step.3} parent=39 // pred_check
        %p490 = pneg %p106
      $region42: #{training_step.3} parent=39 // pred_check_branch
        %492 = sbr.rel (%p490) target = $region44
      $region43: #{training_step.3} parent=39 // pred_region
        %p493 = scmp.lt.s32.totalorder %s15, 1
        %s494 = scalar_select %p493, %s15, 1
        %s495 = smul.addr %s494, 2
        %s496 = smul.addr %s495, 4
        %s497 = scalar_lea.vmem %s3, %s496
      $region44: #{training_step.3} parent=39 // pred_fallthru
        _
    $region40: #{training_step.3} parent=5 // pred_fallthru
      _
  $region6: #{training_step.3} parent=0 // loop_footer
    %s13 = sadd.s32 1, %s9
  $region7: #{training_step.3} parent=0 // loop_footer_branch
    %8 = sbr.rel target = $region3
  $region8: #{training_step.3} parent=0 // loop_exit
    _

// kernel: training_step.4
$region0: #{training_step.4}
  #allocation0 [shape = 'u32[]', space=smem, size = 0x4, offset = 0x4, fixed_abs, tag = 'smem constant byte address 0x4 - core index']
  #allocation1 [shape = 'u32[144,128]{1,0:T(1,128)}', space=vmem, size = 0x12000, scoped, tag = 'internal scratch']
  %s0 = inlined_call_operand.vmem [shape: bf16[512,8], index: 0, kind: input, shape index: {}]
  %s1 = inlined_call_operand.vmem [shape: f32[8,12], index: 1, kind: input, shape index: {}]
  %s2 = inlined_call_operand.vmem [shape: f32[1,12], index: 2, kind: input, shape index: {}]
  %s3 = inlined_call_operand.vmem [shape: f32[4,4], index: 3, kind: input, shape index: {}]
  %s4 = inlined_call_operand.vmem [shape: f32[1,4], index: 4, kind: input, shape index: {}]
  %s5 = inlined_call_operand.vmem [shape: f32[512,4], index: 5, kind: input, shape index: {}]
  %s6 = inlined_call_operand.vmem [shape: f32[512,4], index: 6, kind: input, shape index: {}]
  %s7 = inlined_call_operand.hbm [shape: f32[512,12], index: 7, kind: output, shape index: {0}]
  %s8 = inlined_call_operand.vmem [shape: bf16[512,4], index: 8, kind: output, shape index: {1}]
  %s9 = inlined_call_operand.vmem [shape: f32[2,1,128], index: 9, kind: output, shape index: {2}]
  %10 = xla_tuple %s7, %s8, %s9
  %s11 = sld [smem:[#allocation0]]
  $region81: #{training_step.4} parent=0
    _
  %s13 = ssub.s32 1, %s11
  %s14 = scalar_select 0, %s13, %s11
  $region1: #{training_step.4} parent=0
    #allocation2 [shape = 'u8[262144]{0}', space=vmem, size = 0x40000, scoped, tag = 'output window, operand 0']
    #allocation3 [shape = 's32[2]{0}', space=sflag, size = 0x8, scoped, tag = 'scoped memory for training_step.4']
    %15 = vsyncpa [#allocation3], 0
    %s16 = scalar_lea.sflag [#allocation3], 1
    %17 = vsyncpa %s16, 0
    loop: start=0, step=1, limit=4
    $region2: #{training_step.4} parent=1 // loop_pre_header
      _
    $region3: #{training_step.4} parent=1 // loop_header
      %s19 = sphi 0, %s23
      %p20 = scmp.ge.s32.totalorder %s19, 4
      %s26 = sphi 0, %s38
      %s27 = sphi 0, %s34
      %s28 = sphi 0, %s26
      %s29 = sphi 0, %s27
      %s30 = sphi 0, %s28
      %s31 = sphi 0, %s29
      %s43 = sphi 0, %s45
      %s46 = sphi 0, %s43
      %s47 = sphi 0, %s46
      %s63 = sphi 0, %s47
      %s67 = sphi 0, %s67
      %s69 = sphi 0, %s67
      %s70 = sphi 0, %s69
      %s84 = sphi 0, %s70
      %s88 = sphi 0, %s88
      %s90 = sphi 0, %s88
      %s91 = sphi 0, %s90
      %s105 = sphi 0, %s91
      %s109 = sphi 0, %s109
      %s111 = sphi 0, %s109
      %s112 = sphi 0, %s111
      %s126 = sphi 0, %s112
      %s130 = sphi 0, %s130
      %s132 = sphi 0, %s130
      %s133 = sphi 0, %s132
      %s147 = sphi 0, %s133
      %s155 = sphi 0, %s157
      %s158 = sphi 0, %s155
      %s159 = sphi 0, %s158
      %s175 = sphi 0, %s159
      %s183 = sphi 0, %s185
      %s186 = sphi 0, %s183
      %s187 = sphi 0, %s186
      %s203 = sphi 0, %s187
      %s211 = sphi 0, %s213
      %s214 = sphi 0, %s211
      %s215 = sphi 0, %s214
      %s231 = sphi 0, %s215
      %s239 = sphi 0, %s241
      %s242 = sphi 0, %s239
      %s243 = sphi 0, %s242
      %s259 = sphi 0, %s243
      %s265 = sphi 0, %s267
      %s268 = sphi 0, %s265
      %s269 = sphi 0, %s268
      %s285 = sphi 0, %s269
    $region4: #{training_step.4} parent=1 // loop_header_branch
      %22 = sbr.rel (%p20) target = $region8
    $region5: #{training_step.4} parent=1 // loop_body
      %s24 = ssub.s32 %s19, 1
      %s25 = ssub.s32 %s19, 2
      %s32 = sadd.s32 1, %s27
      %p33 = scmp.ge.s32.totalorder %s32, 1
      %s34 = scalar_select %p33, 0, %s32
      %s35 = sadd.s32 1, %s26
      %s36 = scalar_select %p33, %s35, %s26
      %p37 = scmp.ge.s32.totalorder %s36, 2
      %s38 = scalar_select %p37, 0, %s36
      %s39 = sadd.s32 %s26, %s27
      %s40 = sadd.s32 %s38, %s34
      %s41 = ssub.s32 %s39, %s40
      %p42 = scmp.eq.s32.totalorder %s41, 0
      %s44 = sadd.s32 %s43, 1
      %s45 = scalar_select %p42, %s43, %s44
      %p48 = pneg %p42
      %p49 = scmp.eq.s32.totalorder %s19, 1
      %p50 = por %p48, %p49
      %p51 = scmp.ne.s32.totalorder %s43, %s46
      %p52 = scmp.eq.s32.totalorder %s19, 0
      %p53 = por %p51, %p52
      %p54 = scmp.ne.s32.totalorder %s43, %s46
      %p55 = scmp.eq.s32.totalorder %s24, 1
      %p56 = por %p54, %p55
      %p57 = scmp.ne.s32.totalorder %s46, %s47
      %p58 = scmp.eq.s32.totalorder %s24, 0
      %p59 = por %p57, %p58
      %p60 = scmp.ne.s32.totalorder %s46, %s47
      %p61 = scmp.eq.s32.totalorder %s25, 1
      %p62 = por %p60, %p61
      %p64 = scmp.ne.s32.totalorder %s47, %s63
      %p65 = scmp.eq.s32.totalorder %s25, 0
      %p66 = por %p64, %p65
      %s68 = sadd.s32 %s67, 1
      %p71 = scmp.eq.s32.totalorder %s19, 1
      %p72 = scmp.ne.s32.totalorder %s67, %s69
      %p73 = scmp.eq.s32.totalorder %s19, 0
      %p74 = por %p72, %p73
      %p75 = scmp.ne.s32.totalorder %s67, %s69
      %p76 = scmp.eq.s32.totalorder %s24, 1
      %p77 = por %p75, %p76
      %p78 = scmp.ne.s32.totalorder %s69, %s70
      %p79 = scmp.eq.s32.totalorder %s24, 0
      %p80 = por %p78, %p79
      %p81 = scmp.ne.s32.totalorder %s69, %s70
      %p82 = scmp.eq.s32.totalorder %s25, 1
      %p83 = por %p81, %p82
      %p85 = scmp.ne.s32.totalorder %s70, %s84
      %p86 = scmp.eq.s32.totalorder %s25, 0
      %p87 = por %p85, %p86
      %s89 = sadd.s32 %s88, 1
      %p92 = scmp.eq.s32.totalorder %s19, 1
      %p93 = scmp.ne.s32.totalorder %s88, %s90
      %p94 = scmp.eq.s32.totalorder %s19, 0
      %p95 = por %p93, %p94
      %p96 = scmp.ne.s32.totalorder %s88, %s90
      %p97 = scmp.eq.s32.totalorder %s24, 1
      %p98 = por %p96, %p97
      %p99 = scmp.ne.s32.totalorder %s90, %s91
      %p100 = scmp.eq.s32.totalorder %s24, 0
      %p101 = por %p99, %p100
      %p102 = scmp.ne.s32.totalorder %s90, %s91
      %p103 = scmp.eq.s32.totalorder %s25, 1
      %p104 = por %p102, %p103
      %p106 = scmp.ne.s32.totalorder %s91, %s105
      %p107 = scmp.eq.s32.totalorder %s25, 0
      %p108 = por %p106, %p107
      %s110 = sadd.s32 %s109, 1
      %p113 = scmp.eq.s32.totalorder %s19, 1
      %p114 = scmp.ne.s32.totalorder %s109, %s111
      %p115 = scmp.eq.s32.totalorder %s19, 0
      %p116 = por %p114, %p115
      %p117 = scmp.ne.s32.totalorder %s109, %s111
      %p118 = scmp.eq.s32.totalorder %s24, 1
      %p119 = por %p117, %p118
      %p120 = scmp.ne.s32.totalorder %s111, %s112
      %p121 = scmp.eq.s32.totalorder %s24, 0
      %p122 = por %p120, %p121
      %p123 = scmp.ne.s32.totalorder %s111, %s112
      %p124 = scmp.eq.s32.totalorder %s25, 1
      %p125 = por %p123, %p124
      %p127 = scmp.ne.s32.totalorder %s112, %s126
      %p128 = scmp.eq.s32.totalorder %s25, 0
      %p129 = por %p127, %p128
      %s131 = sadd.s32 %s130, 1
      %p134 = scmp.eq.s32.totalorder %s19, 1
      %p135 = scmp.ne.s32.totalorder %s130, %s132
      %p136 = scmp.eq.s32.totalorder %s19, 0
      %p137 = por %p135, %p136
      %p138 = scmp.ne.s32.totalorder %s130, %s132
      %p139 = scmp.eq.s32.totalorder %s24, 1
      %p140 = por %p138, %p139
      %p141 = scmp.ne.s32.totalorder %s132, %s133
      %p142 = scmp.eq.s32.totalorder %s24, 0
      %p143 = por %p141, %p142
      %p144 = scmp.ne.s32.totalorder %s132, %s133
      %p145 = scmp.eq.s32.totalorder %s25, 1
      %p146 = por %p144, %p145
      %p148 = scmp.ne.s32.totalorder %s133, %s147
      %p149 = scmp.eq.s32.totalorder %s25, 0
      %p150 = por %p148, %p149
      %s151 = sadd.s32 %s26, %s27
      %s152 = sadd.s32 %s38, %s34
      %s153 = ssub.s32 %s151, %s152
      %p154 = scmp.eq.s32.totalorder %s153, 0
      %s156 = sadd.s32 %s155, 1
      %s157 = scalar_select %p154, %s155, %s156
      %p160 = pneg %p154
      %p161 = scmp.eq.s32.totalorder %s19, 1
      %p162 = por %p160, %p161
      %p163 = scmp.ne.s32.totalorder %s155, %s158
      %p164 = scmp.eq.s32.totalorder %s19, 0
      %p165 = por %p163, %p164
      %p166 = scmp.ne.s32.totalorder %s155, %s158
      %p167 = scmp.eq.s32.totalorder %s24, 1
      %p168 = por %p166, %p167
      %p169 = scmp.ne.s32.totalorder %s158, %s159
      %p170 = scmp.eq.s32.totalorder %s24, 0
      %p171 = por %p169, %p170
      %p172 = scmp.ne.s32.totalorder %s158, %s159
      %p173 = scmp.eq.s32.totalorder %s25, 1
      %p174 = por %p172, %p173
      %p176 = scmp.ne.s32.totalorder %s159, %s175
      %p177 = scmp.eq.s32.totalorder %s25, 0
      %p178 = por %p176, %p177
      %s179 = sadd.s32 %s26, %s27
      %s180 = sadd.s32 %s38, %s34
      %s181 = ssub.s32 %s179, %s180
      %p182 = scmp.eq.s32.totalorder %s181, 0
      %s184 = sadd.s32 %s183, 1
      %s185 = scalar_select %p182, %s183, %s184
      %p188 = pneg %p182
      %p189 = scmp.eq.s32.totalorder %s19, 1
      %p190 = por %p188, %p189
      %p191 = scmp.ne.s32.totalorder %s183, %s186
      %p192 = scmp.eq.s32.totalorder %s19, 0
      %p193 = por %p191, %p192
      %p194 = scmp.ne.s32.totalorder %s183, %s186
      %p195 = scmp.eq.s32.totalorder %s24, 1
      %p196 = por %p194, %p195
      %p197 = scmp.ne.s32.totalorder %s186, %s187
      %p198 = scmp.eq.s32.totalorder %s24, 0
      %p199 = por %p197, %p198
      %p200 = scmp.ne.s32.totalorder %s186, %s187
      %p201 = scmp.eq.s32.totalorder %s25, 1
      %p202 = por %p200, %p201
      %p204 = scmp.ne.s32.totalorder %s187, %s203
      %p205 = scmp.eq.s32.totalorder %s25, 0
      %p206 = por %p204, %p205
      %s207 = sadd.s32 %s26, %s27
      %s208 = sadd.s32 %s38, %s34
      %s209 = ssub.s32 %s207, %s208
      %p210 = scmp.eq.s32.totalorder %s209, 0
      %s212 = sadd.s32 %s211, 1
      %s213 = scalar_select %p210, %s211, %s212
      %p216 = pneg %p210
      %p217 = scmp.eq.s32.totalorder %s19, 1
      %p218 = por %p216, %p217
      %p219 = scmp.ne.s32.totalorder %s211, %s214
      %p220 = scmp.eq.s32.totalorder %s19, 0
      %p221 = por %p219, %p220
      %p222 = scmp.ne.s32.totalorder %s211, %s214
      %p223 = scmp.eq.s32.totalorder %s24, 1
      %p224 = por %p222, %p223
      %p225 = scmp.ne.s32.totalorder %s214, %s215
      %p226 = scmp.eq.s32.totalorder %s24, 0
      %p227 = por %p225, %p226
      %p228 = scmp.ne.s32.totalorder %s214, %s215
      %p229 = scmp.eq.s32.totalorder %s25, 1
      %p230 = por %p228, %p229
      %p232 = scmp.ne.s32.totalorder %s215, %s231
      %p233 = scmp.eq.s32.totalorder %s25, 0
      %p234 = por %p232, %p233
      %s235 = sadd.s32 %s26, %s27
      %s236 = sadd.s32 %s38, %s34
      %s237 = ssub.s32 %s235, %s236
      %p238 = scmp.eq.s32.totalorder %s237, 0
      %s240 = sadd.s32 %s239, 1
      %s241 = scalar_select %p238, %s239, %s240
      %p244 = pneg %p238
      %p245 = scmp.eq.s32.totalorder %s19, 1
      %p246 = por %p244, %p245
      %p247 = scmp.ne.s32.totalorder %s239, %s242
      %p248 = scmp.eq.s32.totalorder %s19, 0
      %p249 = por %p247, %p248
      %p250 = scmp.ne.s32.totalorder %s239, %s242
      %p251 = scmp.eq.s32.totalorder %s24, 1
      %p252 = por %p250, %p251
      %p253 = scmp.ne.s32.totalorder %s242, %s243
      %p254 = scmp.eq.s32.totalorder %s24, 0
      %p255 = por %p253, %p254
      %p256 = scmp.ne.s32.totalorder %s242, %s243
      %p257 = scmp.eq.s32.totalorder %s25, 1
      %p258 = por %p256, %p257
      %p260 = scmp.ne.s32.totalorder %s243, %s259
      %p261 = scmp.eq.s32.totalorder %s25, 0
      %p262 = por %p260, %p261
      %s263 = ssub.s32 %s26, %s38
      %p264 = scmp.eq.s32.totalorder %s263, 0
      %s266 = sadd.s32 %s265, 1
      %s267 = scalar_select %p264, %s265, %s266
      %p270 = pneg %p264
      %p271 = scmp.eq.s32.totalorder %s19, 1
      %p272 = por %p270, %p271
      %p273 = scmp.ne.s32.totalorder %s265, %s268
      %p274 = scmp.eq.s32.totalorder %s19, 0
      %p275 = por %p273, %p274
      %p276 = scmp.ne.s32.totalorder %s265, %s268
      %p277 = scmp.eq.s32.totalorder %s24, 1
      %p278 = por %p276, %p277
      %p279 = scmp.ne.s32.totalorder %s268, %s269
      %p280 = scmp.eq.s32.totalorder %s24, 0
      %p281 = por %p279, %p280
      %p282 = scmp.ne.s32.totalorder %s268, %s269
      %p283 = scmp.eq.s32.totalorder %s25, 1
      %p284 = por %p282, %p283
      %p286 = scmp.ne.s32.totalorder %s269, %s285
      %p287 = scmp.eq.s32.totalorder %s25, 0
      %p288 = por %p286, %p287
      %p289 = scmp.le.s32.totalorder 1, %s19
      %p290 = scmp.lt.s32.totalorder %s19, 3
      %p291 = pnand %p289, %p290
      %p292 = pneg %p291
      // Predicated region
      $region9: #{training_step.4} parent=5 // pred_check
        _
      $region10: #{training_step.4} parent=5 // pred_check_branch
        %294 = sbr.rel (%p291) target = $region12
      $region11: #{training_step.4} parent=5 // pred_region
        %s295 = ssub.s32 %s19, 1
        // Predicated region
        $region13: #{training_step.4} parent=11 // pred_check
          %p296 = pneg %p80
        $region14: #{training_step.4} parent=11 // pred_check_branch
          %298 = sbr.rel (%p296) target = $region16
        $region15: #{training_step.4} parent=11 // pred_region
          _
        $region16: #{training_step.4} parent=11 // pred_fallthru
          _
        // Predicated region
        $region17: #{training_step.4} parent=11 // pred_check
          %p299 = pneg %p101
        $region18: #{training_step.4} parent=11 // pred_check_branch
          %301 = sbr.rel (%p299) target = $region20
        $region19: #{training_step.4} parent=11 // pred_region
          _
        $region20: #{training_step.4} parent=11 // pred_fallthru
          _
        // Predicated region
        $region21: #{training_step.4} parent=11 // pred_check
          %p302 = pneg %p122
        $region22: #{training_step.4} parent=11 // pred_check_branch
          %304 = sbr.rel (%p302) target = $region24
        $region23: #{training_step.4} parent=11 // pred_region
          _
        $region24: #{training_step.4} parent=11 // pred_fallthru
          _
        // Predicated region
        $region25: #{training_step.4} parent=11 // pred_check
          %p305 = pneg %p143
        $region26: #{training_step.4} parent=11 // pred_check_branch
          %307 = sbr.rel (%p305) target = $region28
        $region27: #{training_step.4} parent=11 // pred_region
          _
        $region28: #{training_step.4} parent=11 // pred_fallthru
          _
      $region12: #{training_step.4} parent=5 // pred_fallthru
        _
      %p308 = scmp.lt.s32.totalorder %s19, 2
      // Predicated region
      $region29: #{training_step.4} parent=5 // pred_check
        %p309 = pneg %p308
      $region30: #{training_step.4} parent=5 // pred_check_branch
        %311 = sbr.rel (%p309) target = $region32
      $region31: #{training_step.4} parent=5 // pred_region
        // Predicated region
        $region33: #{training_step.4} parent=31 // pred_check
          %p312 = pneg %p53
        $region34: #{training_step.4} parent=31 // pred_check_branch
          %314 = sbr.rel (%p312) target = $region36
        $region35: #{training_step.4} parent=31 // pred_region
          %s315 = sadd.s32 %s26, %s27
          %s316 = smul.u32 32, %s315
          %p317 = scmp.lt.s32.totalorder %s316, 63
          %s318 = scalar_select %p317, %s316, 63
          %s319 = smul.addr %s318, 4
          %s320 = scalar_lea.vmem %s0, %s319
          %s321 = sadd.s32 %s26, %s27
          %s322 = smul.u32 32, %s321
        $region36: #{training_step.4} parent=31 // pred_fallthru
          _
        // Predicated region
        $region37: #{training_step.4} parent=31 // pred_check
          %p323 = pneg %p165
        $region38: #{training_step.4} parent=31 // pred_check_branch
          %325 = sbr.rel (%p323) target = $region40
        $region39: #{training_step.4} parent=31 // pred_region
          %s326 = sadd.s32 %s26, %s27
          %s327 = smul.u32 32, %s326
          %p328 = scmp.lt.s32.totalorder %s327, 63
          %s329 = scalar_select %p328, %s327, 63
          %s330 = smul.addr %s329, 8
          %s331 = scalar_lea.vmem %s5, %s330
          %s332 = sadd.s32 %s26, %s27
          %s333 = smul.u32 32, %s332
        $region40: #{training_step.4} parent=31 // pred_fallthru
          _
        // Predicated region
        $region41: #{training_step.4} parent=31 // pred_check
          %p334 = pneg %p193
        $region42: #{training_step.4} parent=31 // pred_check_branch
          %336 = sbr.rel (%p334) target = $region44
        $region43: #{training_step.4} parent=31 // pred_region
          %s337 = sadd.s32 %s26, %s27
          %s338 = smul.u32 32, %s337
          %p339 = scmp.lt.s32.totalorder %s338, 63
          %s340 = scalar_select %p339, %s338, 63
          %s341 = smul.addr %s340, 8
          %s342 = scalar_lea.vmem %s6, %s341
          %s343 = sadd.s32 %s26, %s27
          %s344 = smul.u32 32, %s343
        $region44: #{training_step.4} parent=31 // pred_fallthru
          _
      $region32: #{training_step.4} parent=5 // pred_fallthru
        _
      %p345 = scmp.le.s32.totalorder 1, %s19
      %p346 = scmp.lt.s32.totalorder %s19, 3
      %p347 = pnand %p345, %p346
      %p348 = pneg %p347
      // Predicated region
      $region45: #{training_step.4} parent=5 // pred_check
        _
      $region46: #{training_step.4} parent=5 // pred_check_branch
        %350 = sbr.rel (%p347) target = $region48
      $region47: #{training_step.4} parent=5 // pred_region
        %s351 = ssub.s32 %s19, 1
        %s352 = sadd.s32 %s28, %s29
        %s353 = smul.u32 32, %s352
        %p354 = scmp.lt.s32.totalorder %s353, 63
        %s355 = scalar_select %p354, %s353, 63
        %s356 = smul.addr %s355, 4
        %s357 = scalar_lea.vmem %s0, %s356
        %p358 = pneg %p59
        %p359 = pneg %p56
        %p360 = pneg %p80
        %p361 = pneg %p77
        %p362 = pneg %p101
        %p363 = pneg %p98
        %p364 = pneg %p122
        %p365 = pneg %p119
        %p366 = pneg %p143
        %p367 = pneg %p140
        %s368 = sadd.s32 %s28, %s29
        %s369 = smul.u32 32, %s368
        %p370 = scmp.lt.s32.totalorder %s369, 63
        %s371 = scalar_select %p370, %s369, 63
        %s372 = smul.addr %s371, 8
        %s373 = scalar_lea.vmem %s5, %s372
        %p374 = pneg %p171
        %p375 = pneg %p168
        %s376 = sadd.s32 %s28, %s29
        %s377 = smul.u32 32, %s376
        %p378 = scmp.lt.s32.totalorder %s377, 63
        %s379 = scalar_select %p378, %s377, 63
        %s380 = smul.addr %s379, 8
        %s381 = scalar_lea.vmem %s6, %s380
        %p382 = pneg %p199
        %p383 = pneg %p196
        %p384 = pneg %p227
        %p385 = pneg %p224
        %s386 = sand.u32 %s214, 1
        %s387 = scalar_lea.sflag [#allocation3], %s386
        %s388 = sand.u32 %s214, 1
        %s389 = smul.addr %s388, 256
        %s390 = scalar_lea.vmem [#allocation2], %s389
        %p391 = pneg %p255
        %p392 = pneg %p252
        %s393 = sadd.s32 %s28, %s29
        %s394 = smul.u32 32, %s393
        %p395 = scmp.lt.s32.totalorder %s394, 63
        %s396 = scalar_select %p395, %s394, 63
        %s397 = smul.addr %s396, 4
        %s398 = scalar_lea.vmem %s8, %s397
        %p399 = pneg %p281
        %p400 = pneg %p278
        %p401 = scmp.lt.s32.totalorder %s28, 1
        %s402 = scalar_select %p401, %s28, 1
        %s403 = scalar_lea.vmem %s9, %s402
        %s404 = sadd.s32 %s28, %s29
        %s405 = smul.u32 32, %s404
        %p406 = scmp.lt.s32.totalorder %s405, 63
        %s407 = scalar_select %p406, %s405, 63
        %s408 = smul.addr %s407, 4
        %s409 = scalar_lea.vmem %s0, %s408
        %s410 = sadd.s32 %s28, %s29
        %s411 = smul.u32 32, %s410
        %s412 = sadd.s32 %s28, %s29
        %s413 = smul.u32 32, %s412
        %p414 = scmp.lt.s32.totalorder %s413, 63
        %s415 = scalar_select %p414, %s413, 63
        %s416 = smul.addr %s415, 8
        %s417 = scalar_lea.vmem %s5, %s416
        %s418 = sadd.s32 %s28, %s29
        %s419 = smul.u32 32, %s418
        %s420 = sadd.s32 %s28, %s29
        %s421 = smul.u32 32, %s420
        %p422 = scmp.lt.s32.totalorder %s421, 63
        %s423 = scalar_select %p422, %s421, 63
        %s424 = smul.addr %s423, 8
        %s425 = scalar_lea.vmem %s6, %s424
        %s426 = sadd.s32 %s28, %s29
        %s427 = smul.u32 32, %s426
        %s428 = sadd.s32 %s28, %s29
        %s429 = smul.u32 32, %s428
        %s430 = sadd.s32 %s28, %s29
        %s431 = smul.u32 32, %s430
        %p432 = scmp.lt.s32.totalorder %s431, 63
        %s433 = scalar_select %p432, %s431, 63
        %s434 = smul.addr %s433, 4
        %s435 = scalar_lea.vmem %s8, %s434
        %s436 = sadd.s32 %s28, %s29
        %s437 = smul.u32 32, %s436
        %p438 = scmp.lt.s32.totalorder %s28, 1
        %s439 = scalar_select %p438, %s28, 1
        %s440 = scalar_lea.vmem %s9, %s439
        %v441 = vld [vmem:[%s409] sm:$0xf]
        %v442 = vld [vmem:[%s409 + $0x4] sm:$0xf]
        %v443 = vld [vmem:[%s409 + $0x8] sm:$0xf]
        %v444 = vld [vmem:[%s409 + $0xc] sm:$0xf]
        %v445 = vld [vmem:[%s409 + $0x10] sm:$0xf]
        %v446 = vld [vmem:[%s409 + $0x14] sm:$0xf]
        %v447 = vld [vmem:[%s409 + $0x18] sm:$0xf]
        %v448 = vld [vmem:[%s409 + $0x1c] sm:$0xf]
        %v449 = vld [vmem:[%s409 + $0x20] sm:$0xf]
        %v450 = vld [vmem:[%s409 + $0x24] sm:$0xf]
        %v451 = vld [vmem:[%s409 + $0x28] sm:$0xf]
        %v452 = vld [vmem:[%s409 + $0x2c] sm:$0xf]
        %v453 = vld [vmem:[%s409 + $0x30] sm:$0xf]
        %v454 = vld [vmem:[%s409 + $0x34] sm:$0xf]
        %v455 = vld [vmem:[%s409 + $0x38] sm:$0xf]
        %v456 = vld [vmem:[%s409 + $0x3c] sm:$0xf]
        %v457 = vld [vmem:[%s409 + $0x40] sm:$0xf]
        %v458 = vld [vmem:[%s409 + $0x44] sm:$0xf]
        %v459 = vld [vmem:[%s409 + $0x48] sm:$0xf]
        %v460 = vld [vmem:[%s409 + $0x4c] sm:$0xf]
        %v461 = vld [vmem:[%s409 + $0x50] sm:$0xf]
        %v462 = vld [vmem:[%s409 + $0x54] sm:$0xf]
        %v463 = vld [vmem:[%s409 + $0x58] sm:$0xf]
        %v464 = vld [vmem:[%s409 + $0x5c] sm:$0xf]
        %v465 = vld [vmem:[%s409 + $0x60] sm:$0xf]
        %v466 = vld [vmem:[%s409 + $0x64] sm:$0xf]
        %v467 = vld [vmem:[%s409 + $0x68] sm:$0xf]
        %v468 = vld [vmem:[%s409 + $0x6c] sm:$0xf]
        %v469 = vld [vmem:[%s409 + $0x70] sm:$0xf]
        %v470 = vld [vmem:[%s409 + $0x74] sm:$0xf]
        %v471 = vld [vmem:[%s409 + $0x78] sm:$0xf]
        %v472 = vld [vmem:[%s409 + $0x7c] sm:$0xf]
        %v473 = vunpack.c.l.bf16 %v441
        %v474 = vunpack.c.l.bf16 %v442
        %v475 = vunpack.c.l.bf16 %v443
        %v476 = vunpack.c.l.bf16 %v444
        %v477 = vunpack.c.l.bf16 %v445
        %v478 = vunpack.c.l.bf16 %v446
        %v479 = vunpack.c.l.bf16 %v447
        %v480 = vunpack.c.l.bf16 %v448
        %v481 = vunpack.c.l.bf16 %v449
        %v482 = vunpack.c.l.bf16 %v450
        %v483 = vunpack.c.l.bf16 %v451
        %v484 = vunpack.c.l.bf16 %v452
        %v485 = vunpack.c.l.bf16 %v453
        %v486 = vunpack.c.l.bf16 %v454
        %v487 = vunpack.c.l.bf16 %v455
        %v488 = vunpack.c.l.bf16 %v456
        %v489 = vunpack.c.l.bf16 %v457
        %v490 = vunpack.c.l.bf16 %v458
        %v491 = vunpack.c.l.bf16 %v459
        %v492 = vunpack.c.l.bf16 %v460
        %v493 = vunpack.c.l.bf16 %v461
        %v494 = vunpack.c.l.bf16 %v462
        %v495 = vunpack.c.l.bf16 %v463
        %v496 = vunpack.c.l.bf16 %v464
        %v497 = vunpack.c.l.bf16 %v465
        %v498 = vunpack.c.l.bf16 %v466
        %v499 = vunpack.c.l.bf16 %v467
        %v500 = vunpack.c.l.bf16 %v468
        %v501 = vunpack.c.l.bf16 %v469
        %v502 = vunpack.c.l.bf16 %v470
        %v503 = vunpack.c.l.bf16 %v471
        %v504 = vunpack.c.l.bf16 %v472
        %v505 = vld [vmem:[%s1] sm:$0xff]
        %v506 = vld [vmem:[%s2] sm:$0x1]
        %v508 = vlaneseq
        %v509 = vshrl.u32 %v508, 7
        %v510 = vsub.s32 0, %v509
        %v511 = vrot.slane %v506, %v510
        %vm513 = vcmask 64512
        %v515 = vsel %vm513, %v473, 0
        %v518 = vsel %vm513, %v474, 0
        %v521 = vsel %vm513, %v475, 0
        %v524 = vsel %vm513, %v476, 0
        %v527 = vsel %vm513, %v477, 0
        %v530 = vsel %vm513, %v478, 0
        %v533 = vsel %vm513, %v479, 0
        %v536 = vsel %vm513, %v480, 0
        %v539 = vsel %vm513, %v481, 0
        %v542 = vsel %vm513, %v482, 0
        %v545 = vsel %vm513, %v483, 0
        %v548 = vsel %vm513, %v484, 0
        %v551 = vsel %vm513, %v485, 0
        %v554 = vsel %vm513, %v486, 0
        %v557 = vsel %vm513, %v487, 0
        %v560 = vsel %vm513, %v488, 0
        %v563 = vsel %vm513, %v489, 0
        %v566 = vsel %vm513, %v490, 0
        %v569 = vsel %vm513, %v491, 0
        %v572 = vsel %vm513, %v492, 0
        %v575 = vsel %vm513, %v493, 0
        %v578 = vsel %vm513, %v494, 0
        %v581 = vsel %vm513, %v495, 0
        %v584 = vsel %vm513, %v496, 0
        %v587 = vsel %vm513, %v497, 0
        %v590 = vsel %vm513, %v498, 0
        %v593 = vsel %vm513, %v499, 0
        %v596 = vsel %vm513, %v500, 0
        %v599 = vsel %vm513, %v501, 0
        %v602 = vsel %vm513, %v502, 0
        %v605 = vsel %vm513, %v503, 0
        %v608 = vsel %vm513, %v504, 0
        %610 = vmatprep.subr.mxu0 0.0
        %611 = vmatpush1.msra.mxu0 %v505
        %612 = vmatprep.subr.mxu0 0.0
        %613 = vmatpush1.msra.mxu0 0.0
        %614 = vmatprep.subr.mxu0 0.0
        %615 = vmatpush1.msra.mxu0 0.0
        %616 = vmatprep.subr.mxu0 0.0
        %617 = vmatpush1.msra.mxu0 0.0
        %618 = vmatprep.subr.mxu0 0.0
        %619 = vmatpush1.msra.mxu0 0.0
        %620 = vmatprep.subr.mxu0 0.0
        %621 = vmatpush1.msra.mxu0 0.0
        %622 = vmatprep.subr.mxu0 0.0
        %623 = vmatpush1.msra.mxu0 0.0
        %624 = vmatprep.subr.mxu0 0.0
        %625 = vmatpush1.msra.mxu0 0.0
        %626 = vmatprep.subr.mxu0 0.0
        %627 = vmatpush1.msra.mxu0 0.0
        %628 = vmatprep.subr.mxu0 0.0
        %629 = vmatpush1.msra.mxu0 0.0
        %630 = vmatprep.subr.mxu0 0.0
        %631 = vmatpush1.msra.mxu0 0.0
        %632 = vmatprep.subr.mxu0 0.0
        %633 = vmatpush1.msra.mxu0 0.0
        %634 = vmatprep.subr.mxu0 0.0
        %635 = vmatpush1.msra.mxu0 0.0
        %636 = vmatprep.subr.mxu0 0.0
        %637 = vmatpush1.msra.mxu0 0.0
        %638 = vmatprep.subr.mxu0 0.0
        %639 = vmatpush1.msra.mxu0 0.0
        %640 = vmatprep.subr.mxu0 0.0
        %641 = vmatpush1.msra.mxu0 0.0
        %642 = vmatprep.subr.mxu0 0.0
        %643 = vmatpush1.msra.mxu0 0.0
        %644 = vmatprep.subr.mxu0 0.0
        %645 = vmatpush1.msra.mxu0 0.0
        %646 = vmatprep.subr.mxu0 0.0
        %647 = vmatpush1.msra.mxu0 0.0
        %648 = vmatprep.subr.mxu0 0.0
        %649 = vmatpush1.msra.mxu0 0.0
        %650 = vmatprep.subr.mxu0 0.0
        %651 = vmatpush1.msra.mxu0 0.0
        %652 = vmatprep.subr.mxu0 0.0
        %653 = vmatpush1.msra.mxu0 0.0
        %654 = vmatprep.subr.mxu0 0.0
        %655 = vmatpush1.msra.mxu0 0.0
        %656 = vmatprep.subr.mxu0 0.0
        %657 = vmatpush1.msra.mxu0 0.0
        %658 = vmatprep.subr.mxu0 0.0
        %659 = vmatpush1.msra.mxu0 0.0
        %660 = vmatprep.subr.mxu0 0.0
        %661 = vmatpush1.msra.mxu0 0.0
        %662 = vmatprep.subr.mxu0 0.0
        %663 = vmatpush1.msra.mxu0 0.0
        %664 = vmatprep.subr.mxu0 0.0
        %665 = vmatpush1.msra.mxu0 0.0
        %666 = vmatprep.subr.mxu0 0.0
        %667 = vmatpush1.msra.mxu0 0.0
        %668 = vmatprep.subr.mxu0 0.0
        %669 = vmatpush1.msra.mxu0 0.0
        %670 = vmatprep.subr.mxu0 0.0
        %671 = vmatpush1.msra.mxu0 0.0
        %672 = vmatprep.subr.mxu0 0.0
        %673 = vmatpush1.msra.mxu0 0.0
        %674 = vmatprep.mubr.f32.mxu0 0.0
        %675 = vmatmul.mubr.f32.gmra.mrb[0].mxu0 %v515
        %v676 = vpop.f32.mrb[0].mxu0
        %v677 = vadd.f32 %v511, %v676
        %v678 = vpop.f32.mrb[0].mxu0
        %679 = vmatprep.mubr.f32.mxu0 0.0
        %680 = vmatmul.mubr.f32.gmra.mrb[0].mxu0 %v518
        %v681 = vpop.f32.mrb[0].mxu0
        %v682 = vadd.f32 %v511, %v681
        %v683 = vpop.f32.mrb[0].mxu0
        %684 = vmatprep.mubr.f32.mxu0 0.0
        %685 = vmatmul.mubr.f32.gmra.mrb[0].mxu0 %v521
        %v686 = vpop.f32.mrb[0].mxu0
        %v687 = vadd.f32 %v511, %v686
        %v688 = vpop.f32.mrb[0].mxu0
        %689 = vmatprep.mubr.f32.mxu0 0.0
        %690 = vmatmul.mubr.f32.gmra.mrb[0].mxu0 %v524
        %v691 = vpop.f32.mrb[0].mxu0
        %v692 = vadd.f32 %v511, %v691
        %v693 = vpop.f32.mrb[0].mxu0
        %694 = vmatprep.mubr.f32.mxu0 0.0
        %695 = vmatmul.mubr.f32.gmra.mrb[0].mxu0 %v527
        %v696 = vpop.f32.mrb[0].mxu0
        %v697 = vadd.f32 %v511, %v696
        %v698 = vpop.f32.mrb[0].mxu0
        %699 = vmatprep.mubr.f32.mxu0 0.0
        %700 = vmatmul.mubr.f32.gmra.mrb[0].mxu0 %v530
        %v701 = vpop.f32.mrb[0].mxu0
        %v702 = vadd.f32 %v511, %v701
        %v703 = vpop.f32.mrb[0].mxu0
        %704 = vmatprep.mubr.f32.mxu0 0.0
        %705 = vmatmul.mubr.f32.gmra.mrb[0].mxu0 %v533
        %v706 = vpop.f32.mrb[0].mxu0
        %v707 = vadd.f32 %v511, %v706
        %v708 = vpop.f32.mrb[0].mxu0
        %709 = vmatprep.mubr.f32.mxu0 0.0
        %710 = vmatmul.mubr.f32.gmra.mrb[0].mxu0 %v536
        %v711 = vpop.f32.mrb[0].mxu0
        %v712 = vadd.f32 %v511, %v711
        %v713 = vpop.f32.mrb[0].mxu0
        %714 = vmatprep.mubr.f32.mxu0 0.0
        %715 = vmatmul.mubr.f32.gmra.mrb[0].mxu0 %v539
        %v716 = vpop.f32.mrb[0].mxu0
        %v717 = vadd.f32 %v511, %v716
        %v718 = vpop.f32.mrb[0].mxu0
        %719 = vmatprep.mubr.f32.mxu0 0.0
        %720 = vmatmul.mubr.f32.gmra.mrb[0].mxu0 %v542
        %v721 = vpop.f32.mrb[0].mxu0
        %v722 = vadd.f32 %v511, %v721
        %v723 = vpop.f32.mrb[0].mxu0
        %724 = vmatprep.mubr.f32.mxu0 0.0
        %725 = vmatmul.mubr.f32.gmra.mrb[0].mxu0 %v545
        %v726 = vpop.f32.mrb[0].mxu0
        %v727 = vadd.f32 %v511, %v726
        %v728 = vpop.f32.mrb[0].mxu0
        %729 = vmatprep.mubr.f32.mxu0 0.0
        %730 = vmatmul.mubr.f32.gmra.mrb[0].mxu0 %v548
        %v731 = vpop.f32.mrb[0].mxu0
        %v732 = vadd.f32 %v511, %v731
        %v733 = vpop.f32.mrb[0].mxu0
        %734 = vmatprep.mubr.f32.mxu0 0.0
        %735 = vmatmul.mubr.f32.gmra.mrb[0].mxu0 %v551
        %v736 = vpop.f32.mrb[0].mxu0
        %v737 = vadd.f32 %v511, %v736
        %v738 = vpop.f32.mrb[0].mxu0
        %739 = vmatprep.mubr.f32.mxu0 0.0
        %740 = vmatmul.mubr.f32.gmra.mrb[0].mxu0 %v554
        %v741 = vpop.f32.mrb[0].mxu0
        %v742 = vadd.f32 %v511, %v741
        %v743 = vpop.f32.mrb[0].mxu0
        %744 = vmatprep.mubr.f32.mxu0 0.0
        %745 = vmatmul.mubr.f32.gmra.mrb[0].mxu0 %v557
        %v746 = vpop.f32.mrb[0].mxu0
        %v747 = vadd.f32 %v511, %v746
        %v748 = vpop.f32.mrb[0].mxu0
        %749 = vmatprep.mubr.f32.mxu0 0.0
        %750 = vmatmul.mubr.f32.gmra.mrb[0].mxu0 %v560
        %v751 = vpop.f32.mrb[0].mxu0
        %v752 = vadd.f32 %v511, %v751
        %v753 = vpop.f32.mrb[0].mxu0
        %754 = vmatprep.mubr.f32.mxu0 0.0
        %755 = vmatmul.mubr.f32.gmra.mrb[0].mxu0 %v563
        %v756 = vpop.f32.mrb[0].mxu0
        %v757 = vadd.f32 %v511, %v756
        %v758 = vpop.f32.mrb[0].mxu0
        %759 = vmatprep.mubr.f32.mxu0 0.0
        %760 = vmatmul.mubr.f32.gmra.mrb[0].mxu0 %v566
        %v761 = vpop.f32.mrb[0].mxu0
        %v762 = vadd.f32 %v511, %v761
        %v763 = vpop.f32.mrb[0].mxu0
        %764 = vmatprep.mubr.f32.mxu0 0.0
        %765 = vmatmul.mubr.f32.gmra.mrb[0].mxu0 %v569
        %v766 = vpop.f32.mrb[0].mxu0
        %v767 = vadd.f32 %v511, %v766
        %v768 = vpop.f32.mrb[0].mxu0
        %769 = vmatprep.mubr.f32.mxu0 0.0
        %770 = vmatmul.mubr.f32.gmra.mrb[0].mxu0 %v572
        %v771 = vpop.f32.mrb[0].mxu0
        %v772 = vadd.f32 %v511, %v771
        %v773 = vpop.f32.mrb[0].mxu0
        %774 = vmatprep.mubr.f32.mxu0 0.0
        %775 = vmatmul.mubr.f32.gmra.mrb[0].mxu0 %v575
        %v776 = vpop.f32.mrb[0].mxu0
        %v777 = vadd.f32 %v511, %v776
        %v778 = vpop.f32.mrb[0].mxu0
        %779 = vmatprep.mubr.f32.mxu0 0.0
        %780 = vmatmul.mubr.f32.gmra.mrb[0].mxu0 %v578
        %v781 = vpop.f32.mrb[0].mxu0
        %v782 = vadd.f32 %v511, %v781
        %v783 = vpop.f32.mrb[0].mxu0
        %784 = vmatprep.mubr.f32.mxu0 0.0
        %785 = vmatmul.mubr.f32.gmra.mrb[0].mxu0 %v581
        %v786 = vpop.f32.mrb[0].mxu0
        %v787 = vadd.f32 %v511, %v786
        %v788 = vpop.f32.mrb[0].mxu0
        %789 = vmatprep.mubr.f32.mxu0 0.0
        %790 = vmatmul.mubr.f32.gmra.mrb[0].mxu0 %v584
        %v791 = vpop.f32.mrb[0].mxu0
        %v792 = vadd.f32 %v511, %v791
        %v793 = vpop.f32.mrb[0].mxu0
        %794 = vmatprep.mubr.f32.mxu0 0.0
        %795 = vmatmul.mubr.f32.gmra.mrb[0].mxu0 %v587
        %v796 = vpop.f32.mrb[0].mxu0
        %v797 = vadd.f32 %v511, %v796
        %v798 = vpop.f32.mrb[0].mxu0
        %799 = vmatprep.mubr.f32.mxu0 0.0
        %800 = vmatmul.mubr.f32.gmra.mrb[0].mxu0 %v590
        %v801 = vpop.f32.mrb[0].mxu0
        %v802 = vadd.f32 %v511, %v801
        %v803 = vpop.f32.mrb[0].mxu0
        %804 = vmatprep.mubr.f32.mxu0 0.0
        %805 = vmatmul.mubr.f32.gmra.mrb[0].mxu0 %v593
        %v806 = vpop.f32.mrb[0].mxu0
        %v807 = vadd.f32 %v511, %v806
        %v808 = vpop.f32.mrb[0].mxu0
        %809 = vmatprep.mubr.f32.mxu0 0.0
        %810 = vmatmul.mubr.f32.gmra.mrb[0].mxu0 %v596
        %v811 = vpop.f32.mrb[0].mxu0
        %v812 = vadd.f32 %v511, %v811
        %v813 = vpop.f32.mrb[0].mxu0
        %814 = vmatprep.mubr.f32.mxu0 0.0
        %815 = vmatmul.mubr.f32.gmra.mrb[0].mxu0 %v599
        %v816 = vpop.f32.mrb[0].mxu0
        %v817 = vadd.f32 %v511, %v816
        %v818 = vpop.f32.mrb[0].mxu0
        %819 = vmatprep.mubr.f32.mxu0 0.0
        %820 = vmatmul.mubr.f32.gmra.mrb[0].mxu0 %v602
        %v821 = vpop.f32.mrb[0].mxu0
        %v822 = vadd.f32 %v511, %v821
        %v823 = vpop.f32.mrb[0].mxu0
        %824 = vmatprep.mubr.f32.mxu0 0.0
        %825 = vmatmul.mubr.f32.gmra.mrb[0].mxu0 %v605
        %v826 = vpop.f32.mrb[0].mxu0
        %v827 = vadd.f32 %v511, %v826
        %v828 = vpop.f32.mrb[0].mxu0
        %829 = vmatprep.mubr.f32.mxu0 0.0
        %830 = vmatmul.mubr.f32.gmra.mrb[0].mxu0 %v608
        %v831 = vpop.f32.mrb[0].mxu0
        %v832 = vadd.f32 %v511, %v831
        %v833 = vpop.f32.mrb[0].mxu0
        %834 = vdwg.mxu0
        %v835 = vmul.f32 %v677, 1.442695
        %v836 = vpow.pop %v835
        %v837 = vmul.f32 %v682, 1.442695
        %v838 = vpow.pop %v837
        %v839 = vmul.f32 %v687, 1.442695
        %v840 = vpow.pop %v839
        %v841 = vmul.f32 %v692, 1.442695
        %v842 = vpow.pop %v841
        %v843 = vmul.f32 %v697, 1.442695
        %v844 = vpow.pop %v843
        %v845 = vmul.f32 %v702, 1.442695
        %v846 = vpow.pop %v845
        %v847 = vmul.f32 %v707, 1.442695
        %v848 = vpow.pop %v847
        %v849 = vmul.f32 %v712, 1.442695
        %v850 = vpow.pop %v849
        %v851 = vmul.f32 %v717, 1.442695
        %v852 = vpow.pop %v851
        %v853 = vmul.f32 %v722, 1.442695
        %v854 = vpow.pop %v853
        %v855 = vmul.f32 %v727, 1.442695
        %v856 = vpow.pop %v855
        %v857 = vmul.f32 %v732, 1.442695
        %v858 = vpow.pop %v857
        %v859 = vmul.f32 %v737, 1.442695
        %v860 = vpow.pop %v859
        %v861 = vmul.f32 %v742, 1.442695
        %v862 = vpow.pop %v861
        %v863 = vmul.f32 %v747, 1.442695
        %v864 = vpow.pop %v863
        %v865 = vmul.f32 %v752, 1.442695
        %v866 = vpow.pop %v865
        %v867 = vmul.f32 %v757, 1.442695
        %v868 = vpow.pop %v867
        %v869 = vmul.f32 %v762, 1.442695
        %v870 = vpow.pop %v869
        %v871 = vmul.f32 %v767, 1.442695
        %v872 = vpow.pop %v871
        %v873 = vmul.f32 %v772, 1.442695
        %v874 = vpow.pop %v873
        %v875 = vmul.f32 %v777, 1.442695
        %v876 = vpow.pop %v875
        %v877 = vmul.f32 %v782, 1.442695
        %v878 = vpow.pop %v877
        %v879 = vmul.f32 %v787, 1.442695
        %v880 = vpow.pop %v879
        %v881 = vmul.f32 %v792, 1.442695
        %v882 = vpow.pop %v881
        %v883 = vmul.f32 %v797, 1.442695
        %v884 = vpow.pop %v883
        %v885 = vmul.f32 %v802, 1.442695
        %v886 = vpow.pop %v885
        %v887 = vmul.f32 %v807, 1.442695
        %v888 = vpow.pop %v887
        %v889 = vmul.f32 %v812, 1.442695
        %v890 = vpow.pop %v889
        %v891 = vmul.f32 %v817, 1.442695
        %v892 = vpow.pop %v891
        %v893 = vmul.f32 %v822, 1.442695
        %v894 = vpow.pop %v893
        %v895 = vmul.f32 %v827, 1.442695
        %v896 = vpow.pop %v895
        %v897 = vmul.f32 %v832, 1.442695
        %v898 = vpow.pop %v897
        %v899 = vadd.f32 %v836, 2.1
        %v900 = vadd.f32 %v838, 2.1
        %v901 = vadd.f32 %v840, 2.1
        %v902 = vadd.f32 %v842, 2.1
        %v903 = vadd.f32 %v844, 2.1
        %v904 = vadd.f32 %v846, 2.1
        %v905 = vadd.f32 %v848, 2.1
        %v906 = vadd.f32 %v850, 2.1
        %v907 = vadd.f32 %v852, 2.1
        %v908 = vadd.f32 %v854, 2.1
        %v909 = vadd.f32 %v856, 2.1
        %v910 = vadd.f32 %v858, 2.1
        %v911 = vadd.f32 %v860, 2.1
        %v912 = vadd.f32 %v862, 2.1
        %v913 = vadd.f32 %v864, 2.1
        %v914 = vadd.f32 %v866, 2.1
        %v915 = vadd.f32 %v868, 2.1
        %v916 = vadd.f32 %v870, 2.1
        %v917 = vadd.f32 %v872, 2.1
        %v918 = vadd.f32 %v874, 2.1
        %v919 = vadd.f32 %v876, 2.1
        %v920 = vadd.f32 %v878, 2.1
        %v921 = vadd.f32 %v880, 2.1
        %v922 = vadd.f32 %v882, 2.1
        %v923 = vadd.f32 %v884, 2.1
        %v924 = vadd.f32 %v886, 2.1
        %v925 = vadd.f32 %v888, 2.1
        %v926 = vadd.f32 %v890, 2.1
        %v927 = vadd.f32 %v892, 2.1
        %v928 = vadd.f32 %v894, 2.1
        %v929 = vadd.f32 %v896, 2.1
        %v930 = vadd.f32 %v898, 2.1
        %v931 = vmax.f32 %v899, 2.1
        %v932 = vmax.f32 %v900, 2.1
        %v933 = vmax.f32 %v901, 2.1
        %v934 = vmax.f32 %v902, 2.1
        %v935 = vmax.f32 %v903, 2.1
        %v936 = vmax.f32 %v904, 2.1
        %v937 = vmax.f32 %v905, 2.1
        %v938 = vmax.f32 %v906, 2.1
        %v939 = vmax.f32 %v907, 2.1
        %v940 = vmax.f32 %v908, 2.1
        %v941 = vmax.f32 %v909, 2.1
        %v942 = vmax.f32 %v910, 2.1
        %v943 = vmax.f32 %v911, 2.1
        %v944 = vmax.f32 %v912, 2.1
        %v945 = vmax.f32 %v913, 2.1
        %v946 = vmax.f32 %v914, 2.1
        %v947 = vmax.f32 %v915, 2.1
        %v948 = vmax.f32 %v916, 2.1
        %v949 = vmax.f32 %v917, 2.1
        %v950 = vmax.f32 %v918, 2.1
        %v951 = vmax.f32 %v919, 2.1
        %v952 = vmax.f32 %v920, 2.1
        %v953 = vmax.f32 %v921, 2.1
        %v954 = vmax.f32 %v922, 2.1
        %v955 = vmax.f32 %v923, 2.1
        %v956 = vmax.f32 %v924, 2.1
        %v957 = vmax.f32 %v925, 2.1
        %v958 = vmax.f32 %v926, 2.1
        %v959 = vmax.f32 %v927, 2.1
        %v960 = vmax.f32 %v928, 2.1
        %v961 = vmax.f32 %v929, 2.1
        %v962 = vmax.f32 %v930, 2.1
        %v963 = vmin.f32 %v931, 50.0
        %v964 = vmin.f32 %v932, 50.0
        %v965 = vmin.f32 %v933, 50.0
        %v966 = vmin.f32 %v934, 50.0
        %v967 = vmin.f32 %v935, 50.0
        %v968 = vmin.f32 %v936, 50.0
        %v969 = vmin.f32 %v937, 50.0
        %v970 = vmin.f32 %v938, 50.0
        %v971 = vmin.f32 %v939, 50.0
        %v972 = vmin.f32 %v940, 50.0
        %v973 = vmin.f32 %v941, 50.0
        %v974 = vmin.f32 %v942, 50.0
        %v975 = vmin.f32 %v943, 50.0
        %v976 = vmin.f32 %v944, 50.0
        %v977 = vmin.f32 %v945, 50.0
        %v978 = vmin.f32 %v946, 50.0
        %v979 = vmin.f32 %v947, 50.0
        %v980 = vmin.f32 %v948, 50.0
        %v981 = vmin.f32 %v949, 50.0
        %v982 = vmin.f32 %v950, 50.0
        %v983 = vmin.f32 %v951, 50.0
        %v984 = vmin.f32 %v952, 50.0
        %v985 = vmin.f32 %v953, 50.0
        %v986 = vmin.f32 %v954, 50.0
        %v987 = vmin.f32 %v955, 50.0
        %v988 = vmin.f32 %v956, 50.0
        %v989 = vmin.f32 %v957, 50.0
        %v990 = vmin.f32 %v958, 50.0
        %v991 = vmin.f32 %v959, 50.0
        %v992 = vmin.f32 %v960, 50.0
        %v993 = vmin.f32 %v961, 50.0
        %v994 = vmin.f32 %v962, 50.0
        %v995 = vmul.f32 %v677, 0.5
        %v996 = vmul.f32 %v682, 0.5
        %v997 = vmul.f32 %v687, 0.5
        %v998 = vmul.f32 %v692, 0.5
        %v999 = vmul.f32 %v697, 0.5
        %v1000 = vmul.f32 %v702, 0.5
        %v1001 = vmul.f32 %v707, 0.5
        %v1002 = vmul.f32 %v712, 0.5
        %v1003 = vmul.f32 %v717, 0.5
        %v1004 = vmul.f32 %v722, 0.5
        %v1005 = vmul.f32 %v727, 0.5
        %v1006 = vmul.f32 %v732, 0.5
        %v1007 = vmul.f32 %v737, 0.5
        %v1008 = vmul.f32 %v742, 0.5
        %v1009 = vmul.f32 %v747, 0.5
        %v1010 = vmul.f32 %v752, 0.5
        %v1011 = vmul.f32 %v757, 0.5
        %v1012 = vmul.f32 %v762, 0.5
        %v1013 = vmul.f32 %v767, 0.5
        %v1014 = vmul.f32 %v772, 0.5
        %v1015 = vmul.f32 %v777, 0.5
        %v1016 = vmul.f32 %v782, 0.5
        %v1017 = vmul.f32 %v787, 0.5
        %v1018 = vmul.f32 %v792, 0.5
        %v1019 = vmul.f32 %v797, 0.5
        %v1020 = vmul.f32 %v802, 0.5
        %v1021 = vmul.f32 %v807, 0.5
        %v1022 = vmul.f32 %v812, 0.5
        %v1023 = vmul.f32 %v817, 0.5
        %v1024 = vmul.f32 %v822, 0.5
        %v1025 = vmul.f32 %v827, 0.5
        %v1026 = vmul.f32 %v832, 0.5
        %v1027 = vmul.f32 %v995, 1.442695
        %v1028 = vpow.pop %v1027
        %v1029 = vmul.f32 %v996, 1.442695
        %v1030 = vpow.pop %v1029
        %v1031 = vmul.f32 %v997, 1.442695
        %v1032 = vpow.pop %v1031
        %v1033 = vmul.f32 %v998, 1.442695
        %v1034 = vpow.pop %v1033
        %v1035 = vmul.f32 %v999, 1.442695
        %v1036 = vpow.pop %v1035
        %v1037 = vmul.f32 %v1000, 1.442695
        %v1038 = vpow.pop %v1037
        %v1039 = vmul.f32 %v1001, 1.442695
        %v1040 = vpow.pop %v1039
        %v1041 = vmul.f32 %v1002, 1.442695
        %v1042 = vpow.pop %v1041
        %v1043 = vmul.f32 %v1003, 1.442695
        %v1044 = vpow.pop %v1043
        %v1045 = vmul.f32 %v1004, 1.442695
        %v1046 = vpow.pop %v1045
        %v1047 = vmul.f32 %v1005, 1.442695
        %v1048 = vpow.pop %v1047
        %v1049 = vmul.f32 %v1006, 1.442695
        %v1050 = vpow.pop %v1049
        %v1051 = vmul.f32 %v1007, 1.442695
        %v1052 = vpow.pop %v1051
        %v1053 = vmul.f32 %v1008, 1.442695
        %v1054 = vpow.pop %v1053
        %v1055 = vmul.f32 %v1009, 1.442695
        %v1056 = vpow.pop %v1055
        %v1057 = vmul.f32 %v1010, 1.442695
        %v1058 = vpow.pop %v1057
        %v1059 = vmul.f32 %v1011, 1.442695
        %v1060 = vpow.pop %v1059
        %v1061 = vmul.f32 %v1012, 1.442695
        %v1062 = vpow.pop %v1061
        %v1063 = vmul.f32 %v1013, 1.442695
        %v1064 = vpow.pop %v1063
        %v1065 = vmul.f32 %v1014, 1.442695
        %v1066 = vpow.pop %v1065
        %v1067 = vmul.f32 %v1015, 1.442695
        %v1068 = vpow.pop %v1067
        %v1069 = vmul.f32 %v1016, 1.442695
        %v1070 = vpow.pop %v1069
        %v1071 = vmul.f32 %v1017, 1.442695
        %v1072 = vpow.pop %v1071
        %v1073 = vmul.f32 %v1018, 1.442695
        %v1074 = vpow.pop %v1073
        %v1075 = vmul.f32 %v1019, 1.442695
        %v1076 = vpow.pop %v1075
        %v1077 = vmul.f32 %v1020, 1.442695
        %v1078 = vpow.pop %v1077
        %v1079 = vmul.f32 %v1021, 1.442695
        %v1080 = vpow.pop %v1079
        %v1081 = vmul.f32 %v1022, 1.442695
        %v1082 = vpow.pop %v1081
        %v1083 = vmul.f32 %v1023, 1.442695
        %v1084 = vpow.pop %v1083
        %v1085 = vmul.f32 %v1024, 1.442695
        %v1086 = vpow.pop %v1085
        %v1087 = vmul.f32 %v1025, 1.442695
        %v1088 = vpow.pop %v1087
        %v1089 = vmul.f32 %v1026, 1.442695
        %v1090 = vpow.pop %v1089
        %v1091 = vld [vmem:[%s425] sm:$0xff]
        %v1092 = vld [vmem:[%s425 + $0x8] sm:$0xff]
        %v1093 = vld [vmem:[%s425 + $0x10] sm:$0xff]
        %v1094 = vld [vmem:[%s425 + $0x18] sm:$0xff]
        %v1095 = vld [vmem:[%s425 + $0x20] sm:$0xff]
        %v1096 = vld [vmem:[%s425 + $0x28] sm:$0xff]
        %v1097 = vld [vmem:[%s425 + $0x30] sm:$0xff]
        %v1098 = vld [vmem:[%s425 + $0x38] sm:$0xff]
        %v1099 = vld [vmem:[%s425 + $0x40] sm:$0xff]
        %v1100 = vld [vmem:[%s425 + $0x48] sm:$0xff]
        %v1101 = vld [vmem:[%s425 + $0x50] sm:$0xff]
        %v1102 = vld [vmem:[%s425 + $0x58] sm:$0xff]
        %v1103 = vld [vmem:[%s425 + $0x60] sm:$0xff]
        %v1104 = vld [vmem:[%s425 + $0x68] sm:$0xff]
        %v1105 = vld [vmem:[%s425 + $0x70] sm:$0xff]
        %v1106 = vld [vmem:[%s425 + $0x78] sm:$0xff]
        %v1107 = vld [vmem:[%s425 + $0x80] sm:$0xff]
        %v1108 = vld [vmem:[%s425 + $0x88] sm:$0xff]
        %v1109 = vld [vmem:[%s425 + $0x90] sm:$0xff]
        %v1110 = vld [vmem:[%s425 + $0x98] sm:$0xff]
        %v1111 = vld [vmem:[%s425 + $0xa0] sm:$0xff]
        %v1112 = vld [vmem:[%s425 + $0xa8] sm:$0xff]
        %v1113 = vld [vmem:[%s425 + $0xb0] sm:$0xff]
        %v1114 = vld [vmem:[%s425 + $0xb8] sm:$0xff]
        %v1115 = vld [vmem:[%s425 + $0xc0] sm:$0xff]
        %v1116 = vld [vmem:[%s425 + $0xc8] sm:$0xff]
        %v1117 = vld [vmem:[%s425 + $0xd0] sm:$0xff]
        %v1118 = vld [vmem:[%s425 + $0xd8] sm:$0xff]
        %v1119 = vld [vmem:[%s425 + $0xe0] sm:$0xff]
        %v1120 = vld [vmem:[%s425 + $0xe8] sm:$0xff]
        %v1121 = vld [vmem:[%s425 + $0xf0] sm:$0xff]
        %v1122 = vld [vmem:[%s425 + $0xf8] sm:$0xff]
        %v1123 = vmax.f32 %v1091, 1e-20
        %v1124 = vmax.f32 %v1092, 1e-20
        %v1125 = vmax.f32 %v1093, 1e-20
        %v1126 = vmax.f32 %v1094, 1e-20
        %v1127 = vmax.f32 %v1095, 1e-20
        %v1128 = vmax.f32 %v1096, 1e-20
        %v1129 = vmax.f32 %v1097, 1e-20
        %v1130 = vmax.f32 %v1098, 1e-20
        %v1131 = vmax.f32 %v1099, 1e-20
        %v1132 = vmax.f32 %v1100, 1e-20
        %v1133 = vmax.f32 %v1101, 1e-20
        %v1134 = vmax.f32 %v1102, 1e-20
        %v1135 = vmax.f32 %v1103, 1e-20
        %v1136 = vmax.f32 %v1104, 1e-20
        %v1137 = vmax.f32 %v1105, 1e-20
        %v1138 = vmax.f32 %v1106, 1e-20
        %v1139 = vmax.f32 %v1107, 1e-20
        %v1140 = vmax.f32 %v1108, 1e-20
        %v1141 = vmax.f32 %v1109, 1e-20
        %v1142 = vmax.f32 %v1110, 1e-20
        %v1143 = vmax.f32 %v1111, 1e-20
        %v1144 = vmax.f32 %v1112, 1e-20
        %v1145 = vmax.f32 %v1113, 1e-20
        %v1146 = vmax.f32 %v1114, 1e-20
        %v1147 = vmax.f32 %v1115, 1e-20
        %v1148 = vmax.f32 %v1116, 1e-20
        %v1149 = vmax.f32 %v1117, 1e-20
        %v1150 = vmax.f32 %v1118, 1e-20
        %v1151 = vmax.f32 %v1119, 1e-20
        %v1152 = vmax.f32 %v1120, 1e-20
        %v1153 = vmax.f32 %v1121, 1e-20
        %v1154 = vmax.f32 %v1122, 1e-20
        %v1155 = vld [vmem:[%s417] sm:$0xff]
        %v1156 = vld [vmem:[%s417 + $0x8] sm:$0xff]
        %v1157 = vld [vmem:[%s417 + $0x10] sm:$0xff]
        %v1158 = vld [vmem:[%s417 + $0x18] sm:$0xff]
        %v1159 = vld [vmem:[%s417 + $0x20] sm:$0xff]
        %v1160 = vld [vmem:[%s417 + $0x28] sm:$0xff]
        %v1161 = vld [vmem:[%s417 + $0x30] sm:$0xff]
        %v1162 = vld [vmem:[%s417 + $0x38] sm:$0xff]
        %v1163 = vld [vmem:[%s417 + $0x40] sm:$0xff]
        %v1164 = vld [vmem:[%s417 + $0x48] sm:$0xff]
        %v1165 = vld [vmem:[%s417 + $0x50] sm:$0xff]
        %v1166 = vld [vmem:[%s417 + $0x58] sm:$0xff]
        %v1167 = vld [vmem:[%s417 + $0x60] sm:$0xff]
        %v1168 = vld [vmem:[%s417 + $0x68] sm:$0xff]
        %v1169 = vld [vmem:[%s417 + $0x70] sm:$0xff]
        %v1170 = vld [vmem:[%s417 + $0x78] sm:$0xff]
        %v1171 = vld [vmem:[%s417 + $0x80] sm:$0xff]
        %v1172 = vld [vmem:[%s417 + $0x88] sm:$0xff]
        %v1173 = vld [vmem:[%s417 + $0x90] sm:$0xff]
        %v1174 = vld [vmem:[%s417 + $0x98] sm:$0xff]
        %v1175 = vld [vmem:[%s417 + $0xa0] sm:$0xff]
        %v1176 = vld [vmem:[%s417 + $0xa8] sm:$0xff]
        %v1177 = vld [vmem:[%s417 + $0xb0] sm:$0xff]
        %v1178 = vld [vmem:[%s417 + $0xb8] sm:$0xff]
        %v1179 = vld [vmem:[%s417 + $0xc0] sm:$0xff]
        %v1180 = vld [vmem:[%s417 + $0xc8] sm:$0xff]
        %v1181 = vld [vmem:[%s417 + $0xd0] sm:$0xff]
        %v1182 = vld [vmem:[%s417 + $0xd8] sm:$0xff]
        %v1183 = vld [vmem:[%s417 + $0xe0] sm:$0xff]
        %v1184 = vld [vmem:[%s417 + $0xe8] sm:$0xff]
        %v1185 = vld [vmem:[%s417 + $0xf0] sm:$0xff]
        %v1186 = vld [vmem:[%s417 + $0xf8] sm:$0xff]
        %1219 = vrot.lane.b32.xlu0 %v1155, 4
        %v1220 = vpop.permute.xlu0 %1219
        %1221 = vrot.lane.b32.xlu0 %v1156, 4
        %v1222 = vpop.permute.xlu0 %1221
        %1223 = vrot.lane.b32.xlu0 %v1157, 4
        %v1224 = vpop.permute.xlu0 %1223
        %1225 = vrot.lane.b32.xlu0 %v1158, 4
        %v1226 = vpop.permute.xlu0 %1225
        %1227 = vrot.lane.b32.xlu0 %v1159, 4
        %v1228 = vpop.permute.xlu0 %1227
        %1229 = vrot.lane.b32.xlu0 %v1160, 4
        %v1230 = vpop.permute.xlu0 %1229
        %1231 = vrot.lane.b32.xlu0 %v1161, 4
        %v1232 = vpop.permute.xlu0 %1231
        %1233 = vrot.lane.b32.xlu0 %v1162, 4
        %v1234 = vpop.permute.xlu0 %1233
        %1235 = vrot.lane.b32.xlu0 %v1163, 4
        %v1236 = vpop.permute.xlu0 %1235
        %1237 = vrot.lane.b32.xlu0 %v1164, 4
        %v1238 = vpop.permute.xlu0 %1237
        %1239 = vrot.lane.b32.xlu0 %v1165, 4
        %v1240 = vpop.permute.xlu0 %1239
        %1241 = vrot.lane.b32.xlu0 %v1166, 4
        %v1242 = vpop.permute.xlu0 %1241
        %1243 = vrot.lane.b32.xlu0 %v1167, 4
        %v1244 = vpop.permute.xlu0 %1243
        %1245 = vrot.lane.b32.xlu0 %v1168, 4
        %v1246 = vpop.permute.xlu0 %1245
        %1247 = vrot.lane.b32.xlu0 %v1169, 4
        %v1248 = vpop.permute.xlu0 %1247
        %1249 = vrot.lane.b32.xlu0 %v1170, 4
        %v1250 = vpop.permute.xlu0 %1249
        %1251 = vrot.lane.b32.xlu0 %v1171, 4
        %v1252 = vpop.permute.xlu0 %1251
        %1253 = vrot.lane.b32.xlu0 %v1172, 4
        %v1254 = vpop.permute.xlu0 %1253
        %1255 = vrot.lane.b32.xlu0 %v1173, 4
        %v1256 = vpop.permute.xlu0 %1255
        %1257 = vrot.lane.b32.xlu0 %v1174, 4
        %v1258 = vpop.permute.xlu0 %1257
        %1259 = vrot.lane.b32.xlu0 %v1175, 4
        %v1260 = vpop.permute.xlu0 %1259
        %1261 = vrot.lane.b32.xlu0 %v1176, 4
        %v1262 = vpop.permute.xlu0 %1261
        %1263 = vrot.lane.b32.xlu0 %v1177, 4
        %v1264 = vpop.permute.xlu0 %1263
        %1265 = vrot.lane.b32.xlu0 %v1178, 4
        %v1266 = vpop.permute.xlu0 %1265
        %1267 = vrot.lane.b32.xlu0 %v1179, 4
        %v1268 = vpop.permute.xlu0 %1267
        %1269 = vrot.lane.b32.xlu0 %v1180, 4
        %v1270 = vpop.permute.xlu0 %1269
        %1271 = vrot.lane.b32.xlu0 %v1181, 4
        %v1272 = vpop.permute.xlu0 %1271
        %1273 = vrot.lane.b32.xlu0 %v1182, 4
        %v1274 = vpop.permute.xlu0 %1273
        %1275 = vrot.lane.b32.xlu0 %v1183, 4
        %v1276 = vpop.permute.xlu0 %1275
        %1277 = vrot.lane.b32.xlu0 %v1184, 4
        %v1278 = vpop.permute.xlu0 %1277
        %1279 = vrot.lane.b32.xlu0 %v1185, 4
        %v1280 = vpop.permute.xlu0 %1279
        %1281 = vrot.lane.b32.xlu0 %v1186, 4
        %v1282 = vpop.permute.xlu0 %1281
        %v1315 = vmul.f32 %v1028, %v1220
        %v1316 = vmul.f32 %v1030, %v1222
        %v1317 = vmul.f32 %v1032, %v1224
        %v1318 = vmul.f32 %v1034, %v1226
        %v1319 = vmul.f32 %v1036, %v1228
        %v1320 = vmul.f32 %v1038, %v1230
        %v1321 = vmul.f32 %v1040, %v1232
        %v1322 = vmul.f32 %v1042, %v1234
        %v1323 = vmul.f32 %v1044, %v1236
        %v1324 = vmul.f32 %v1046, %v1238
        %v1325 = vmul.f32 %v1048, %v1240
        %v1326 = vmul.f32 %v1050, %v1242
        %v1327 = vmul.f32 %v1052, %v1244
        %v1328 = vmul.f32 %v1054, %v1246
        %v1329 = vmul.f32 %v1056, %v1248
        %v1330 = vmul.f32 %v1058, %v1250
        %v1331 = vmul.f32 %v1060, %v1252
        %v1332 = vmul.f32 %v1062, %v1254
        %v1333 = vmul.f32 %v1064, %v1256
        %v1334 = vmul.f32 %v1066, %v1258
        %v1335 = vmul.f32 %v1068, %v1260
        %v1336 = vmul.f32 %v1070, %v1262
        %v1337 = vmul.f32 %v1072, %v1264
        %v1338 = vmul.f32 %v1074, %v1266
        %v1339 = vmul.f32 %v1076, %v1268
        %v1340 = vmul.f32 %v1078, %v1270
        %v1341 = vmul.f32 %v1080, %v1272
        %v1342 = vmul.f32 %v1082, %v1274
        %v1343 = vmul.f32 %v1084, %v1276
        %v1344 = vmul.f32 %v1086, %v1278
        %v1345 = vmul.f32 %v1088, %v1280
        %v1346 = vmul.f32 %v1090, %v1282
        %v1347 = vrsqrt.pop %v1123
        %v1348 = vrsqrt.pop %v1124
        %v1349 = vrsqrt.pop %v1125
        %v1350 = vrsqrt.pop %v1126
        %v1351 = vrsqrt.pop %v1127
        %v1352 = vrsqrt.pop %v1128
        %v1353 = vrsqrt.pop %v1129
        %v1354 = vrsqrt.pop %v1130
        %v1355 = vrsqrt.pop %v1131
        %v1356 = vrsqrt.pop %v1132
        %v1357 = vrsqrt.pop %v1133
        %v1358 = vrsqrt.pop %v1134
        %v1359 = vrsqrt.pop %v1135
        %v1360 = vrsqrt.pop %v1136
        %v1361 = vrsqrt.pop %v1137
        %v1362 = vrsqrt.pop %v1138
        %v1363 = vrsqrt.pop %v1139
        %v1364 = vrsqrt.pop %v1140
        %v1365 = vrsqrt.pop %v1141
        %v1366 = vrsqrt.pop %v1142
        %v1367 = vrsqrt.pop %v1143
        %v1368 = vrsqrt.pop %v1144
        %v1369 = vrsqrt.pop %v1145
        %v1370 = vrsqrt.pop %v1146
        %v1371 = vrsqrt.pop %v1147
        %v1372 = vrsqrt.pop %v1148
        %v1373 = vrsqrt.pop %v1149
        %v1374 = vrsqrt.pop %v1150
        %v1375 = vrsqrt.pop %v1151
        %v1376 = vrsqrt.pop %v1152
        %v1377 = vrsqrt.pop %v1153
        %v1378 = vrsqrt.pop %v1154
        %1411 = vrot.lane.b32.xlu0 %v1347, 8
        %v1412 = vpop.permute.xlu0 %1411
        %1413 = vrot.lane.b32.xlu0 %v1348, 8
        %v1414 = vpop.permute.xlu0 %1413
        %1415 = vrot.lane.b32.xlu0 %v1349, 8
        %v1416 = vpop.permute.xlu0 %1415
        %1417 = vrot.lane.b32.xlu0 %v1350, 8
        %v1418 = vpop.permute.xlu0 %1417
        %1419 = vrot.lane.b32.xlu0 %v1351, 8
        %v1420 = vpop.permute.xlu0 %1419
        %1421 = vrot.lane.b32.xlu0 %v1352, 8
        %v1422 = vpop.permute.xlu0 %1421
        %1423 = vrot.lane.b32.xlu0 %v1353, 8
        %v1424 = vpop.permute.xlu0 %1423
        %1425 = vrot.lane.b32.xlu0 %v1354, 8
        %v1426 = vpop.permute.xlu0 %1425
        %1427 = vrot.lane.b32.xlu0 %v1355, 8
        %v1428 = vpop.permute.xlu0 %1427
        %1429 = vrot.lane.b32.xlu0 %v1356, 8
        %v1430 = vpop.permute.xlu0 %1429
        %1431 = vrot.lane.b32.xlu0 %v1357, 8
        %v1432 = vpop.permute.xlu0 %1431
        %1433 = vrot.lane.b32.xlu0 %v1358, 8
        %v1434 = vpop.permute.xlu0 %1433
        %1435 = vrot.lane.b32.xlu0 %v1359, 8
        %v1436 = vpop.permute.xlu0 %1435
        %1437 = vrot.lane.b32.xlu0 %v1360, 8
        %v1438 = vpop.permute.xlu0 %1437
        %1439 = vrot.lane.b32.xlu0 %v1361, 8
        %v1440 = vpop.permute.xlu0 %1439
        %1441 = vrot.lane.b32.xlu0 %v1362, 8
        %v1442 = vpop.permute.xlu0 %1441
        %1443 = vrot.lane.b32.xlu0 %v1363, 8
        %v1444 = vpop.permute.xlu0 %1443
        %1445 = vrot.lane.b32.xlu0 %v1364, 8
        %v1446 = vpop.permute.xlu0 %1445
        %1447 = vrot.lane.b32.xlu0 %v1365, 8
        %v1448 = vpop.permute.xlu0 %1447
        %1449 = vrot.lane.b32.xlu0 %v1366, 8
        %v1450 = vpop.permute.xlu0 %1449
        %1451 = vrot.lane.b32.xlu0 %v1367, 8
        %v1452 = vpop.permute.xlu0 %1451
        %1453 = vrot.lane.b32.xlu0 %v1368, 8
        %v1454 = vpop.permute.xlu0 %1453
        %1455 = vrot.lane.b32.xlu0 %v1369, 8
        %v1456 = vpop.permute.xlu0 %1455
        %1457 = vrot.lane.b32.xlu0 %v1370, 8
        %v1458 = vpop.permute.xlu0 %1457
        %1459 = vrot.lane.b32.xlu0 %v1371, 8
        %v1460 = vpop.permute.xlu0 %1459
        %1461 = vrot.lane.b32.xlu0 %v1372, 8
        %v1462 = vpop.permute.xlu0 %1461
        %1463 = vrot.lane.b32.xlu0 %v1373, 8
        %v1464 = vpop.permute.xlu0 %1463
        %1465 = vrot.lane.b32.xlu0 %v1374, 8
        %v1466 = vpop.permute.xlu0 %1465
        %1467 = vrot.lane.b32.xlu0 %v1375, 8
        %v1468 = vpop.permute.xlu0 %1467
        %1469 = vrot.lane.b32.xlu0 %v1376, 8
        %v1470 = vpop.permute.xlu0 %1469
        %1471 = vrot.lane.b32.xlu0 %v1377, 8
        %v1472 = vpop.permute.xlu0 %1471
        %1473 = vrot.lane.b32.xlu0 %v1378, 8
        %v1474 = vpop.permute.xlu0 %1473
        %v1507 = vmul.f32 %v963, %v1412
        %v1508 = vmul.f32 %v964, %v1414
        %v1509 = vmul.f32 %v965, %v1416
        %v1510 = vmul.f32 %v966, %v1418
        %v1511 = vmul.f32 %v967, %v1420
        %v1512 = vmul.f32 %v968, %v1422
        %v1513 = vmul.f32 %v969, %v1424
        %v1514 = vmul.f32 %v970, %v1426
        %v1515 = vmul.f32 %v971, %v1428
        %v1516 = vmul.f32 %v972, %v1430
        %v1517 = vmul.f32 %v973, %v1432
        %v1518 = vmul.f32 %v974, %v1434
        %v1519 = vmul.f32 %v975, %v1436
        %v1520 = vmul.f32 %v976, %v1438
        %v1521 = vmul.f32 %v977, %v1440
        %v1522 = vmul.f32 %v978, %v1442
        %v1523 = vmul.f32 %v979, %v1444
        %v1524 = vmul.f32 %v980, %v1446
        %v1525 = vmul.f32 %v981, %v1448
        %v1526 = vmul.f32 %v982, %v1450
        %v1527 = vmul.f32 %v983, %v1452
        %v1528 = vmul.f32 %v984, %v1454
        %v1529 = vmul.f32 %v985, %v1456
        %v1530 = vmul.f32 %v986, %v1458
        %v1531 = vmul.f32 %v987, %v1460
        %v1532 = vmul.f32 %v988, %v1462
        %v1533 = vmul.f32 %v989, %v1464
        %v1534 = vmul.f32 %v990, %v1466
        %v1535 = vmul.f32 %v991, %v1468
        %v1536 = vmul.f32 %v992, %v1470
        %v1537 = vmul.f32 %v993, %v1472
        %v1538 = vmul.f32 %v994, %v1474
        %1571 = vrot.lane.b32.xlu0 %v1507, 124
        %v1572 = vpop.permute.xlu0 %1571
        %1573 = vrot.lane.b32.xlu0 %v1508, 124
        %v1574 = vpop.permute.xlu0 %1573
        %1575 = vrot.lane.b32.xlu0 %v1509, 124
        %v1576 = vpop.permute.xlu0 %1575
        %1577 = vrot.lane.b32.xlu0 %v1510, 124
        %v1578 = vpop.permute.xlu0 %1577
        %1579 = vrot.lane.b32.xlu0 %v1511, 124
        %v1580 = vpop.permute.xlu0 %1579
        %1581 = vrot.lane.b32.xlu0 %v1512, 124
        %v1582 = vpop.permute.xlu0 %1581
        %1583 = vrot.lane.b32.xlu0 %v1513, 124
        %v1584 = vpop.permute.xlu0 %1583
        %1585 = vrot.lane.b32.xlu0 %v1514, 124
        %v1586 = vpop.permute.xlu0 %1585
        %1587 = vrot.lane.b32.xlu0 %v1515, 124
        %v1588 = vpop.permute.xlu0 %1587
        %1589 = vrot.lane.b32.xlu0 %v1516, 124
        %v1590 = vpop.permute.xlu0 %1589
        %1591 = vrot.lane.b32.xlu0 %v1517, 124
        %v1592 = vpop.permute.xlu0 %1591
        %1593 = vrot.lane.b32.xlu0 %v1518, 124
        %v1594 = vpop.permute.xlu0 %1593
        %1595 = vrot.lane.b32.xlu0 %v1519, 124
        %v1596 = vpop.permute.xlu0 %1595
        %1597 = vrot.lane.b32.xlu0 %v1520, 124
        %v1598 = vpop.permute.xlu0 %1597
        %1599 = vrot.lane.b32.xlu0 %v1521, 124
        %v1600 = vpop.permute.xlu0 %1599
        %1601 = vrot.lane.b32.xlu0 %v1522, 124
        %v1602 = vpop.permute.xlu0 %1601
        %1603 = vrot.lane.b32.xlu0 %v1523, 124
        %v1604 = vpop.permute.xlu0 %1603
        %1605 = vrot.lane.b32.xlu0 %v1524, 124
        %v1606 = vpop.permute.xlu0 %1605
        %1607 = vrot.lane.b32.xlu0 %v1525, 124
        %v1608 = vpop.permute.xlu0 %1607
        %1609 = vrot.lane.b32.xlu0 %v1526, 124
        %v1610 = vpop.permute.xlu0 %1609
        %1611 = vrot.lane.b32.xlu0 %v1527, 124
        %v1612 = vpop.permute.xlu0 %1611
        %1613 = vrot.lane.b32.xlu0 %v1528, 124
        %v1614 = vpop.permute.xlu0 %1613
        %1615 = vrot.lane.b32.xlu0 %v1529, 124
        %v1616 = vpop.permute.xlu0 %1615
        %1617 = vrot.lane.b32.xlu0 %v1530, 124
        %v1618 = vpop.permute.xlu0 %1617
        %1619 = vrot.lane.b32.xlu0 %v1531, 124
        %v1620 = vpop.permute.xlu0 %1619
        %1621 = vrot.lane.b32.xlu0 %v1532, 124
        %v1622 = vpop.permute.xlu0 %1621
        %1623 = vrot.lane.b32.xlu0 %v1533, 124
        %v1624 = vpop.permute.xlu0 %1623
        %1625 = vrot.lane.b32.xlu0 %v1534, 124
        %v1626 = vpop.permute.xlu0 %1625
        %1627 = vrot.lane.b32.xlu0 %v1535, 124
        %v1628 = vpop.permute.xlu0 %1627
        %1629 = vrot.lane.b32.xlu0 %v1536, 124
        %v1630 = vpop.permute.xlu0 %1629
        %1631 = vrot.lane.b32.xlu0 %v1537, 124
        %v1632 = vpop.permute.xlu0 %1631
        %1633 = vrot.lane.b32.xlu0 %v1538, 124
        %v1634 = vpop.permute.xlu0 %1633
        %v1667 = vmul.f32 %v1315, %v1572
        %v1668 = vmul.f32 %v1316, %v1574
        %v1669 = vmul.f32 %v1317, %v1576
        %v1670 = vmul.f32 %v1318, %v1578
        %v1671 = vmul.f32 %v1319, %v1580
        %v1672 = vmul.f32 %v1320, %v1582
        %v1673 = vmul.f32 %v1321, %v1584
        %v1674 = vmul.f32 %v1322, %v1586
        %v1675 = vmul.f32 %v1323, %v1588
        %v1676 = vmul.f32 %v1324, %v1590
        %v1677 = vmul.f32 %v1325, %v1592
        %v1678 = vmul.f32 %v1326, %v1594
        %v1679 = vmul.f32 %v1327, %v1596
        %v1680 = vmul.f32 %v1328, %v1598
        %v1681 = vmul.f32 %v1329, %v1600
        %v1682 = vmul.f32 %v1330, %v1602
        %v1683 = vmul.f32 %v1331, %v1604
        %v1684 = vmul.f32 %v1332, %v1606
        %v1685 = vmul.f32 %v1333, %v1608
        %v1686 = vmul.f32 %v1334, %v1610
        %v1687 = vmul.f32 %v1335, %v1612
        %v1688 = vmul.f32 %v1336, %v1614
        %v1689 = vmul.f32 %v1337, %v1616
        %v1690 = vmul.f32 %v1338, %v1618
        %v1691 = vmul.f32 %v1339, %v1620
        %v1692 = vmul.f32 %v1340, %v1622
        %v1693 = vmul.f32 %v1341, %v1624
        %v1694 = vmul.f32 %v1342, %v1626
        %v1695 = vmul.f32 %v1343, %v1628
        %v1696 = vmul.f32 %v1344, %v1630
        %v1697 = vmul.f32 %v1345, %v1632
        %v1698 = vmul.f32 %v1346, %v1634
        %1731 = vrot.lane.b32.xlu0 %v1667, 124
        %v1732 = vpop.permute.xlu0 %1731
        %1733 = vrot.lane.b32.xlu0 %v1668, 124
        %v1734 = vpop.permute.xlu0 %1733
        %1735 = vrot.lane.b32.xlu0 %v1669, 124
        %v1736 = vpop.permute.xlu0 %1735
        %1737 = vrot.lane.b32.xlu0 %v1670, 124
        %v1738 = vpop.permute.xlu0 %1737
        %1739 = vrot.lane.b32.xlu0 %v1671, 124
        %v1740 = vpop.permute.xlu0 %1739
        %1741 = vrot.lane.b32.xlu0 %v1672, 124
        %v1742 = vpop.permute.xlu0 %1741
        %1743 = vrot.lane.b32.xlu0 %v1673, 124
        %v1744 = vpop.permute.xlu0 %1743
        %1745 = vrot.lane.b32.xlu0 %v1674, 124
        %v1746 = vpop.permute.xlu0 %1745
        %1747 = vrot.lane.b32.xlu0 %v1675, 124
        %v1748 = vpop.permute.xlu0 %1747
        %1749 = vrot.lane.b32.xlu0 %v1676, 124
        %v1750 = vpop.permute.xlu0 %1749
        %1751 = vrot.lane.b32.xlu0 %v1677, 124
        %v1752 = vpop.permute.xlu0 %1751
        %1753 = vrot.lane.b32.xlu0 %v1678, 124
        %v1754 = vpop.permute.xlu0 %1753
        %1755 = vrot.lane.b32.xlu0 %v1679, 124
        %v1756 = vpop.permute.xlu0 %1755
        %1757 = vrot.lane.b32.xlu0 %v1680, 124
        %v1758 = vpop.permute.xlu0 %1757
        %1759 = vrot.lane.b32.xlu0 %v1681, 124
        %v1760 = vpop.permute.xlu0 %1759
        %1761 = vrot.lane.b32.xlu0 %v1682, 124
        %v1762 = vpop.permute.xlu0 %1761
        %1763 = vrot.lane.b32.xlu0 %v1683, 124
        %v1764 = vpop.permute.xlu0 %1763
        %1765 = vrot.lane.b32.xlu0 %v1684, 124
        %v1766 = vpop.permute.xlu0 %1765
        %1767 = vrot.lane.b32.xlu0 %v1685, 124
        %v1768 = vpop.permute.xlu0 %1767
        %1769 = vrot.lane.b32.xlu0 %v1686, 124
        %v1770 = vpop.permute.xlu0 %1769
        %1771 = vrot.lane.b32.xlu0 %v1687, 124
        %v1772 = vpop.permute.xlu0 %1771
        %1773 = vrot.lane.b32.xlu0 %v1688, 124
        %v1774 = vpop.permute.xlu0 %1773
        %1775 = vrot.lane.b32.xlu0 %v1689, 124
        %v1776 = vpop.permute.xlu0 %1775
        %1777 = vrot.lane.b32.xlu0 %v1690, 124
        %v1778 = vpop.permute.xlu0 %1777
        %1779 = vrot.lane.b32.xlu0 %v1691, 124
        %v1780 = vpop.permute.xlu0 %1779
        %1781 = vrot.lane.b32.xlu0 %v1692, 124
        %v1782 = vpop.permute.xlu0 %1781
        %1783 = vrot.lane.b32.xlu0 %v1693, 124
        %v1784 = vpop.permute.xlu0 %1783
        %1785 = vrot.lane.b32.xlu0 %v1694, 124
        %v1786 = vpop.permute.xlu0 %1785
        %1787 = vrot.lane.b32.xlu0 %v1695, 124
        %v1788 = vpop.permute.xlu0 %1787
        %1789 = vrot.lane.b32.xlu0 %v1696, 124
        %v1790 = vpop.permute.xlu0 %1789
        %1791 = vrot.lane.b32.xlu0 %v1697, 124
        %v1792 = vpop.permute.xlu0 %1791
        %1793 = vrot.lane.b32.xlu0 %v1698, 124
        %v1794 = vpop.permute.xlu0 %1793
        %v1827 = vadd.f32 %v677, %v1732
        %v1828 = vadd.f32 %v682, %v1734
        %v1829 = vadd.f32 %v687, %v1736
        %v1830 = vadd.f32 %v692, %v1738
        %v1831 = vadd.f32 %v697, %v1740
        %v1832 = vadd.f32 %v702, %v1742
        %v1833 = vadd.f32 %v707, %v1744
        %v1834 = vadd.f32 %v712, %v1746
        %v1835 = vadd.f32 %v717, %v1748
        %v1836 = vadd.f32 %v722, %v1750
        %v1837 = vadd.f32 %v727, %v1752
        %v1838 = vadd.f32 %v732, %v1754
        %v1839 = vadd.f32 %v737, %v1756
        %v1840 = vadd.f32 %v742, %v1758
        %v1841 = vadd.f32 %v747, %v1760
        %v1842 = vadd.f32 %v752, %v1762
        %v1843 = vadd.f32 %v757, %v1764
        %v1844 = vadd.f32 %v762, %v1766
        %v1845 = vadd.f32 %v767, %v1768
        %v1846 = vadd.f32 %v772, %v1770
        %v1847 = vadd.f32 %v777, %v1772
        %v1848 = vadd.f32 %v782, %v1774
        %v1849 = vadd.f32 %v787, %v1776
        %v1850 = vadd.f32 %v792, %v1778
        %v1851 = vadd.f32 %v797, %v1780
        %v1852 = vadd.f32 %v802, %v1782
        %v1853 = vadd.f32 %v807, %v1784
        %v1854 = vadd.f32 %v812, %v1786
        %v1855 = vadd.f32 %v817, %v1788
        %v1856 = vadd.f32 %v822, %v1790
        %v1857 = vadd.f32 %v827, %v1792
        %v1858 = vadd.f32 %v832, %v1794
        %v1859 = vld [vmem:[%s3] sm:$0xf]
        %v1860 = vld [vmem:[%s4] sm:$0x1]
        %v1862 = vlaneseq
        %v1863 = vshrl.u32 %v1862, 7
        %v1864 = vsub.s32 0, %v1863
        %v1865 = vrot.slane %v1860, %v1864
        %vm1867 = vcmask 31744
        %v1869 = vsel %vm1867, %v1827, 0
        %v1872 = vsel %vm1867, %v1828, 0
        %v1875 = vsel %vm1867, %v1829, 0
        %v1878 = vsel %vm1867, %v1830, 0
        %v1881 = vsel %vm1867, %v1831, 0
        %v1884 = vsel %vm1867, %v1832, 0
        %v1887 = vsel %vm1867, %v1833, 0
        %v1890 = vsel %vm1867, %v1834, 0
        %v1893 = vsel %vm1867, %v1835, 0
        %v1896 = vsel %vm1867, %v1836, 0
        %v1899 = vsel %vm1867, %v1837, 0
        %v1902 = vsel %vm1867, %v1838, 0
        %v1905 = vsel %vm1867, %v1839, 0
        %v1908 = vsel %vm1867, %v1840, 0
        %v1911 = vsel %vm1867, %v1841, 0
        %v1914 = vsel %vm1867, %v1842, 0
        %v1917 = vsel %vm1867, %v1843, 0
        %v1920 = vsel %vm1867, %v1844, 0
        %v1923 = vsel %vm1867, %v1845, 0
        %v1926 = vsel %vm1867, %v1846, 0
        %v1929 = vsel %vm1867, %v1847, 0
        %v1932 = vsel %vm1867, %v1848, 0
        %v1935 = vsel %vm1867, %v1849, 0
        %v1938 = vsel %vm1867, %v1850, 0
        %v1941 = vsel %vm1867, %v1851, 0
        %v1944 = vsel %vm1867, %v1852, 0
        %v1947 = vsel %vm1867, %v1853, 0
        %v1950 = vsel %vm1867, %v1854, 0
        %v1953 = vsel %vm1867, %v1855, 0
        %v1956 = vsel %vm1867, %v1856, 0
        %v1959 = vsel %vm1867, %v1857, 0
        %v1962 = vsel %vm1867, %v1858, 0
        %vm1964 = vcmask 1043456
        %v1966 = vsel %vm1964, %v1859, 0
        %1968 = vmatprep.subr.mxu0 0.0
        %1969 = vmatpush1.msra.mxu0 %v1966
        %1970 = vmatprep.subr.mxu0 0.0
        %1971 = vmatpush1.msra.mxu0 0.0
        %1972 = vmatprep.subr.mxu0 0.0
        %1973 = vmatpush1.msra.mxu0 0.0
        %1974 = vmatprep.subr.mxu0 0.0
        %1975 = vmatpush1.msra.mxu0 0.0
        %1976 = vmatprep.subr.mxu0 0.0
        %1977 = vmatpush1.msra.mxu0 0.0
        %1978 = vmatprep.subr.mxu0 0.0
        %1979 = vmatpush1.msra.mxu0 0.0
        %1980 = vmatprep.subr.mxu0 0.0
        %1981 = vmatpush1.msra.mxu0 0.0
        %1982 = vmatprep.subr.mxu0 0.0
        %1983 = vmatpush1.msra.mxu0 0.0
        %1984 = vmatprep.subr.mxu0 0.0
        %1985 = vmatpush1.msra.mxu0 0.0
        %1986 = vmatprep.subr.mxu0 0.0
        %1987 = vmatpush1.msra.mxu0 0.0
        %1988 = vmatprep.subr.mxu0 0.0
        %1989 = vmatpush1.msra.mxu0 0.0
        %1990 = vmatprep.subr.mxu0 0.0
        %1991 = vmatpush1.msra.mxu0 0.0
        %1992 = vmatprep.subr.mxu0 0.0
        %1993 = vmatpush1.msra.mxu0 0.0
        %1994 = vmatprep.subr.mxu0 0.0
        %1995 = vmatpush1.msra.mxu0 0.0
        %1996 = vmatprep.subr.mxu0 0.0
        %1997 = vmatpush1.msra.mxu0 0.0
        %1998 = vmatprep.subr.mxu0 0.0
        %1999 = vmatpush1.msra.mxu0 0.0
        %2000 = vmatprep.subr.mxu0 0.0
        %2001 = vmatpush1.msra.mxu0 0.0
        %2002 = vmatprep.subr.mxu0 0.0
        %2003 = vmatpush1.msra.mxu0 0.0
        %2004 = vmatprep.subr.mxu0 0.0
        %2005 = vmatpush1.msra.mxu0 0.0
        %2006 = vmatprep.subr.mxu0 0.0
        %2007 = vmatpush1.msra.mxu0 0.0
        %2008 = vmatprep.subr.mxu0 0.0
        %2009 = vmatpush1.msra.mxu0 0.0
        %2010 = vmatprep.subr.mxu0 0.0
        %2011 = vmatpush1.msra.mxu0 0.0
        %2012 = vmatprep.subr.mxu0 0.0
        %2013 = vmatpush1.msra.mxu0 0.0
        %2014 = vmatprep.subr.mxu0 0.0
        %2015 = vmatpush1.msra.mxu0 0.0
        %2016 = vmatprep.subr.mxu0 0.0
        %2017 = vmatpush1.msra.mxu0 0.0
        %2018 = vmatprep.subr.mxu0 0.0
        %2019 = vmatpush1.msra.mxu0 0.0
        %2020 = vmatprep.subr.mxu0 0.0
        %2021 = vmatpush1.msra.mxu0 0.0
        %2022 = vmatprep.subr.mxu0 0.0
        %2023 = vmatpush1.msra.mxu0 0.0
        %2024 = vmatprep.subr.mxu0 0.0
        %2025 = vmatpush1.msra.mxu0 0.0
        %2026 = vmatprep.subr.mxu0 0.0
        %2027 = vmatpush1.msra.mxu0 0.0
        %2028 = vmatprep.subr.mxu0 0.0
        %2029 = vmatpush1.msra.mxu0 0.0
        %2030 = vmatprep.subr.mxu0 0.0
        %2031 = vmatpush1.msra.mxu0 0.0
        %2032 = vmatprep.mubr.f32.mxu0 0.0
        %2033 = vmatmul.mubr.f32.gmra.mrb[0].mxu0 %v1869
        %v2034 = vpop.f32.mrb[0].mxu0
        %v2035 = vadd.f32 %v1865, %v2034
        %v2036 = vpop.f32.mrb[0].mxu0
        %2037 = vmatprep.mubr.f32.mxu0 0.0
        %2038 = vmatmul.mubr.f32.gmra.mrb[0].mxu0 %v1872
        %v2039 = vpop.f32.mrb[0].mxu0
        %v2040 = vadd.f32 %v1865, %v2039
        %v2041 = vpop.f32.mrb[0].mxu0
        %2042 = vmatprep.mubr.f32.mxu0 0.0
        %2043 = vmatmul.mubr.f32.gmra.mrb[0].mxu0 %v1875
        %v2044 = vpop.f32.mrb[0].mxu0
        %v2045 = vadd.f32 %v1865, %v2044
        %v2046 = vpop.f32.mrb[0].mxu0
        %2047 = vmatprep.mubr.f32.mxu0 0.0
        %2048 = vmatmul.mubr.f32.gmra.mrb[0].mxu0 %v1878
        %v2049 = vpop.f32.mrb[0].mxu0
        %v2050 = vadd.f32 %v1865, %v2049
        %v2051 = vpop.f32.mrb[0].mxu0
        %2052 = vmatprep.mubr.f32.mxu0 0.0
        %2053 = vmatmul.mubr.f32.gmra.mrb[0].mxu0 %v1881
        %v2054 = vpop.f32.mrb[0].mxu0
        %v2055 = vadd.f32 %v1865, %v2054
        %v2056 = vpop.f32.mrb[0].mxu0
        %2057 = vmatprep.mubr.f32.mxu0 0.0
        %2058 = vmatmul.mubr.f32.gmra.mrb[0].mxu0 %v1884
        %v2059 = vpop.f32.mrb[0].mxu0
        %v2060 = vadd.f32 %v1865, %v2059
        %v2061 = vpop.f32.mrb[0].mxu0
        %2062 = vmatprep.mubr.f32.mxu0 0.0
        %2063 = vmatmul.mubr.f32.gmra.mrb[0].mxu0 %v1887
        %v2064 = vpop.f32.mrb[0].mxu0
        %v2065 = vadd.f32 %v1865, %v2064
        %v2066 = vpop.f32.mrb[0].mxu0
        %2067 = vmatprep.mubr.f32.mxu0 0.0
        %2068 = vmatmul.mubr.f32.gmra.mrb[0].mxu0 %v1890
        %v2069 = vpop.f32.mrb[0].mxu0
        %v2070 = vadd.f32 %v1865, %v2069
        %v2071 = vpop.f32.mrb[0].mxu0
        %2072 = vmatprep.mubr.f32.mxu0 0.0
        %2073 = vmatmul.mubr.f32.gmra.mrb[0].mxu0 %v1893
        %v2074 = vpop.f32.mrb[0].mxu0
        %v2075 = vadd.f32 %v1865, %v2074
        %v2076 = vpop.f32.mrb[0].mxu0
        %2077 = vmatprep.mubr.f32.mxu0 0.0
        %2078 = vmatmul.mubr.f32.gmra.mrb[0].mxu0 %v1896
        %v2079 = vpop.f32.mrb[0].mxu0
        %v2080 = vadd.f32 %v1865, %v2079
        %v2081 = vpop.f32.mrb[0].mxu0
        %2082 = vmatprep.mubr.f32.mxu0 0.0
        %2083 = vmatmul.mubr.f32.gmra.mrb[0].mxu0 %v1899
        %v2084 = vpop.f32.mrb[0].mxu0
        %v2085 = vadd.f32 %v1865, %v2084
        %v2086 = vpop.f32.mrb[0].mxu0
        %2087 = vmatprep.mubr.f32.mxu0 0.0
        %2088 = vmatmul.mubr.f32.gmra.mrb[0].mxu0 %v1902
        %v2089 = vpop.f32.mrb[0].mxu0
        %v2090 = vadd.f32 %v1865, %v2089
        %v2091 = vpop.f32.mrb[0].mxu0
        %2092 = vmatprep.mubr.f32.mxu0 0.0
        %2093 = vmatmul.mubr.f32.gmra.mrb[0].mxu0 %v1905
        %v2094 = vpop.f32.mrb[0].mxu0
        %v2095 = vadd.f32 %v1865, %v2094
        %v2096 = vpop.f32.mrb[0].mxu0
        %2097 = vmatprep.mubr.f32.mxu0 0.0
        %2098 = vmatmul.mubr.f32.gmra.mrb[0].mxu0 %v1908
        %v2099 = vpop.f32.mrb[0].mxu0
        %v2100 = vadd.f32 %v1865, %v2099
        %v2101 = vpop.f32.mrb[0].mxu0
        %2102 = vmatprep.mubr.f32.mxu0 0.0
        %2103 = vmatmul.mubr.f32.gmra.mrb[0].mxu0 %v1911
        %v2104 = vpop.f32.mrb[0].mxu0
        %v2105 = vadd.f32 %v1865, %v2104
        %v2106 = vpop.f32.mrb[0].mxu0
        %2107 = vmatprep.mubr.f32.mxu0 0.0
        %2108 = vmatmul.mubr.f32.gmra.mrb[0].mxu0 %v1914
        %v2109 = vpop.f32.mrb[0].mxu0
        %v2110 = vadd.f32 %v1865, %v2109
        %v2111 = vpop.f32.mrb[0].mxu0
        %2112 = vmatprep.mubr.f32.mxu0 0.0
        %2113 = vmatmul.mubr.f32.gmra.mrb[0].mxu0 %v1917
        %v2114 = vpop.f32.mrb[0].mxu0
        %v2115 = vadd.f32 %v1865, %v2114
        %v2116 = vpop.f32.mrb[0].mxu0
        %2117 = vmatprep.mubr.f32.mxu0 0.0
        %2118 = vmatmul.mubr.f32.gmra.mrb[0].mxu0 %v1920
        %v2119 = vpop.f32.mrb[0].mxu0
        %v2120 = vadd.f32 %v1865, %v2119
        %v2121 = vpop.f32.mrb[0].mxu0
        %2122 = vmatprep.mubr.f32.mxu0 0.0
        %2123 = vmatmul.mubr.f32.gmra.mrb[0].mxu0 %v1923
        %v2124 = vpop.f32.mrb[0].mxu0
        %v2125 = vadd.f32 %v1865, %v2124
        %v2126 = vpop.f32.mrb[0].mxu0
        %2127 = vmatprep.mubr.f32.mxu0 0.0
        %2128 = vmatmul.mubr.f32.gmra.mrb[0].mxu0 %v1926
        %v2129 = vpop.f32.mrb[0].mxu0
        %v2130 = vadd.f32 %v1865, %v2129
        %v2131 = vpop.f32.mrb[0].mxu0
        %2132 = vmatprep.mubr.f32.mxu0 0.0
        %2133 = vmatmul.mubr.f32.gmra.mrb[0].mxu0 %v1929
        %v2134 = vpop.f32.mrb[0].mxu0
        %v2135 = vadd.f32 %v1865, %v2134
        %v2136 = vpop.f32.mrb[0].mxu0
        %2137 = vmatprep.mubr.f32.mxu0 0.0
        %2138 = vmatmul.mubr.f32.gmra.mrb[0].mxu0 %v1932
        %v2139 = vpop.f32.mrb[0].mxu0
        %v2140 = vadd.f32 %v1865, %v2139
        %v2141 = vpop.f32.mrb[0].mxu0
        %2142 = vmatprep.mubr.f32.mxu0 0.0
        %2143 = vmatmul.mubr.f32.gmra.mrb[0].mxu0 %v1935
        %v2144 = vpop.f32.mrb[0].mxu0
        %v2145 = vadd.f32 %v1865, %v2144
        %v2146 = vpop.f32.mrb[0].mxu0
        %2147 = vmatprep.mubr.f32.mxu0 0.0
        %2148 = vmatmul.mubr.f32.gmra.mrb[0].mxu0 %v1938
        %v2149 = vpop.f32.mrb[0].mxu0
        %v2150 = vadd.f32 %v1865, %v2149
        %v2151 = vpop.f32.mrb[0].mxu0
        %2152 = vmatprep.mubr.f32.mxu0 0.0
        %2153 = vmatmul.mubr.f32.gmra.mrb[0].mxu0 %v1941
        %v2154 = vpop.f32.mrb[0].mxu0
        %v2155 = vadd.f32 %v1865, %v2154
        %v2156 = vpop.f32.mrb[0].mxu0
        %2157 = vmatprep.mubr.f32.mxu0 0.0
        %2158 = vmatmul.mubr.f32.gmra.mrb[0].mxu0 %v1944
        %v2159 = vpop.f32.mrb[0].mxu0
        %v2160 = vadd.f32 %v1865, %v2159
        %v2161 = vpop.f32.mrb[0].mxu0
        %2162 = vmatprep.mubr.f32.mxu0 0.0
        %2163 = vmatmul.mubr.f32.gmra.mrb[0].mxu0 %v1947
        %v2164 = vpop.f32.mrb[0].mxu0
        %v2165 = vadd.f32 %v1865, %v2164
        %v2166 = vpop.f32.mrb[0].mxu0
        %2167 = vmatprep.mubr.f32.mxu0 0.0
        %2168 = vmatmul.mubr.f32.gmra.mrb[0].mxu0 %v1950
        %v2169 = vpop.f32.mrb[0].mxu0
        %v2170 = vadd.f32 %v1865, %v2169
        %v2171 = vpop.f32.mrb[0].mxu0
        %2172 = vmatprep.mubr.f32.mxu0 0.0
        %2173 = vmatmul.mubr.f32.gmra.mrb[0].mxu0 %v1953
        %v2174 = vpop.f32.mrb[0].mxu0
        %v2175 = vadd.f32 %v1865, %v2174
        %v2176 = vpop.f32.mrb[0].mxu0
        %2177 = vmatprep.mubr.f32.mxu0 0.0
        %2178 = vmatmul.mubr.f32.gmra.mrb[0].mxu0 %v1956
        %v2179 = vpop.f32.mrb[0].mxu0
        %v2180 = vadd.f32 %v1865, %v2179
        %v2181 = vpop.f32.mrb[0].mxu0
        %2182 = vmatprep.mubr.f32.mxu0 0.0
        %2183 = vmatmul.mubr.f32.gmra.mrb[0].mxu0 %v1959
        %v2184 = vpop.f32.mrb[0].mxu0
        %v2185 = vadd.f32 %v1865, %v2184
        %v2186 = vpop.f32.mrb[0].mxu0
        %2187 = vmatprep.mubr.f32.mxu0 0.0
        %2188 = vmatmul.mubr.f32.gmra.mrb[0].mxu0 %v1962
        %v2189 = vpop.f32.mrb[0].mxu0
        %v2190 = vadd.f32 %v1865, %v2189
        %v2191 = vpop.f32.mrb[0].mxu0
        %2192 = vdwg.mxu0
        %v2193 = vpack.c.bf16 %v2040, %v2035
        %v2194 = vpack.c.bf16 %v2050, %v2045
        %v2195 = vpack.c.bf16 %v2060, %v2055
        %v2196 = vpack.c.bf16 %v2070, %v2065
        %v2197 = vpack.c.bf16 %v2080, %v2075
        %v2198 = vpack.c.bf16 %v2090, %v2085
        %v2199 = vpack.c.bf16 %v2100, %v2095
        %v2200 = vpack.c.bf16 %v2110, %v2105
        %v2201 = vpack.c.bf16 %v2120, %v2115
        %v2202 = vpack.c.bf16 %v2130, %v2125
        %v2203 = vpack.c.bf16 %v2140, %v2135
        %v2204 = vpack.c.bf16 %v2150, %v2145
        %v2205 = vpack.c.bf16 %v2160, %v2155
        %v2206 = vpack.c.bf16 %v2170, %v2165
        %v2207 = vpack.c.bf16 %v2180, %v2175
        %v2208 = vpack.c.bf16 %v2190, %v2185
        %v2225 = vunpack.c.l.b16 %v2193
        %v2226 = vunpack.c.h.b16 %v2193
        %v2227 = vunpack.c.l.b16 %v2194
        %v2228 = vunpack.c.h.b16 %v2194
        %v2229 = vunpack.c.l.b16 %v2195
        %v2230 = vunpack.c.h.b16 %v2195
        %v2231 = vunpack.c.l.b16 %v2196
        %v2232 = vunpack.c.h.b16 %v2196
        %v2233 = vunpack.c.l.b16 %v2197
        %v2234 = vunpack.c.h.b16 %v2197
        %v2235 = vunpack.c.l.b16 %v2198
        %v2236 = vunpack.c.h.b16 %v2198
        %v2237 = vunpack.c.l.b16 %v2199
        %v2238 = vunpack.c.h.b16 %v2199
        %v2239 = vunpack.c.l.b16 %v2200
        %v2240 = vunpack.c.h.b16 %v2200
        %v2241 = vunpack.c.l.b16 %v2201
        %v2242 = vunpack.c.h.b16 %v2201
        %v2243 = vunpack.c.l.b16 %v2202
        %v2244 = vunpack.c.h.b16 %v2202
        %v2245 = vunpack.c.l.b16 %v2203
        %v2246 = vunpack.c.h.b16 %v2203
        %v2247 = vunpack.c.l.b16 %v2204
        %v2248 = vunpack.c.h.b16 %v2204
        %v2249 = vunpack.c.l.b16 %v2205
        %v2250 = vunpack.c.h.b16 %v2205
        %v2251 = vunpack.c.l.b16 %v2206
        %v2252 = vunpack.c.h.b16 %v2206
        %v2253 = vunpack.c.l.b16 %v2207
        %v2254 = vunpack.c.h.b16 %v2207
        %v2255 = vunpack.c.l.b16 %v2208
        %v2256 = vunpack.c.h.b16 %v2208
        %v2257 = vpack.c.b16 %v2225, %v2225
        %v2258 = vpack.c.b16 %v2226, %v2226
        %v2259 = vpack.c.b16 %v2227, %v2227
        %v2260 = vpack.c.b16 %v2228, %v2228
        %v2261 = vpack.c.b16 %v2229, %v2229
        %v2262 = vpack.c.b16 %v2230, %v2230
        %v2263 = vpack.c.b16 %v2231, %v2231
        %v2264 = vpack.c.b16 %v2232, %v2232
        %v2265 = vpack.c.b16 %v2233, %v2233
        %v2266 = vpack.c.b16 %v2234, %v2234
        %v2267 = vpack.c.b16 %v2235, %v2235
        %v2268 = vpack.c.b16 %v2236, %v2236
        %v2269 = vpack.c.b16 %v2237, %v2237
        %v2270 = vpack.c.b16 %v2238, %v2238
        %v2271 = vpack.c.b16 %v2239, %v2239
        %v2272 = vpack.c.b16 %v2240, %v2240
        %v2273 = vpack.c.b16 %v2241, %v2241
        %v2274 = vpack.c.b16 %v2242, %v2242
        %v2275 = vpack.c.b16 %v2243, %v2243
        %v2276 = vpack.c.b16 %v2244, %v2244
        %v2277 = vpack.c.b16 %v2245, %v2245
        %v2278 = vpack.c.b16 %v2246, %v2246
        %v2279 = vpack.c.b16 %v2247, %v2247
        %v2280 = vpack.c.b16 %v2248, %v2248
        %v2281 = vpack.c.b16 %v2249, %v2249
        %v2282 = vpack.c.b16 %v2250, %v2250
        %v2283 = vpack.c.b16 %v2251, %v2251
        %v2284 = vpack.c.b16 %v2252, %v2252
        %v2285 = vpack.c.b16 %v2253, %v2253
        %v2286 = vpack.c.b16 %v2254, %v2254
        %v2287 = vpack.c.b16 %v2255, %v2255
        %v2288 = vpack.c.b16 %v2256, %v2256
        %vm2321 = vcmask 27648
        %2322 = vst.msk [vmem:[%s435] sm:$0xf] %vm2321, %v2257
        %2323 = vst.msk [vmem:[%s435 + $0x4] sm:$0xf] %vm2321, %v2258
        %2324 = vst.msk [vmem:[%s435 + $0x8] sm:$0xf] %vm2321, %v2259
        %2325 = vst.msk [vmem:[%s435 + $0xc] sm:$0xf] %vm2321, %v2260
        %2326 = vst.msk [vmem:[%s435 + $0x10] sm:$0xf] %vm2321, %v2261
        %2327 = vst.msk [vmem:[%s435 + $0x14] sm:$0xf] %vm2321, %v2262
        %2328 = vst.msk [vmem:[%s435 + $0x18] sm:$0xf] %vm2321, %v2263
        %2329 = vst.msk [vmem:[%s435 + $0x1c] sm:$0xf] %vm2321, %v2264
        %2330 = vst.msk [vmem:[%s435 + $0x20] sm:$0xf] %vm2321, %v2265
        %2331 = vst.msk [vmem:[%s435 + $0x24] sm:$0xf] %vm2321, %v2266
        %2332 = vst.msk [vmem:[%s435 + $0x28] sm:$0xf] %vm2321, %v2267
        %2333 = vst.msk [vmem:[%s435 + $0x2c] sm:$0xf] %vm2321, %v2268
        %2334 = vst.msk [vmem:[%s435 + $0x30] sm:$0xf] %vm2321, %v2269
        %2335 = vst.msk [vmem:[%s435 + $0x34] sm:$0xf] %vm2321, %v2270
        %2336 = vst.msk [vmem:[%s435 + $0x38] sm:$0xf] %vm2321, %v2271
        %2337 = vst.msk [vmem:[%s435 + $0x3c] sm:$0xf] %vm2321, %v2272
        %2338 = vst.msk [vmem:[%s435 + $0x40] sm:$0xf] %vm2321, %v2273
        %2339 = vst.msk [vmem:[%s435 + $0x44] sm:$0xf] %vm2321, %v2274
        %2340 = vst.msk [vmem:[%s435 + $0x48] sm:$0xf] %vm2321, %v2275
        %2341 = vst.msk [vmem:[%s435 + $0x4c] sm:$0xf] %vm2321, %v2276
        %2342 = vst.msk [vmem:[%s435 + $0x50] sm:$0xf] %vm2321, %v2277
        %2343 = vst.msk [vmem:[%s435 + $0x54] sm:$0xf] %vm2321, %v2278
        %2344 = vst.msk [vmem:[%s435 + $0x58] sm:$0xf] %vm2321, %v2279
        %2345 = vst.msk [vmem:[%s435 + $0x5c] sm:$0xf] %vm2321, %v2280
        %2346 = vst.msk [vmem:[%s435 + $0x60] sm:$0xf] %vm2321, %v2281
        %2347 = vst.msk [vmem:[%s435 + $0x64] sm:$0xf] %vm2321, %v2282
        %2348 = vst.msk [vmem:[%s435 + $0x68] sm:$0xf] %vm2321, %v2283
        %2349 = vst.msk [vmem:[%s435 + $0x6c] sm:$0xf] %vm2321, %v2284
        %2350 = vst.msk [vmem:[%s435 + $0x70] sm:$0xf] %vm2321, %v2285
        %2351 = vst.msk [vmem:[%s435 + $0x74] sm:$0xf] %vm2321, %v2286
        %2352 = vst.msk [vmem:[%s435 + $0x78] sm:$0xf] %vm2321, %v2287
        %2353 = vst.msk [vmem:[%s435 + $0x7c] sm:$0xf] %vm2321, %v2288
        %vm2354 = vcmask 97280
        %2355 = vst.msk [vmem:[%s390] sm:$0xff] %vm2354, %v677
        %2356 = vst.msk [vmem:[%s390 + $0x8] sm:$0xff] %vm2354, %v682
        %2357 = vst.msk [vmem:[%s390 + $0x10] sm:$0xff] %vm2354, %v687
        %2358 = vst.msk [vmem:[%s390 + $0x18] sm:$0xff] %vm2354, %v692
        %2359 = vst.msk [vmem:[%s390 + $0x20] sm:$0xff] %vm2354, %v697
        %2360 = vst.msk [vmem:[%s390 + $0x28] sm:$0xff] %vm2354, %v702
        %2361 = vst.msk [vmem:[%s390 + $0x30] sm:$0xff] %vm2354, %v707
        %2362 = vst.msk [vmem:[%s390 + $0x38] sm:$0xff] %vm2354, %v712
        %2363 = vst.msk [vmem:[%s390 + $0x40] sm:$0xff] %vm2354, %v717
        %2364 = vst.msk [vmem:[%s390 + $0x48] sm:$0xff] %vm2354, %v722
        %2365 = vst.msk [vmem:[%s390 + $0x50] sm:$0xff] %vm2354, %v727
        %2366 = vst.msk [vmem:[%s390 + $0x58] sm:$0xff] %vm2354, %v732
        %2367 = vst.msk [vmem:[%s390 + $0x60] sm:$0xff] %vm2354, %v737
        %2368 = vst.msk [vmem:[%s390 + $0x68] sm:$0xff] %vm2354, %v742
        %2369 = vst.msk [vmem:[%s390 + $0x70] sm:$0xff] %vm2354, %v747
        %2370 = vst.msk [vmem:[%s390 + $0x78] sm:$0xff] %vm2354, %v752
        %2371 = vst.msk [vmem:[%s390 + $0x80] sm:$0xff] %vm2354, %v757
        %2372 = vst.msk [vmem:[%s390 + $0x88] sm:$0xff] %vm2354, %v762
        %2373 = vst.msk [vmem:[%s390 + $0x90] sm:$0xff] %vm2354, %v767
        %2374 = vst.msk [vmem:[%s390 + $0x98] sm:$0xff] %vm2354, %v772
        %2375 = vst.msk [vmem:[%s390 + $0xa0] sm:$0xff] %vm2354, %v777
        %2376 = vst.msk [vmem:[%s390 + $0xa8] sm:$0xff] %vm2354, %v782
        %2377 = vst.msk [vmem:[%s390 + $0xb0] sm:$0xff] %vm2354, %v787
        %2378 = vst.msk [vmem:[%s390 + $0xb8] sm:$0xff] %vm2354, %v792
        %2379 = vst.msk [vmem:[%s390 + $0xc0] sm:$0xff] %vm2354, %v797
        %2380 = vst.msk [vmem:[%s390 + $0xc8] sm:$0xff] %vm2354, %v802
        %2381 = vst.msk [vmem:[%s390 + $0xd0] sm:$0xff] %vm2354, %v807
        %2382 = vst.msk [vmem:[%s390 + $0xd8] sm:$0xff] %vm2354, %v812
        %2383 = vst.msk [vmem:[%s390 + $0xe0] sm:$0xff] %vm2354, %v817
        %2384 = vst.msk [vmem:[%s390 + $0xe8] sm:$0xff] %vm2354, %v822
        %2385 = vst.msk [vmem:[%s390 + $0xf0] sm:$0xff] %vm2354, %v827
        %2386 = vst.msk [vmem:[%s390 + $0xf8] sm:$0xff] %vm2354, %v832
        %p2387 = scmp.eq.s32.totalorder %s29, 0
        // Predicated region
        $region49: #{training_step.4} parent=47 // pred_check
          %p2388 = pneg %p2387
        $region50: #{training_step.4} parent=47 // pred_check_branch
          %2390 = sbr.rel (%p2388) target = $region52
        $region51: #{training_step.4} parent=47 // pred_region
          %2391 = vst [vmem:[%s440] sm:$0x1] 0.0
        $region52: #{training_step.4} parent=47 // pred_fallthru
          _
        %v2392 = vmax.f32 %v963, 2.100001
        %v2393 = vmax.f32 %v964, 2.100001
        %v2394 = vmax.f32 %v965, 2.100001
        %v2395 = vmax.f32 %v966, 2.100001
        %v2396 = vmax.f32 %v967, 2.100001
        %v2397 = vmax.f32 %v968, 2.100001
        %v2398 = vmax.f32 %v969, 2.100001
        %v2399 = vmax.f32 %v970, 2.100001
        %v2400 = vmax.f32 %v971, 2.100001
        %v2401 = vmax.f32 %v972, 2.100001
        %v2402 = vmax.f32 %v973, 2.100001
        %v2403 = vmax.f32 %v974, 2.100001
        %v2404 = vmax.f32 %v975, 2.100001
        %v2405 = vmax.f32 %v976, 2.100001
        %v2406 = vmax.f32 %v977, 2.100001
        %v2407 = vmax.f32 %v978, 2.100001
        %v2408 = vmax.f32 %v979, 2.100001
        %v2409 = vmax.f32 %v980, 2.100001
        %v2410 = vmax.f32 %v981, 2.100001
        %v2411 = vmax.f32 %v982, 2.100001
        %v2412 = vmax.f32 %v983, 2.100001
        %v2413 = vmax.f32 %v984, 2.100001
        %v2414 = vmax.f32 %v985, 2.100001
        %v2415 = vmax.f32 %v986, 2.100001
        %v2416 = vmax.f32 %v987, 2.100001
        %v2417 = vmax.f32 %v988, 2.100001
        %v2418 = vmax.f32 %v989, 2.100001
        %v2419 = vmax.f32 %v990, 2.100001
        %v2420 = vmax.f32 %v991, 2.100001
        %v2421 = vmax.f32 %v992, 2.100001
        %v2422 = vmax.f32 %v993, 2.100001
        %v2423 = vmax.f32 %v994, 2.100001
        %2456 = vrot.lane.b32.xlu0 %v836, 4
        %v2457 = vpop.permute.xlu0 %2456
        %2458 = vrot.lane.b32.xlu0 %v838, 4
        %v2459 = vpop.permute.xlu0 %2458
        %2460 = vrot.lane.b32.xlu0 %v840, 4
        %v2461 = vpop.permute.xlu0 %2460
        %2462 = vrot.lane.b32.xlu0 %v842, 4
        %v2463 = vpop.permute.xlu0 %2462
        %2464 = vrot.lane.b32.xlu0 %v844, 4
        %v2465 = vpop.permute.xlu0 %2464
        %2466 = vrot.lane.b32.xlu0 %v846, 4
        %v2467 = vpop.permute.xlu0 %2466
        %2468 = vrot.lane.b32.xlu0 %v848, 4
        %v2469 = vpop.permute.xlu0 %2468
        %2470 = vrot.lane.b32.xlu0 %v850, 4
        %v2471 = vpop.permute.xlu0 %2470
        %2472 = vrot.lane.b32.xlu0 %v852, 4
        %v2473 = vpop.permute.xlu0 %2472
        %2474 = vrot.lane.b32.xlu0 %v854, 4
        %v2475 = vpop.permute.xlu0 %2474
        %2476 = vrot.lane.b32.xlu0 %v856, 4
        %v2477 = vpop.permute.xlu0 %2476
        %2478 = vrot.lane.b32.xlu0 %v858, 4
        %v2479 = vpop.permute.xlu0 %2478
        %2480 = vrot.lane.b32.xlu0 %v860, 4
        %v2481 = vpop.permute.xlu0 %2480
        %2482 = vrot.lane.b32.xlu0 %v862, 4
        %v2483 = vpop.permute.xlu0 %2482
        %2484 = vrot.lane.b32.xlu0 %v864, 4
        %v2485 = vpop.permute.xlu0 %2484
        %2486 = vrot.lane.b32.xlu0 %v866, 4
        %v2487 = vpop.permute.xlu0 %2486
        %2488 = vrot.lane.b32.xlu0 %v868, 4
        %v2489 = vpop.permute.xlu0 %2488
        %2490 = vrot.lane.b32.xlu0 %v870, 4
        %v2491 = vpop.permute.xlu0 %2490
        %2492 = vrot.lane.b32.xlu0 %v872, 4
        %v2493 = vpop.permute.xlu0 %2492
        %2494 = vrot.lane.b32.xlu0 %v874, 4
        %v2495 = vpop.permute.xlu0 %2494
        %2496 = vrot.lane.b32.xlu0 %v876, 4
        %v2497 = vpop.permute.xlu0 %2496
        %2498 = vrot.lane.b32.xlu0 %v878, 4
        %v2499 = vpop.permute.xlu0 %2498
        %2500 = vrot.lane.b32.xlu0 %v880, 4
        %v2501 = vpop.permute.xlu0 %2500
        %2502 = vrot.lane.b32.xlu0 %v882, 4
        %v2503 = vpop.permute.xlu0 %2502
        %2504 = vrot.lane.b32.xlu0 %v884, 4
        %v2505 = vpop.permute.xlu0 %2504
        %2506 = vrot.lane.b32.xlu0 %v886, 4
        %v2507 = vpop.permute.xlu0 %2506
        %2508 = vrot.lane.b32.xlu0 %v888, 4
        %v2509 = vpop.permute.xlu0 %2508
        %2510 = vrot.lane.b32.xlu0 %v890, 4
        %v2511 = vpop.permute.xlu0 %2510
        %2512 = vrot.lane.b32.xlu0 %v892, 4
        %v2513 = vpop.permute.xlu0 %2512
        %2514 = vrot.lane.b32.xlu0 %v894, 4
        %v2515 = vpop.permute.xlu0 %2514
        %2516 = vrot.lane.b32.xlu0 %v896, 4
        %v2517 = vpop.permute.xlu0 %2516
        %2518 = vrot.lane.b32.xlu0 %v898, 4
        %v2519 = vpop.permute.xlu0 %2518
        %v2552 = vmul.f32 %v2392, %v2457
        %v2553 = vmul.f32 %v2393, %v2459
        %v2554 = vmul.f32 %v2394, %v2461
        %v2555 = vmul.f32 %v2395, %v2463
        %v2556 = vmul.f32 %v2396, %v2465
        %v2557 = vmul.f32 %v2397, %v2467
        %v2558 = vmul.f32 %v2398, %v2469
        %v2559 = vmul.f32 %v2399, %v2471
        %v2560 = vmul.f32 %v2400, %v2473
        %v2561 = vmul.f32 %v2401, %v2475
        %v2562 = vmul.f32 %v2402, %v2477
        %v2563 = vmul.f32 %v2403, %v2479
        %v2564 = vmul.f32 %v2404, %v2481
        %v2565 = vmul.f32 %v2405, %v2483
        %v2566 = vmul.f32 %v2406, %v2485
        %v2567 = vmul.f32 %v2407, %v2487
        %v2568 = vmul.f32 %v2408, %v2489
        %v2569 = vmul.f32 %v2409, %v2491
        %v2570 = vmul.f32 %v2410, %v2493
        %v2571 = vmul.f32 %v2411, %v2495
        %v2572 = vmul.f32 %v2412, %v2497
        %v2573 = vmul.f32 %v2413, %v2499
        %v2574 = vmul.f32 %v2414, %v2501
        %v2575 = vmul.f32 %v2415, %v2503
        %v2576 = vmul.f32 %v2416, %v2505
        %v2577 = vmul.f32 %v2417, %v2507
        %v2578 = vmul.f32 %v2418, %v2509
        %v2579 = vmul.f32 %v2419, %v2511
        %v2580 = vmul.f32 %v2420, %v2513
        %v2581 = vmul.f32 %v2421, %v2515
        %v2582 = vmul.f32 %v2422, %v2517
        %v2583 = vmul.f32 %v2423, %v2519
        %v2584 = vadd.f32 %v2552, 1e-06
        %v2585 = vadd.f32 %v2553, 1e-06
        %v2586 = vadd.f32 %v2554, 1e-06
        %v2587 = vadd.f32 %v2555, 1e-06
        %v2588 = vadd.f32 %v2556, 1e-06
        %v2589 = vadd.f32 %v2557, 1e-06
        %v2590 = vadd.f32 %v2558, 1e-06
        %v2591 = vadd.f32 %v2559, 1e-06
        %v2592 = vadd.f32 %v2560, 1e-06
        %v2593 = vadd.f32 %v2561, 1e-06
        %v2594 = vadd.f32 %v2562, 1e-06
        %v2595 = vadd.f32 %v2563, 1e-06
        %v2596 = vadd.f32 %v2564, 1e-06
        %v2597 = vadd.f32 %v2565, 1e-06
        %v2598 = vadd.f32 %v2566, 1e-06
        %v2599 = vadd.f32 %v2567, 1e-06
        %v2600 = vadd.f32 %v2568, 1e-06
        %v2601 = vadd.f32 %v2569, 1e-06
        %v2602 = vadd.f32 %v2570, 1e-06
        %v2603 = vadd.f32 %v2571, 1e-06
        %v2604 = vadd.f32 %v2572, 1e-06
        %v2605 = vadd.f32 %v2573, 1e-06
        %v2606 = vadd.f32 %v2574, 1e-06
        %v2607 = vadd.f32 %v2575, 1e-06
        %v2608 = vadd.f32 %v2576, 1e-06
        %v2609 = vadd.f32 %v2577, 1e-06
        %v2610 = vadd.f32 %v2578, 1e-06
        %v2611 = vadd.f32 %v2579, 1e-06
        %v2612 = vadd.f32 %v2580, 1e-06
        %v2613 = vadd.f32 %v2581, 1e-06
        %v2614 = vadd.f32 %v2582, 1e-06
        %v2615 = vadd.f32 %v2583, 1e-06
        %v2616 = vrcp.pop %v2584
        %v2617 = vmul.f32 1.0, %v2616
        %v2618 = vrcp.pop %v2585
        %v2619 = vmul.f32 1.0, %v2618
        %v2620 = vrcp.pop %v2586
        %v2621 = vmul.f32 1.0, %v2620
        %v2622 = vrcp.pop %v2587
        %v2623 = vmul.f32 1.0, %v2622
        %v2624 = vrcp.pop %v2588
        %v2625 = vmul.f32 1.0, %v2624
        %v2626 = vrcp.pop %v2589
        %v2627 = vmul.f32 1.0, %v2626
        %v2628 = vrcp.pop %v2590
        %v2629 = vmul.f32 1.0, %v2628
        %v2630 = vrcp.pop %v2591
        %v2631 = vmul.f32 1.0, %v2630
        %v2632 = vrcp.pop %v2592
        %v2633 = vmul.f32 1.0, %v2632
        %v2634 = vrcp.pop %v2593
        %v2635 = vmul.f32 1.0, %v2634
        %v2636 = vrcp.pop %v2594
        %v2637 = vmul.f32 1.0, %v2636
        %v2638 = vrcp.pop %v2595
        %v2639 = vmul.f32 1.0, %v2638
        %v2640 = vrcp.pop %v2596
        %v2641 = vmul.f32 1.0, %v2640
        %v2642 = vrcp.pop %v2597
        %v2643 = vmul.f32 1.0, %v2642
        %v2644 = vrcp.pop %v2598
        %v2645 = vmul.f32 1.0, %v2644
        %v2646 = vrcp.pop %v2599
        %v2647 = vmul.f32 1.0, %v2646
        %v2648 = vrcp.pop %v2600
        %v2649 = vmul.f32 1.0, %v2648
        %v2650 = vrcp.pop %v2601
        %v2651 = vmul.f32 1.0, %v2650
        %v2652 = vrcp.pop %v2602
        %v2653 = vmul.f32 1.0, %v2652
        %v2654 = vrcp.pop %v2603
        %v2655 = vmul.f32 1.0, %v2654
        %v2656 = vrcp.pop %v2604
        %v2657 = vmul.f32 1.0, %v2656
        %v2658 = vrcp.pop %v2605
        %v2659 = vmul.f32 1.0, %v2658
        %v2660 = vrcp.pop %v2606
        %v2661 = vmul.f32 1.0, %v2660
        %v2662 = vrcp.pop %v2607
        %v2663 = vmul.f32 1.0, %v2662
        %v2664 = vrcp.pop %v2608
        %v2665 = vmul.f32 1.0, %v2664
        %v2666 = vrcp.pop %v2609
        %v2667 = vmul.f32 1.0, %v2666
        %v2668 = vrcp.pop %v2610
        %v2669 = vmul.f32 1.0, %v2668
        %v2670 = vrcp.pop %v2611
        %v2671 = vmul.f32 1.0, %v2670
        %v2672 = vrcp.pop %v2612
        %v2673 = vmul.f32 1.0, %v2672
        %v2674 = vrcp.pop %v2613
        %v2675 = vmul.f32 1.0, %v2674
        %v2676 = vrcp.pop %v2614
        %v2677 = vmul.f32 1.0, %v2676
        %v2678 = vrcp.pop %v2615
        %v2679 = vmul.f32 1.0, %v2678
        %v2680 = vmul.f32 %v677, %v677
        %v2681 = vmul.f32 %v682, %v682
        %v2682 = vmul.f32 %v687, %v687
        %v2683 = vmul.f32 %v692, %v692
        %v2684 = vmul.f32 %v697, %v697
        %v2685 = vmul.f32 %v702, %v702
        %v2686 = vmul.f32 %v707, %v707
        %v2687 = vmul.f32 %v712, %v712
        %v2688 = vmul.f32 %v717, %v717
        %v2689 = vmul.f32 %v722, %v722
        %v2690 = vmul.f32 %v727, %v727
        %v2691 = vmul.f32 %v732, %v732
        %v2692 = vmul.f32 %v737, %v737
        %v2693 = vmul.f32 %v742, %v742
        %v2694 = vmul.f32 %v747, %v747
        %v2695 = vmul.f32 %v752, %v752
        %v2696 = vmul.f32 %v757, %v757
        %v2697 = vmul.f32 %v762, %v762
        %v2698 = vmul.f32 %v767, %v767
        %v2699 = vmul.f32 %v772, %v772
        %v2700 = vmul.f32 %v777, %v777
        %v2701 = vmul.f32 %v782, %v782
        %v2702 = vmul.f32 %v787, %v787
        %v2703 = vmul.f32 %v792, %v792
        %v2704 = vmul.f32 %v797, %v797
        %v2705 = vmul.f32 %v802, %v802
        %v2706 = vmul.f32 %v807, %v807
        %v2707 = vmul.f32 %v812, %v812
        %v2708 = vmul.f32 %v817, %v817
        %v2709 = vmul.f32 %v822, %v822
        %v2710 = vmul.f32 %v827, %v827
        %v2711 = vmul.f32 %v832, %v832
        %2744 = vrot.lane.b32.xlu0 %v677, 124
        %v2745 = vpop.permute.xlu0 %2744
        %2746 = vrot.lane.b32.xlu0 %v682, 124
        %v2747 = vpop.permute.xlu0 %2746
        %2748 = vrot.lane.b32.xlu0 %v687, 124
        %v2749 = vpop.permute.xlu0 %2748
        %2750 = vrot.lane.b32.xlu0 %v692, 124
        %v2751 = vpop.permute.xlu0 %2750
        %2752 = vrot.lane.b32.xlu0 %v697, 124
        %v2753 = vpop.permute.xlu0 %2752
        %2754 = vrot.lane.b32.xlu0 %v702, 124
        %v2755 = vpop.permute.xlu0 %2754
        %2756 = vrot.lane.b32.xlu0 %v707, 124
        %v2757 = vpop.permute.xlu0 %2756
        %2758 = vrot.lane.b32.xlu0 %v712, 124
        %v2759 = vpop.permute.xlu0 %2758
        %2760 = vrot.lane.b32.xlu0 %v717, 124
        %v2761 = vpop.permute.xlu0 %2760
        %2762 = vrot.lane.b32.xlu0 %v722, 124
        %v2763 = vpop.permute.xlu0 %2762
        %2764 = vrot.lane.b32.xlu0 %v727, 124
        %v2765 = vpop.permute.xlu0 %2764
        %2766 = vrot.lane.b32.xlu0 %v732, 124
        %v2767 = vpop.permute.xlu0 %2766
        %2768 = vrot.lane.b32.xlu0 %v737, 124
        %v2769 = vpop.permute.xlu0 %2768
        %2770 = vrot.lane.b32.xlu0 %v742, 124
        %v2771 = vpop.permute.xlu0 %2770
        %2772 = vrot.lane.b32.xlu0 %v747, 124
        %v2773 = vpop.permute.xlu0 %2772
        %2774 = vrot.lane.b32.xlu0 %v752, 124
        %v2775 = vpop.permute.xlu0 %2774
        %2776 = vrot.lane.b32.xlu0 %v757, 124
        %v2777 = vpop.permute.xlu0 %2776
        %2778 = vrot.lane.b32.xlu0 %v762, 124
        %v2779 = vpop.permute.xlu0 %2778
        %2780 = vrot.lane.b32.xlu0 %v767, 124
        %v2781 = vpop.permute.xlu0 %2780
        %2782 = vrot.lane.b32.xlu0 %v772, 124
        %v2783 = vpop.permute.xlu0 %2782
        %2784 = vrot.lane.b32.xlu0 %v777, 124
        %v2785 = vpop.permute.xlu0 %2784
        %2786 = vrot.lane.b32.xlu0 %v782, 124
        %v2787 = vpop.permute.xlu0 %2786
        %2788 = vrot.lane.b32.xlu0 %v787, 124
        %v2789 = vpop.permute.xlu0 %2788
        %2790 = vrot.lane.b32.xlu0 %v792, 124
        %v2791 = vpop.permute.xlu0 %2790
        %2792 = vrot.lane.b32.xlu0 %v797, 124
        %v2793 = vpop.permute.xlu0 %2792
        %2794 = vrot.lane.b32.xlu0 %v802, 124
        %v2795 = vpop.permute.xlu0 %2794
        %2796 = vrot.lane.b32.xlu0 %v807, 124
        %v2797 = vpop.permute.xlu0 %2796
        %2798 = vrot.lane.b32.xlu0 %v812, 124
        %v2799 = vpop.permute.xlu0 %2798
        %2800 = vrot.lane.b32.xlu0 %v817, 124
        %v2801 = vpop.permute.xlu0 %2800
        %2802 = vrot.lane.b32.xlu0 %v822, 124
        %v2803 = vpop.permute.xlu0 %2802
        %2804 = vrot.lane.b32.xlu0 %v827, 124
        %v2805 = vpop.permute.xlu0 %2804
        %2806 = vrot.lane.b32.xlu0 %v832, 124
        %v2807 = vpop.permute.xlu0 %2806
        %v2840 = vsel %vm1867, %v2745, 0.0
        %v2841 = vsel %vm1867, %v2747, 0.0
        %v2842 = vadd.f32 %v2840, %v2841
        %v2843 = vsel %vm1867, %v2749, 0.0
        %v2844 = vadd.f32 %v2842, %v2843
        %v2845 = vsel %vm1867, %v2751, 0.0
        %v2846 = vadd.f32 %v2844, %v2845
        %v2847 = vsel %vm1867, %v2753, 0.0
        %v2848 = vadd.f32 %v2846, %v2847
        %v2849 = vsel %vm1867, %v2755, 0.0
        %v2850 = vadd.f32 %v2848, %v2849
        %v2851 = vsel %vm1867, %v2757, 0.0
        %v2852 = vadd.f32 %v2850, %v2851
        %v2853 = vsel %vm1867, %v2759, 0.0
        %v2854 = vadd.f32 %v2852, %v2853
        %v2855 = vsel %vm1867, %v2761, 0.0
        %v2856 = vadd.f32 %v2854, %v2855
        %v2857 = vsel %vm1867, %v2763, 0.0
        %v2858 = vadd.f32 %v2856, %v2857
        %v2859 = vsel %vm1867, %v2765, 0.0
        %v2860 = vadd.f32 %v2858, %v2859
        %v2861 = vsel %vm1867, %v2767, 0.0
        %v2862 = vadd.f32 %v2860, %v2861
        %v2863 = vsel %vm1867, %v2769, 0.0
        %v2864 = vadd.f32 %v2862, %v2863
        %v2865 = vsel %vm1867, %v2771, 0.0
        %v2866 = vadd.f32 %v2864, %v2865
        %v2867 = vsel %vm1867, %v2773, 0.0
        %v2868 = vadd.f32 %v2866, %v2867
        %v2869 = vsel %vm1867, %v2775, 0.0
        %v2870 = vadd.f32 %v2868, %v2869
        %v2871 = vsel %vm1867, %v2777, 0.0
        %v2872 = vadd.f32 %v2870, %v2871
        %v2873 = vsel %vm1867, %v2779, 0.0
        %v2874 = vadd.f32 %v2872, %v2873
        %v2875 = vsel %vm1867, %v2781, 0.0
        %v2876 = vadd.f32 %v2874, %v2875
        %v2877 = vsel %vm1867, %v2783, 0.0
        %v2878 = vadd.f32 %v2876, %v2877
        %v2879 = vsel %vm1867, %v2785, 0.0
        %v2880 = vadd.f32 %v2878, %v2879
        %v2881 = vsel %vm1867, %v2787, 0.0
        %v2882 = vadd.f32 %v2880, %v2881
        %v2883 = vsel %vm1867, %v2789, 0.0
        %v2884 = vadd.f32 %v2882, %v2883
        %v2885 = vsel %vm1867, %v2791, 0.0
        %v2886 = vadd.f32 %v2884, %v2885
        %v2887 = vsel %vm1867, %v2793, 0.0
        %v2888 = vadd.f32 %v2886, %v2887
        %v2889 = vsel %vm1867, %v2795, 0.0
        %v2890 = vadd.f32 %v2888, %v2889
        %v2891 = vsel %vm1867, %v2797, 0.0
        %v2892 = vadd.f32 %v2890, %v2891
        %v2893 = vsel %vm1867, %v2799, 0.0
        %v2894 = vadd.f32 %v2892, %v2893
        %v2895 = vsel %vm1867, %v2801, 0.0
        %v2896 = vadd.f32 %v2894, %v2895
        %v2897 = vsel %vm1867, %v2803, 0.0
        %v2898 = vadd.f32 %v2896, %v2897
        %v2899 = vsel %vm1867, %v2805, 0.0
        %v2900 = vadd.f32 %v2898, %v2899
        %v2901 = vsel %vm1867, %v2807, 0.0
        %v2902 = vadd.f32 %v2900, %v2901
        %2903 = vadd.xlane.f32.xlu0 %v2902
        %v2904 = vpop.xlane.xlu0 %2903
        %v2905 = vrot.slane %v2904, 4
        %v2906 = vadd.f32 %v2904, %v2905
        %v2907 = vrot.slane %v2906, 2
        %v2908 = vadd.f32 %v2906, %v2907
        %v2909 = vrot.slane %v2908, 1
        %v2910 = vadd.f32 %v2908, %v2909
        %s2911 = vtos %v2910
        %2912 = vrot.lane.b32.xlu0 %v836, 124
        %v2913 = vpop.permute.xlu0 %2912
        %2914 = vrot.lane.b32.xlu0 %v838, 124
        %v2915 = vpop.permute.xlu0 %2914
        %2916 = vrot.lane.b32.xlu0 %v840, 124
        %v2917 = vpop.permute.xlu0 %2916
        %2918 = vrot.lane.b32.xlu0 %v842, 124
        %v2919 = vpop.permute.xlu0 %2918
        %2920 = vrot.lane.b32.xlu0 %v844, 124
        %v2921 = vpop.permute.xlu0 %2920
        %2922 = vrot.lane.b32.xlu0 %v846, 124
        %v2923 = vpop.permute.xlu0 %2922
        %2924 = vrot.lane.b32.xlu0 %v848, 124
        %v2925 = vpop.permute.xlu0 %2924
        %2926 = vrot.lane.b32.xlu0 %v850, 124
        %v2927 = vpop.permute.xlu0 %2926
        %2928 = vrot.lane.b32.xlu0 %v852, 124
        %v2929 = vpop.permute.xlu0 %2928
        %2930 = vrot.lane.b32.xlu0 %v854, 124
        %v2931 = vpop.permute.xlu0 %2930
        %2932 = vrot.lane.b32.xlu0 %v856, 124
        %v2933 = vpop.permute.xlu0 %2932
        %2934 = vrot.lane.b32.xlu0 %v858, 124
        %v2935 = vpop.permute.xlu0 %2934
        %2936 = vrot.lane.b32.xlu0 %v860, 124
        %v2937 = vpop.permute.xlu0 %2936
        %2938 = vrot.lane.b32.xlu0 %v862, 124
        %v2939 = vpop.permute.xlu0 %2938
        %2940 = vrot.lane.b32.xlu0 %v864, 124
        %v2941 = vpop.permute.xlu0 %2940
        %2942 = vrot.lane.b32.xlu0 %v866, 124
        %v2943 = vpop.permute.xlu0 %2942
        %2944 = vrot.lane.b32.xlu0 %v868, 124
        %v2945 = vpop.permute.xlu0 %2944
        %2946 = vrot.lane.b32.xlu0 %v870, 124
        %v2947 = vpop.permute.xlu0 %2946
        %2948 = vrot.lane.b32.xlu0 %v872, 124
        %v2949 = vpop.permute.xlu0 %2948
        %2950 = vrot.lane.b32.xlu0 %v874, 124
        %v2951 = vpop.permute.xlu0 %2950
        %2952 = vrot.lane.b32.xlu0 %v876, 124
        %v2953 = vpop.permute.xlu0 %2952
        %2954 = vrot.lane.b32.xlu0 %v878, 124
        %v2955 = vpop.permute.xlu0 %2954
        %2956 = vrot.lane.b32.xlu0 %v880, 124
        %v2957 = vpop.permute.xlu0 %2956
        %2958 = vrot.lane.b32.xlu0 %v882, 124
        %v2959 = vpop.permute.xlu0 %2958
        %2960 = vrot.lane.b32.xlu0 %v884, 124
        %v2961 = vpop.permute.xlu0 %2960
        %2962 = vrot.lane.b32.xlu0 %v886, 124
        %v2963 = vpop.permute.xlu0 %2962
        %2964 = vrot.lane.b32.xlu0 %v888, 124
        %v2965 = vpop.permute.xlu0 %2964
        %2966 = vrot.lane.b32.xlu0 %v890, 124
        %v2967 = vpop.permute.xlu0 %2966
        %2968 = vrot.lane.b32.xlu0 %v892, 124
        %v2969 = vpop.permute.xlu0 %2968
        %2970 = vrot.lane.b32.xlu0 %v894, 124
        %v2971 = vpop.permute.xlu0 %2970
        %2972 = vrot.lane.b32.xlu0 %v896, 124
        %v2973 = vpop.permute.xlu0 %2972
        %2974 = vrot.lane.b32.xlu0 %v898, 124
        %v2975 = vpop.permute.xlu0 %2974
        %v3008 = vadd.f32 %v2680, %v2913
        %v3009 = vadd.f32 %v2681, %v2915
        %v3010 = vadd.f32 %v2682, %v2917
        %v3011 = vadd.f32 %v2683, %v2919
        %v3012 = vadd.f32 %v2684, %v2921
        %v3013 = vadd.f32 %v2685, %v2923
        %v3014 = vadd.f32 %v2686, %v2925
        %v3015 = vadd.f32 %v2687, %v2927
        %v3016 = vadd.f32 %v2688, %v2929
        %v3017 = vadd.f32 %v2689, %v2931
        %v3018 = vadd.f32 %v2690, %v2933
        %v3019 = vadd.f32 %v2691, %v2935
        %v3020 = vadd.f32 %v2692, %v2937
        %v3021 = vadd.f32 %v2693, %v2939
        %v3022 = vadd.f32 %v2694, %v2941
        %v3023 = vadd.f32 %v2695, %v2943
        %v3024 = vadd.f32 %v2696, %v2945
        %v3025 = vadd.f32 %v2697, %v2947
        %v3026 = vadd.f32 %v2698, %v2949
        %v3027 = vadd.f32 %v2699, %v2951
        %v3028 = vadd.f32 %v2700, %v2953
        %v3029 = vadd.f32 %v2701, %v2955
        %v3030 = vadd.f32 %v2702, %v2957
        %v3031 = vadd.f32 %v2703, %v2959
        %v3032 = vadd.f32 %v2704, %v2961
        %v3033 = vadd.f32 %v2705, %v2963
        %v3034 = vadd.f32 %v2706, %v2965
        %v3035 = vadd.f32 %v2707, %v2967
        %v3036 = vadd.f32 %v2708, %v2969
        %v3037 = vadd.f32 %v2709, %v2971
        %v3038 = vadd.f32 %v2710, %v2973
        %v3039 = vadd.f32 %v2711, %v2975
        %3072 = vrot.lane.b32.xlu0 %v2617, 120
        %v3073 = vpop.permute.xlu0 %3072
        %3074 = vrot.lane.b32.xlu0 %v2619, 120
        %v3075 = vpop.permute.xlu0 %3074
        %3076 = vrot.lane.b32.xlu0 %v2621, 120
        %v3077 = vpop.permute.xlu0 %3076
        %3078 = vrot.lane.b32.xlu0 %v2623, 120
        %v3079 = vpop.permute.xlu0 %3078
        %3080 = vrot.lane.b32.xlu0 %v2625, 120
        %v3081 = vpop.permute.xlu0 %3080
        %3082 = vrot.lane.b32.xlu0 %v2627, 120
        %v3083 = vpop.permute.xlu0 %3082
        %3084 = vrot.lane.b32.xlu0 %v2629, 120
        %v3085 = vpop.permute.xlu0 %3084
        %3086 = vrot.lane.b32.xlu0 %v2631, 120
        %v3087 = vpop.permute.xlu0 %3086
        %3088 = vrot.lane.b32.xlu0 %v2633, 120
        %v3089 = vpop.permute.xlu0 %3088
        %3090 = vrot.lane.b32.xlu0 %v2635, 120
        %v3091 = vpop.permute.xlu0 %3090
        %3092 = vrot.lane.b32.xlu0 %v2637, 120
        %v3093 = vpop.permute.xlu0 %3092
        %3094 = vrot.lane.b32.xlu0 %v2639, 120
        %v3095 = vpop.permute.xlu0 %3094
        %3096 = vrot.lane.b32.xlu0 %v2641, 120
        %v3097 = vpop.permute.xlu0 %3096
        %3098 = vrot.lane.b32.xlu0 %v2643, 120
        %v3099 = vpop.permute.xlu0 %3098
        %3100 = vrot.lane.b32.xlu0 %v2645, 120
        %v3101 = vpop.permute.xlu0 %3100
        %3102 = vrot.lane.b32.xlu0 %v2647, 120
        %v3103 = vpop.permute.xlu0 %3102
        %3104 = vrot.lane.b32.xlu0 %v2649, 120
        %v3105 = vpop.permute.xlu0 %3104
        %3106 = vrot.lane.b32.xlu0 %v2651, 120
        %v3107 = vpop.permute.xlu0 %3106
        %3108 = vrot.lane.b32.xlu0 %v2653, 120
        %v3109 = vpop.permute.xlu0 %3108
        %3110 = vrot.lane.b32.xlu0 %v2655, 120
        %v3111 = vpop.permute.xlu0 %3110
        %3112 = vrot.lane.b32.xlu0 %v2657, 120
        %v3113 = vpop.permute.xlu0 %3112
        %3114 = vrot.lane.b32.xlu0 %v2659, 120
        %v3115 = vpop.permute.xlu0 %3114
        %3116 = vrot.lane.b32.xlu0 %v2661, 120
        %v3117 = vpop.permute.xlu0 %3116
        %3118 = vrot.lane.b32.xlu0 %v2663, 120
        %v3119 = vpop.permute.xlu0 %3118
        %3120 = vrot.lane.b32.xlu0 %v2665, 120
        %v3121 = vpop.permute.xlu0 %3120
        %3122 = vrot.lane.b32.xlu0 %v2667, 120
        %v3123 = vpop.permute.xlu0 %3122
        %3124 = vrot.lane.b32.xlu0 %v2669, 120
        %v3125 = vpop.permute.xlu0 %3124
        %3126 = vrot.lane.b32.xlu0 %v2671, 120
        %v3127 = vpop.permute.xlu0 %3126
        %3128 = vrot.lane.b32.xlu0 %v2673, 120
        %v3129 = vpop.permute.xlu0 %3128
        %3130 = vrot.lane.b32.xlu0 %v2675, 120
        %v3131 = vpop.permute.xlu0 %3130
        %3132 = vrot.lane.b32.xlu0 %v2677, 120
        %v3133 = vpop.permute.xlu0 %3132
        %3134 = vrot.lane.b32.xlu0 %v2679, 120
        %v3135 = vpop.permute.xlu0 %3134
        %v3168 = vmul.f32 %v3008, %v3073
        %v3169 = vmul.f32 %v3009, %v3075
        %v3170 = vmul.f32 %v3010, %v3077
        %v3171 = vmul.f32 %v3011, %v3079
        %v3172 = vmul.f32 %v3012, %v3081
        %v3173 = vmul.f32 %v3013, %v3083
        %v3174 = vmul.f32 %v3014, %v3085
        %v3175 = vmul.f32 %v3015, %v3087
        %v3176 = vmul.f32 %v3016, %v3089
        %v3177 = vmul.f32 %v3017, %v3091
        %v3178 = vmul.f32 %v3018, %v3093
        %v3179 = vmul.f32 %v3019, %v3095
        %v3180 = vmul.f32 %v3020, %v3097
        %v3181 = vmul.f32 %v3021, %v3099
        %v3182 = vmul.f32 %v3022, %v3101
        %v3183 = vmul.f32 %v3023, %v3103
        %v3184 = vmul.f32 %v3024, %v3105
        %v3185 = vmul.f32 %v3025, %v3107
        %v3186 = vmul.f32 %v3026, %v3109
        %v3187 = vmul.f32 %v3027, %v3111
        %v3188 = vmul.f32 %v3028, %v3113
        %v3189 = vmul.f32 %v3029, %v3115
        %v3190 = vmul.f32 %v3030, %v3117
        %v3191 = vmul.f32 %v3031, %v3119
        %v3192 = vmul.f32 %v3032, %v3121
        %v3193 = vmul.f32 %v3033, %v3123
        %v3194 = vmul.f32 %v3034, %v3125
        %v3195 = vmul.f32 %v3035, %v3127
        %v3196 = vmul.f32 %v3036, %v3129
        %v3197 = vmul.f32 %v3037, %v3131
        %v3198 = vmul.f32 %v3038, %v3133
        %v3199 = vmul.f32 %v3039, %v3135
        %v3200 = vsel %vm1867, %v3168, 0.0
        %v3201 = vsel %vm1867, %v3169, 0.0
        %v3202 = vadd.f32 %v3200, %v3201
        %v3203 = vsel %vm1867, %v3170, 0.0
        %v3204 = vadd.f32 %v3202, %v3203
        %v3205 = vsel %vm1867, %v3171, 0.0
        %v3206 = vadd.f32 %v3204, %v3205
        %v3207 = vsel %vm1867, %v3172, 0.0
        %v3208 = vadd.f32 %v3206, %v3207
        %v3209 = vsel %vm1867, %v3173, 0.0
        %v3210 = vadd.f32 %v3208, %v3209
        %v3211 = vsel %vm1867, %v3174, 0.0
        %v3212 = vadd.f32 %v3210, %v3211
        %v3213 = vsel %vm1867, %v3175, 0.0
        %v3214 = vadd.f32 %v3212, %v3213
        %v3215 = vsel %vm1867, %v3176, 0.0
        %v3216 = vadd.f32 %v3214, %v3215
        %v3217 = vsel %vm1867, %v3177, 0.0
        %v3218 = vadd.f32 %v3216, %v3217
        %v3219 = vsel %vm1867, %v3178, 0.0
        %v3220 = vadd.f32 %v3218, %v3219
        %v3221 = vsel %vm1867, %v3179, 0.0
        %v3222 = vadd.f32 %v3220, %v3221
        %v3223 = vsel %vm1867, %v3180, 0.0
        %v3224 = vadd.f32 %v3222, %v3223
        %v3225 = vsel %vm1867, %v3181, 0.0
        %v3226 = vadd.f32 %v3224, %v3225
        %v3227 = vsel %vm1867, %v3182, 0.0
        %v3228 = vadd.f32 %v3226, %v3227
        %v3229 = vsel %vm1867, %v3183, 0.0
        %v3230 = vadd.f32 %v3228, %v3229
        %v3231 = vsel %vm1867, %v3184, 0.0
        %v3232 = vadd.f32 %v3230, %v3231
        %v3233 = vsel %vm1867, %v3185, 0.0
        %v3234 = vadd.f32 %v3232, %v3233
        %v3235 = vsel %vm1867, %v3186, 0.0
        %v3236 = vadd.f32 %v3234, %v3235
        %v3237 = vsel %vm1867, %v3187, 0.0
        %v3238 = vadd.f32 %v3236, %v3237
        %v3239 = vsel %vm1867, %v3188, 0.0
        %v3240 = vadd.f32 %v3238, %v3239
        %v3241 = vsel %vm1867, %v3189, 0.0
        %v3242 = vadd.f32 %v3240, %v3241
        %v3243 = vsel %vm1867, %v3190, 0.0
        %v3244 = vadd.f32 %v3242, %v3243
        %v3245 = vsel %vm1867, %v3191, 0.0
        %v3246 = vadd.f32 %v3244, %v3245
        %v3247 = vsel %vm1867, %v3192, 0.0
        %v3248 = vadd.f32 %v3246, %v3247
        %v3249 = vsel %vm1867, %v3193, 0.0
        %v3250 = vadd.f32 %v3248, %v3249
        %v3251 = vsel %vm1867, %v3194, 0.0
        %v3252 = vadd.f32 %v3250, %v3251
        %v3253 = vsel %vm1867, %v3195, 0.0
        %v3254 = vadd.f32 %v3252, %v3253
        %v3255 = vsel %vm1867, %v3196, 0.0
        %v3256 = vadd.f32 %v3254, %v3255
        %v3257 = vsel %vm1867, %v3197, 0.0
        %v3258 = vadd.f32 %v3256, %v3257
        %v3259 = vsel %vm1867, %v3198, 0.0
        %v3260 = vadd.f32 %v3258, %v3259
        %v3261 = vsel %vm1867, %v3199, 0.0
        %v3262 = vadd.f32 %v3260, %v3261
        %3263 = vadd.xlane.f32.xlu0 %v3262
        %v3264 = vpop.xlane.xlu0 %3263
        %v3265 = vrot.slane %v3264, 4
        %v3266 = vadd.f32 %v3264, %v3265
        %v3267 = vrot.slane %v3266, 2
        %v3268 = vadd.f32 %v3266, %v3267
        %v3269 = vrot.slane %v3268, 1
        %v3270 = vadd.f32 %v3268, %v3269
        %s3271 = vtos %v3270
        %v3272 = vmul.f32 %v2680, %v3073
        %v3273 = vmul.f32 %v2681, %v3075
        %v3274 = vmul.f32 %v2682, %v3077
        %v3275 = vmul.f32 %v2683, %v3079
        %v3276 = vmul.f32 %v2684, %v3081
        %v3277 = vmul.f32 %v2685, %v3083
        %v3278 = vmul.f32 %v2686, %v3085
        %v3279 = vmul.f32 %v2687, %v3087
        %v3280 = vmul.f32 %v2688, %v3089
        %v3281 = vmul.f32 %v2689, %v3091
        %v3282 = vmul.f32 %v2690, %v3093
        %v3283 = vmul.f32 %v2691, %v3095
        %v3284 = vmul.f32 %v2692, %v3097
        %v3285 = vmul.f32 %v2693, %v3099
        %v3286 = vmul.f32 %v2694, %v3101
        %v3287 = vmul.f32 %v2695, %v3103
        %v3288 = vmul.f32 %v2696, %v3105
        %v3289 = vmul.f32 %v2697, %v3107
        %v3290 = vmul.f32 %v2698, %v3109
        %v3291 = vmul.f32 %v2699, %v3111
        %v3292 = vmul.f32 %v2700, %v3113
        %v3293 = vmul.f32 %v2701, %v3115
        %v3294 = vmul.f32 %v2702, %v3117
        %v3295 = vmul.f32 %v2703, %v3119
        %v3296 = vmul.f32 %v2704, %v3121
        %v3297 = vmul.f32 %v2705, %v3123
        %v3298 = vmul.f32 %v2706, %v3125
        %v3299 = vmul.f32 %v2707, %v3127
        %v3300 = vmul.f32 %v2708, %v3129
        %v3301 = vmul.f32 %v2709, %v3131
        %v3302 = vmul.f32 %v2710, %v3133
        %v3303 = vmul.f32 %v2711, %v3135
        %v3304 = vadd.f32 %v3272, 1.0
        %v3305 = vadd.f32 %v3273, 1.0
        %v3306 = vadd.f32 %v3274, 1.0
        %v3307 = vadd.f32 %v3275, 1.0
        %v3308 = vadd.f32 %v3276, 1.0
        %v3309 = vadd.f32 %v3277, 1.0
        %v3310 = vadd.f32 %v3278, 1.0
        %v3311 = vadd.f32 %v3279, 1.0
        %v3312 = vadd.f32 %v3280, 1.0
        %v3313 = vadd.f32 %v3281, 1.0
        %v3314 = vadd.f32 %v3282, 1.0
        %v3315 = vadd.f32 %v3283, 1.0
        %v3316 = vadd.f32 %v3284, 1.0
        %v3317 = vadd.f32 %v3285, 1.0
        %v3318 = vadd.f32 %v3286, 1.0
        %v3319 = vadd.f32 %v3287, 1.0
        %v3320 = vadd.f32 %v3288, 1.0
        %v3321 = vadd.f32 %v3289, 1.0
        %v3322 = vadd.f32 %v3290, 1.0
        %v3323 = vadd.f32 %v3291, 1.0
        %v3324 = vadd.f32 %v3292, 1.0
        %v3325 = vadd.f32 %v3293, 1.0
        %v3326 = vadd.f32 %v3294, 1.0
        %v3327 = vadd.f32 %v3295, 1.0
        %v3328 = vadd.f32 %v3296, 1.0
        %v3329 = vadd.f32 %v3297, 1.0
        %v3330 = vadd.f32 %v3298, 1.0
        %v3331 = vadd.f32 %v3299, 1.0
        %v3332 = vadd.f32 %v3300, 1.0
        %v3333 = vadd.f32 %v3301, 1.0
        %v3334 = vadd.f32 %v3302, 1.0
        %v3335 = vadd.f32 %v3303, 1.0
        %v3336 = vlog2.pop %v3304
        %v3337 = vmul.f32 %v3336, 0.6931472
        %v3338 = vlog2.pop %v3305
        %v3339 = vmul.f32 %v3338, 0.6931472
        %v3340 = vlog2.pop %v3306
        %v3341 = vmul.f32 %v3340, 0.6931472
        %v3342 = vlog2.pop %v3307
        %v3343 = vmul.f32 %v3342, 0.6931472
        %v3344 = vlog2.pop %v3308
        %v3345 = vmul.f32 %v3344, 0.6931472
        %v3346 = vlog2.pop %v3309
        %v3347 = vmul.f32 %v3346, 0.6931472
        %v3348 = vlog2.pop %v3310
        %v3349 = vmul.f32 %v3348, 0.6931472
        %v3350 = vlog2.pop %v3311
        %v3351 = vmul.f32 %v3350, 0.6931472
        %v3352 = vlog2.pop %v3312
        %v3353 = vmul.f32 %v3352, 0.6931472
        %v3354 = vlog2.pop %v3313
        %v3355 = vmul.f32 %v3354, 0.6931472
        %v3356 = vlog2.pop %v3314
        %v3357 = vmul.f32 %v3356, 0.6931472
        %v3358 = vlog2.pop %v3315
        %v3359 = vmul.f32 %v3358, 0.6931472
        %v3360 = vlog2.pop %v3316
        %v3361 = vmul.f32 %v3360, 0.6931472
        %v3362 = vlog2.pop %v3317
        %v3363 = vmul.f32 %v3362, 0.6931472
        %v3364 = vlog2.pop %v3318
        %v3365 = vmul.f32 %v3364, 0.6931472
        %v3366 = vlog2.pop %v3319
        %v3367 = vmul.f32 %v3366, 0.6931472
        %v3368 = vlog2.pop %v3320
        %v3369 = vmul.f32 %v3368, 0.6931472
        %v3370 = vlog2.pop %v3321
        %v3371 = vmul.f32 %v3370, 0.6931472
        %v3372 = vlog2.pop %v3322
        %v3373 = vmul.f32 %v3372, 0.6931472
        %v3374 = vlog2.pop %v3323
        %v3375 = vmul.f32 %v3374, 0.6931472
        %v3376 = vlog2.pop %v3324
        %v3377 = vmul.f32 %v3376, 0.6931472
        %v3378 = vlog2.pop %v3325
        %v3379 = vmul.f32 %v3378, 0.6931472
        %v3380 = vlog2.pop %v3326
        %v3381 = vmul.f32 %v3380, 0.6931472
        %v3382 = vlog2.pop %v3327
        %v3383 = vmul.f32 %v3382, 0.6931472
        %v3384 = vlog2.pop %v3328
        %v3385 = vmul.f32 %v3384, 0.6931472
        %v3386 = vlog2.pop %v3329
        %v3387 = vmul.f32 %v3386, 0.6931472
        %v3388 = vlog2.pop %v3330
        %v3389 = vmul.f32 %v3388, 0.6931472
        %v3390 = vlog2.pop %v3331
        %v3391 = vmul.f32 %v3390, 0.6931472
        %v3392 = vlog2.pop %v3332
        %v3393 = vmul.f32 %v3392, 0.6931472
        %v3394 = vlog2.pop %v3333
        %v3395 = vmul.f32 %v3394, 0.6931472
        %v3396 = vlog2.pop %v3334
        %v3397 = vmul.f32 %v3396, 0.6931472
        %v3398 = vlog2.pop %v3335
        %v3399 = vmul.f32 %v3398, 0.6931472
        %v3400 = vsel %vm1867, %v3337, 0.0
        %v3401 = vsel %vm1867, %v3339, 0.0
        %v3402 = vadd.f32 %v3400, %v3401
        %v3403 = vsel %vm1867, %v3341, 0.0
        %v3404 = vadd.f32 %v3402, %v3403
        %v3405 = vsel %vm1867, %v3343, 0.0
        %v3406 = vadd.f32 %v3404, %v3405
        %v3407 = vsel %vm1867, %v3345, 0.0
        %v3408 = vadd.f32 %v3406, %v3407
        %v3409 = vsel %vm1867, %v3347, 0.0
        %v3410 = vadd.f32 %v3408, %v3409
        %v3411 = vsel %vm1867, %v3349, 0.0
        %v3412 = vadd.f32 %v3410, %v3411
        %v3413 = vsel %vm1867, %v3351, 0.0
        %v3414 = vadd.f32 %v3412, %v3413
        %v3415 = vsel %vm1867, %v3353, 0.0
        %v3416 = vadd.f32 %v3414, %v3415
        %v3417 = vsel %vm1867, %v3355, 0.0
        %v3418 = vadd.f32 %v3416, %v3417
        %v3419 = vsel %vm1867, %v3357, 0.0
        %v3420 = vadd.f32 %v3418, %v3419
        %v3421 = vsel %vm1867, %v3359, 0.0
        %v3422 = vadd.f32 %v3420, %v3421
        %v3423 = vsel %vm1867, %v3361, 0.0
        %v3424 = vadd.f32 %v3422, %v3423
        %v3425 = vsel %vm1867, %v3363, 0.0
        %v3426 = vadd.f32 %v3424, %v3425
        %v3427 = vsel %vm1867, %v3365, 0.0
        %v3428 = vadd.f32 %v3426, %v3427
        %v3429 = vsel %vm1867, %v3367, 0.0
        %v3430 = vadd.f32 %v3428, %v3429
        %v3431 = vsel %vm1867, %v3369, 0.0
        %v3432 = vadd.f32 %v3430, %v3431
        %v3433 = vsel %vm1867, %v3371, 0.0
        %v3434 = vadd.f32 %v3432, %v3433
        %v3435 = vsel %vm1867, %v3373, 0.0
        %v3436 = vadd.f32 %v3434, %v3435
        %v3437 = vsel %vm1867, %v3375, 0.0
        %v3438 = vadd.f32 %v3436, %v3437
        %v3439 = vsel %vm1867, %v3377, 0.0
        %v3440 = vadd.f32 %v3438, %v3439
        %v3441 = vsel %vm1867, %v3379, 0.0
        %v3442 = vadd.f32 %v3440, %v3441
        %v3443 = vsel %vm1867, %v3381, 0.0
        %v3444 = vadd.f32 %v3442, %v3443
        %v3445 = vsel %vm1867, %v3383, 0.0
        %v3446 = vadd.f32 %v3444, %v3445
        %v3447 = vsel %vm1867, %v3385, 0.0
        %v3448 = vadd.f32 %v3446, %v3447
        %v3449 = vsel %vm1867, %v3387, 0.0
        %v3450 = vadd.f32 %v3448, %v3449
        %v3451 = vsel %vm1867, %v3389, 0.0
        %v3452 = vadd.f32 %v3450, %v3451
        %v3453 = vsel %vm1867, %v3391, 0.0
        %v3454 = vadd.f32 %v3452, %v3453
        %v3455 = vsel %vm1867, %v3393, 0.0
        %v3456 = vadd.f32 %v3454, %v3455
        %v3457 = vsel %vm1867, %v3395, 0.0
        %v3458 = vadd.f32 %v3456, %v3457
        %v3459 = vsel %vm1867, %v3397, 0.0
        %v3460 = vadd.f32 %v3458, %v3459
        %v3461 = vsel %vm1867, %v3399, 0.0
        %v3462 = vadd.f32 %v3460, %v3461
        %3463 = vadd.xlane.f32.xlu0 %v3462
        %v3464 = vpop.xlane.xlu0 %3463
        %v3465 = vrot.slane %v3464, 4
        %v3466 = vadd.f32 %v3464, %v3465
        %v3467 = vrot.slane %v3466, 2
        %v3468 = vadd.f32 %v3466, %v3467
        %v3469 = vrot.slane %v3468, 1
        %v3470 = vadd.f32 %v3468, %v3469
        %s3471 = vtos %v3470
        %3504 = vrot.lane.b32.xlu0 %v2392, 120
        %v3505 = vpop.permute.xlu0 %3504
        %3506 = vrot.lane.b32.xlu0 %v2393, 120
        %v3507 = vpop.permute.xlu0 %3506
        %3508 = vrot.lane.b32.xlu0 %v2394, 120
        %v3509 = vpop.permute.xlu0 %3508
        %3510 = vrot.lane.b32.xlu0 %v2395, 120
        %v3511 = vpop.permute.xlu0 %3510
        %3512 = vrot.lane.b32.xlu0 %v2396, 120
        %v3513 = vpop.permute.xlu0 %3512
        %3514 = vrot.lane.b32.xlu0 %v2397, 120
        %v3515 = vpop.permute.xlu0 %3514
        %3516 = vrot.lane.b32.xlu0 %v2398, 120
        %v3517 = vpop.permute.xlu0 %3516
        %3518 = vrot.lane.b32.xlu0 %v2399, 120
        %v3519 = vpop.permute.xlu0 %3518
        %3520 = vrot.lane.b32.xlu0 %v2400, 120
        %v3521 = vpop.permute.xlu0 %3520
        %3522 = vrot.lane.b32.xlu0 %v2401, 120
        %v3523 = vpop.permute.xlu0 %3522
        %3524 = vrot.lane.b32.xlu0 %v2402, 120
        %v3525 = vpop.permute.xlu0 %3524
        %3526 = vrot.lane.b32.xlu0 %v2403, 120
        %v3527 = vpop.permute.xlu0 %3526
        %3528 = vrot.lane.b32.xlu0 %v2404, 120
        %v3529 = vpop.permute.xlu0 %3528
        %3530 = vrot.lane.b32.xlu0 %v2405, 120
        %v3531 = vpop.permute.xlu0 %3530
        %3532 = vrot.lane.b32.xlu0 %v2406, 120
        %v3533 = vpop.permute.xlu0 %3532
        %3534 = vrot.lane.b32.xlu0 %v2407, 120
        %v3535 = vpop.permute.xlu0 %3534
        %3536 = vrot.lane.b32.xlu0 %v2408, 120
        %v3537 = vpop.permute.xlu0 %3536
        %3538 = vrot.lane.b32.xlu0 %v2409, 120
        %v3539 = vpop.permute.xlu0 %3538
        %3540 = vrot.lane.b32.xlu0 %v2410, 120
        %v3541 = vpop.permute.xlu0 %3540
        %3542 = vrot.lane.b32.xlu0 %v2411, 120
        %v3543 = vpop.permute.xlu0 %3542
        %3544 = vrot.lane.b32.xlu0 %v2412, 120
        %v3545 = vpop.permute.xlu0 %3544
        %3546 = vrot.lane.b32.xlu0 %v2413, 120
        %v3547 = vpop.permute.xlu0 %3546
        %3548 = vrot.lane.b32.xlu0 %v2414, 120
        %v3549 = vpop.permute.xlu0 %3548
        %3550 = vrot.lane.b32.xlu0 %v2415, 120
        %v3551 = vpop.permute.xlu0 %3550
        %3552 = vrot.lane.b32.xlu0 %v2416, 120
        %v3553 = vpop.permute.xlu0 %3552
        %3554 = vrot.lane.b32.xlu0 %v2417, 120
        %v3555 = vpop.permute.xlu0 %3554
        %3556 = vrot.lane.b32.xlu0 %v2418, 120
        %v3557 = vpop.permute.xlu0 %3556
        %3558 = vrot.lane.b32.xlu0 %v2419, 120
        %v3559 = vpop.permute.xlu0 %3558
        %3560 = vrot.lane.b32.xlu0 %v2420, 120
        %v3561 = vpop.permute.xlu0 %3560
        %3562 = vrot.lane.b32.xlu0 %v2421, 120
        %v3563 = vpop.permute.xlu0 %3562
        %3564 = vrot.lane.b32.xlu0 %v2422, 120
        %v3565 = vpop.permute.xlu0 %3564
        %3566 = vrot.lane.b32.xlu0 %v2423, 120
        %v3567 = vpop.permute.xlu0 %3566
        %v3600 = vsel %vm1867, %v3505, 0.0
        %v3601 = vsel %vm1867, %v3507, 0.0
        %v3602 = vadd.f32 %v3600, %v3601
        %v3603 = vsel %vm1867, %v3509, 0.0
        %v3604 = vadd.f32 %v3602, %v3603
        %v3605 = vsel %vm1867, %v3511, 0.0
        %v3606 = vadd.f32 %v3604, %v3605
        %v3607 = vsel %vm1867, %v3513, 0.0
        %v3608 = vadd.f32 %v3606, %v3607
        %v3609 = vsel %vm1867, %v3515, 0.0
        %v3610 = vadd.f32 %v3608, %v3609
        %v3611 = vsel %vm1867, %v3517, 0.0
        %v3612 = vadd.f32 %v3610, %v3611
        %v3613 = vsel %vm1867, %v3519, 0.0
        %v3614 = vadd.f32 %v3612, %v3613
        %v3615 = vsel %vm1867, %v3521, 0.0
        %v3616 = vadd.f32 %v3614, %v3615
        %v3617 = vsel %vm1867, %v3523, 0.0
        %v3618 = vadd.f32 %v3616, %v3617
        %v3619 = vsel %vm1867, %v3525, 0.0
        %v3620 = vadd.f32 %v3618, %v3619
        %v3621 = vsel %vm1867, %v3527, 0.0
        %v3622 = vadd.f32 %v3620, %v3621
        %v3623 = vsel %vm1867, %v3529, 0.0
        %v3624 = vadd.f32 %v3622, %v3623
        %v3625 = vsel %vm1867, %v3531, 0.0
        %v3626 = vadd.f32 %v3624, %v3625
        %v3627 = vsel %vm1867, %v3533, 0.0
        %v3628 = vadd.f32 %v3626, %v3627
        %v3629 = vsel %vm1867, %v3535, 0.0
        %v3630 = vadd.f32 %v3628, %v3629
        %v3631 = vsel %vm1867, %v3537, 0.0
        %v3632 = vadd.f32 %v3630, %v3631
        %v3633 = vsel %vm1867, %v3539, 0.0
        %v3634 = vadd.f32 %v3632, %v3633
        %v3635 = vsel %vm1867, %v3541, 0.0
        %v3636 = vadd.f32 %v3634, %v3635
        %v3637 = vsel %vm1867, %v3543, 0.0
        %v3638 = vadd.f32 %v3636, %v3637
        %v3639 = vsel %vm1867, %v3545, 0.0
        %v3640 = vadd.f32 %v3638, %v3639
        %v3641 = vsel %vm1867, %v3547, 0.0
        %v3642 = vadd.f32 %v3640, %v3641
        %v3643 = vsel %vm1867, %v3549, 0.0
        %v3644 = vadd.f32 %v3642, %v3643
        %v3645 = vsel %vm1867, %v3551, 0.0
        %v3646 = vadd.f32 %v3644, %v3645
        %v3647 = vsel %vm1867, %v3553, 0.0
        %v3648 = vadd.f32 %v3646, %v3647
        %v3649 = vsel %vm1867, %v3555, 0.0
        %v3650 = vadd.f32 %v3648, %v3649
        %v3651 = vsel %vm1867, %v3557, 0.0
        %v3652 = vadd.f32 %v3650, %v3651
        %v3653 = vsel %vm1867, %v3559, 0.0
        %v3654 = vadd.f32 %v3652, %v3653
        %v3655 = vsel %vm1867, %v3561, 0.0
        %v3656 = vadd.f32 %v3654, %v3655
        %v3657 = vsel %vm1867, %v3563, 0.0
        %v3658 = vadd.f32 %v3656, %v3657
        %v3659 = vsel %vm1867, %v3565, 0.0
        %v3660 = vadd.f32 %v3658, %v3659
        %v3661 = vsel %vm1867, %v3567, 0.0
        %v3662 = vadd.f32 %v3660, %v3661
        %3663 = vadd.xlane.f32.xlu0 %v3662
        %v3664 = vpop.xlane.xlu0 %3663
        %v3665 = vrot.slane %v3664, 4
        %v3666 = vadd.f32 %v3664, %v3665
        %v3667 = vrot.slane %v3666, 2
        %v3668 = vadd.f32 %v3666, %v3667
        %v3669 = vrot.slane %v3668, 1
        %v3670 = vadd.f32 %v3668, %v3669
        %s3671 = vtos %v3670
        %v3672 = vlaneseq
        %v3673 = vand.u32 %v3672, 127
        %vm3674 = vcmp.eq.s32.totalorder %v3673, 0
        %v3675 = vstv %s2911
        %v3676 = vsel %vm3674, %v3675, 0.0
        %v3677 = vadd.f32 %v3676, 0.0
        %vm3678 = vcmp.eq.s32.totalorder %v3673, 1
        %v3679 = vstv %s3271
        %v3680 = vsel %vm3678, %v3679, 0.0
        %v3681 = vadd.f32 %v3677, %v3680
        %vm3682 = vcmp.eq.s32.totalorder %v3673, 2
        %v3683 = vstv %s3471
        %v3684 = vsel %vm3682, %v3683, 0.0
        %v3685 = vadd.f32 %v3681, %v3684
        %vm3686 = vcmp.eq.s32.totalorder %v3673, 3
        %v3687 = vstv %s3671
        %v3688 = vsel %vm3686, %v3687, 0.0
        %v3689 = vadd.f32 %v3685, %v3688
        %v3690 = vld [vmem:[%s440] sm:$0x1]
        %v3691 = vadd.f32 %v3690, %v3689
        %3692 = vst [vmem:[%s440] sm:$0x1] %v3691
        %s3693 = sand.u32 %s214, 1
        %s3694 = scalar_lea.sflag [#allocation3], %s3693
        %s3695 = sand.u32 %s214, 1
        %s3696 = smul.addr %s3695, 256
        %s3697 = scalar_lea.vmem [#allocation2], %s3696
        %s3698 = sadd.s32 %s28, %s29
        %s3699 = smul.u32 32, %s3698
        %p3700 = scmp.lt.s32.totalorder %s3699, 63
        %s3701 = scalar_select %p3700, %s3699, 63
        %s3702 = smul.addr %s3701, 4
        %s3703 = scalar_lea.vmem %s8, %s3702
        %p3704 = scmp.lt.s32.totalorder %s28, 1
        %s3705 = scalar_select %p3704, %s28, 1
        %s3706 = scalar_lea.vmem %s9, %s3705
        // Predicated region
        $region53: #{training_step.4} parent=47 // pred_check
          %p3707 = pneg %p224
        $region54: #{training_step.4} parent=47 // pred_check_branch
          %3709 = sbr.rel (%p3707) target = $region56
        $region55: #{training_step.4} parent=47 // pred_region
          %s3710 = sadd.s32 %s28, %s29
          %s3711 = smul.u32 32, %s3710
          %s3713 = ssub.s32 4096, 4096
          %3714 = vsyncadd %s3694, %s3713
          %s3715 = smul.addr %s3711, 128
          %s3716 = scalar_lea.hbm %s7, %s3715
          %s3717 = sshll.u32 %s3697, 4
          %s3718 = int_to_ptr.vmem [resolvable:$true] %s3717
          %3723 = dma.vmem_to_hbm [thread:$0]  %s3718, 4096, %s3716, %s3694, 128, 128, 8
        $region56: #{training_step.4} parent=47 // pred_fallthru
          _
        // Predicated region
        $region57: #{training_step.4} parent=47 // pred_check
          %p3724 = pneg %p252
        $region58: #{training_step.4} parent=47 // pred_check_branch
          %3726 = sbr.rel (%p3724) target = $region60
        $region59: #{training_step.4} parent=47 // pred_region
          %s3727 = sadd.s32 %s28, %s29
          %s3728 = smul.u32 32, %s3727
        $region60: #{training_step.4} parent=47 // pred_fallthru
          _
        // Predicated region
        $region61: #{training_step.4} parent=47 // pred_check
          %p3729 = pneg %p278
        $region62: #{training_step.4} parent=47 // pred_check_branch
          %3731 = sbr.rel (%p3729) target = $region64
        $region63: #{training_step.4} parent=47 // pred_region
          _
        $region64: #{training_step.4} parent=47 // pred_fallthru
          _
      $region48: #{training_step.4} parent=5 // pred_fallthru
        _
      %p3732 = scmp.le.s32.totalorder 2, %s19
      // Predicated region
      $region65: #{training_step.4} parent=5 // pred_check
        %p3733 = pneg %p3732
      $region66: #{training_step.4} parent=5 // pred_check_branch
        %3735 = sbr.rel (%p3733) target = $region68
      $region67: #{training_step.4} parent=5 // pred_region
        %s3736 = ssub.s32 %s19, 2
        // Predicated region
        $region69: #{training_step.4} parent=67 // pred_check
          %p3737 = pneg %p230
        $region70: #{training_step.4} parent=67 // pred_check_branch
          %3739 = sbr.rel (%p3737) target = $region72
        $region71: #{training_step.4} parent=67 // pred_region
          %s3740 = sand.u32 %s215, 1
          %s3741 = scalar_lea.sflag [#allocation3], %s3740
          %s3742 = sand.u32 %s215, 1
          %s3743 = smul.addr %s3742, 256
          %s3744 = scalar_lea.vmem [#allocation2], %s3743
          %3745 = dma.done %s3741, 4096
        $region72: #{training_step.4} parent=67 // pred_fallthru
          _
        // Predicated region
        $region73: #{training_step.4} parent=67 // pred_check
          %p3746 = pneg %p258
        $region74: #{training_step.4} parent=67 // pred_check_branch
          %3748 = sbr.rel (%p3746) target = $region76
        $region75: #{training_step.4} parent=67 // pred_region
          %s3749 = sadd.s32 %s30, %s31
          %s3750 = smul.u32 32, %s3749
          %p3751 = scmp.lt.s32.totalorder %s3750, 63
          %s3752 = scalar_select %p3751, %s3750, 63
          %s3753 = smul.addr %s3752, 4
          %s3754 = scalar_lea.vmem %s8, %s3753
        $region76: #{training_step.4} parent=67 // pred_fallthru
          _
        // Predicated region
        $region77: #{training_step.4} parent=67 // pred_check
          %p3755 = pneg %p284
        $region78: #{training_step.4} parent=67 // pred_check_branch
          %3757 = sbr.rel (%p3755) target = $region80
        $region79: #{training_step.4} parent=67 // pred_region
          %p3758 = scmp.lt.s32.totalorder %s30, 1
          %s3759 = scalar_select %p3758, %s30, 1
          %s3760 = scalar_lea.vmem %s9, %s3759
        $region80: #{training_step.4} parent=67 // pred_fallthru
          _
      $region68: #{training_step.4} parent=5 // pred_fallthru
        _
    $region6: #{training_step.4} parent=1 // loop_footer
      %s23 = sadd.s32 1, %s19
    $region7: #{training_step.4} parent=1 // loop_footer_branch
      %18 = sbr.rel target = $region3
    $region8: #{training_step.4} parent=1 // loop_exit
      _
    %3761 = vsyncpa [#allocation3], 1
    %s3762 = scalar_lea.sflag [#allocation3], 1
    %3763 = vsyncpa %s3762, 1

// kernel: training_step.5
$region0: #{training_step.5}
  #allocation0 [shape = 'u32[]', space=smem, size = 0x4, offset = 0x4, fixed_abs, tag = 'smem constant byte address 0x4 - core index']
  #allocation1 [shape = 'u32[144,128]{1,0:T(1,128)}', space=vmem, size = 0x12000, scoped, tag = 'internal scratch']
  %s0 = inlined_call_operand.vmem [shape: bf16[2,18,72], index: 0, kind: input, shape index: {}]
  %s1 = inlined_call_operand.vmem [shape: bf16[3,72,64], index: 1, kind: input, shape index: {}]
  %s2 = inlined_call_operand.vmem [shape: f32[1,64], index: 2, kind: input, shape index: {}]
  %s3 = inlined_call_operand.vmem [shape: f32[2,16,64], index: 3, kind: input, shape index: {}]
  %s4 = inlined_call_operand.hbm [shape: f32[2,16,64], index: 4, kind: output, shape index: {0}]
  %s5 = inlined_call_operand.vmem [shape: f32[2,1,128], index: 5, kind: output, shape index: {1}]
  %6 = xla_tuple %s4, %s5
  %s7 = sld [smem:[#allocation0]]
  $region57: #{training_step.5} parent=0
    _
  %s9 = ssub.s32 1, %s7
  %s10 = scalar_select 0, %s9, %s7
  $region1: #{training_step.5} parent=0
    #allocation2 [shape = 'u8[16384]{0}', space=vmem, size = 0x4000, scoped, tag = 'output window, operand 0']
    #allocation3 [shape = 's32[2]{0}', space=sflag, size = 0x8, scoped, tag = 'scoped memory for training_step.5']
    %11 = vsyncpa [#allocation3], 0
    %s12 = scalar_lea.sflag [#allocation3], 1
    %13 = vsyncpa %s12, 0
    loop: start=0, step=1, limit=4
    $region2: #{training_step.5} parent=1 // loop_pre_header
      _
    $region3: #{training_step.5} parent=1 // loop_header
      %s15 = sphi 0, %s19
      %p16 = scmp.ge.s32.totalorder %s15, 4
      %s25 = sphi 0, %s27
      %s28 = sphi 0, %s25
      %s29 = sphi 0, %s28
      %s45 = sphi 0, %s29
      %s49 = sphi 0, %s49
      %s51 = sphi 0, %s49
      %s52 = sphi 0, %s51
      %s66 = sphi 0, %s52
      %s70 = sphi 0, %s70
      %s72 = sphi 0, %s70
      %s73 = sphi 0, %s72
      %s87 = sphi 0, %s73
      %s93 = sphi 0, %s95
      %s96 = sphi 0, %s93
      %s97 = sphi 0, %s96
      %s113 = sphi 0, %s97
      %s119 = sphi 0, %s121
      %s122 = sphi 0, %s119
      %s123 = sphi 0, %s122
      %s139 = sphi 0, %s123
      %s145 = sphi 0, %s147
      %s148 = sphi 0, %s145
      %s149 = sphi 0, %s148
      %s165 = sphi 0, %s149
    $region4: #{training_step.5} parent=1 // loop_header_branch
      %18 = sbr.rel (%p16) target = $region8
    $region5: #{training_step.5} parent=1 // loop_body
      %s20 = ssub.s32 %s15, 1
      %s21 = ssub.s32 %s15, 2
      %s22 = sadd.s32 %s15, 1
      %s23 = ssub.s32 %s15, %s22
      %p24 = scmp.eq.s32.totalorder %s23, 0
      %s26 = sadd.s32 %s25, 1
      %s27 = scalar_select %p24, %s25, %s26
      %p30 = pneg %p24
      %p31 = scmp.eq.s32.totalorder %s15, 1
      %p32 = por %p30, %p31
      %p33 = scmp.ne.s32.totalorder %s25, %s28
      %p34 = scmp.eq.s32.totalorder %s15, 0
      %p35 = por %p33, %p34
      %p36 = scmp.ne.s32.totalorder %s25, %s28
      %p37 = scmp.eq.s32.totalorder %s20, 1
      %p38 = por %p36, %p37
      %p39 = scmp.ne.s32.totalorder %s28, %s29
      %p40 = scmp.eq.s32.totalorder %s20, 0
      %p41 = por %p39, %p40
      %p42 = scmp.ne.s32.totalorder %s28, %s29
      %p43 = scmp.eq.s32.totalorder %s21, 1
      %p44 = por %p42, %p43
      %p46 = scmp.ne.s32.totalorder %s29, %s45
      %p47 = scmp.eq.s32.totalorder %s21, 0
      %p48 = por %p46, %p47
      %s50 = sadd.s32 %s49, 1
      %p53 = scmp.eq.s32.totalorder %s15, 1
      %p54 = scmp.ne.s32.totalorder %s49, %s51
      %p55 = scmp.eq.s32.totalorder %s15, 0
      %p56 = por %p54, %p55
      %p57 = scmp.ne.s32.totalorder %s49, %s51
      %p58 = scmp.eq.s32.totalorder %s20, 1
      %p59 = por %p57, %p58
      %p60 = scmp.ne.s32.totalorder %s51, %s52
      %p61 = scmp.eq.s32.totalorder %s20, 0
      %p62 = por %p60, %p61
      %p63 = scmp.ne.s32.totalorder %s51, %s52
      %p64 = scmp.eq.s32.totalorder %s21, 1
      %p65 = por %p63, %p64
      %p67 = scmp.ne.s32.totalorder %s52, %s66
      %p68 = scmp.eq.s32.totalorder %s21, 0
      %p69 = por %p67, %p68
      %s71 = sadd.s32 %s70, 1
      %p74 = scmp.eq.s32.totalorder %s15, 1
      %p75 = scmp.ne.s32.totalorder %s70, %s72
      %p76 = scmp.eq.s32.totalorder %s15, 0
      %p77 = por %p75, %p76
      %p78 = scmp.ne.s32.totalorder %s70, %s72
      %p79 = scmp.eq.s32.totalorder %s20, 1
      %p80 = por %p78, %p79
      %p81 = scmp.ne.s32.totalorder %s72, %s73
      %p82 = scmp.eq.s32.totalorder %s20, 0
      %p83 = por %p81, %p82
      %p84 = scmp.ne.s32.totalorder %s72, %s73
      %p85 = scmp.eq.s32.totalorder %s21, 1
      %p86 = por %p84, %p85
      %p88 = scmp.ne.s32.totalorder %s73, %s87
      %p89 = scmp.eq.s32.totalorder %s21, 0
      %p90 = por %p88, %p89
      %s91 = ssub.s32 %s15, %s22
      %p92 = scmp.eq.s32.totalorder %s91, 0
      %s94 = sadd.s32 %s93, 1
      %s95 = scalar_select %p92, %s93, %s94
      %p98 = pneg %p92
      %p99 = scmp.eq.s32.totalorder %s15, 1
      %p100 = por %p98, %p99
      %p101 = scmp.ne.s32.totalorder %s93, %s96
      %p102 = scmp.eq.s32.totalorder %s15, 0
      %p103 = por %p101, %p102
      %p104 = scmp.ne.s32.totalorder %s93, %s96
      %p105 = scmp.eq.s32.totalorder %s20, 1
      %p106 = por %p104, %p105
      %p107 = scmp.ne.s32.totalorder %s96, %s97
      %p108 = scmp.eq.s32.totalorder %s20, 0
      %p109 = por %p107, %p108
      %p110 = scmp.ne.s32.totalorder %s96, %s97
      %p111 = scmp.eq.s32.totalorder %s21, 1
      %p112 = por %p110, %p111
      %p114 = scmp.ne.s32.totalorder %s97, %s113
      %p115 = scmp.eq.s32.totalorder %s21, 0
      %p116 = por %p114, %p115
      %s117 = ssub.s32 %s15, %s22
      %p118 = scmp.eq.s32.totalorder %s117, 0
      %s120 = sadd.s32 %s119, 1
      %s121 = scalar_select %p118, %s119, %s120
      %p124 = pneg %p118
      %p125 = scmp.eq.s32.totalorder %s15, 1
      %p126 = por %p124, %p125
      %p127 = scmp.ne.s32.totalorder %s119, %s122
      %p128 = scmp.eq.s32.totalorder %s15, 0
      %p129 = por %p127, %p128
      %p130 = scmp.ne.s32.totalorder %s119, %s122
      %p131 = scmp.eq.s32.totalorder %s20, 1
      %p132 = por %p130, %p131
      %p133 = scmp.ne.s32.totalorder %s122, %s123
      %p134 = scmp.eq.s32.totalorder %s20, 0
      %p135 = por %p133, %p134
      %p136 = scmp.ne.s32.totalorder %s122, %s123
      %p137 = scmp.eq.s32.totalorder %s21, 1
      %p138 = por %p136, %p137
      %p140 = scmp.ne.s32.totalorder %s123, %s139
      %p141 = scmp.eq.s32.totalorder %s21, 0
      %p142 = por %p140, %p141
      %s143 = ssub.s32 %s15, %s22
      %p144 = scmp.eq.s32.totalorder %s143, 0
      %s146 = sadd.s32 %s145, 1
      %s147 = scalar_select %p144, %s145, %s146
      %p150 = pneg %p144
      %p151 = scmp.eq.s32.totalorder %s15, 1
      %p152 = por %p150, %p151
      %p153 = scmp.ne.s32.totalorder %s145, %s148
      %p154 = scmp.eq.s32.totalorder %s15, 0
      %p155 = por %p153, %p154
      %p156 = scmp.ne.s32.totalorder %s145, %s148
      %p157 = scmp.eq.s32.totalorder %s20, 1
      %p158 = por %p156, %p157
      %p159 = scmp.ne.s32.totalorder %s148, %s149
      %p160 = scmp.eq.s32.totalorder %s20, 0
      %p161 = por %p159, %p160
      %p162 = scmp.ne.s32.totalorder %s148, %s149
      %p163 = scmp.eq.s32.totalorder %s21, 1
      %p164 = por %p162, %p163
      %p166 = scmp.ne.s32.totalorder %s149, %s165
      %p167 = scmp.eq.s32.totalorder %s21, 0
      %p168 = por %p166, %p167
      %p169 = scmp.le.s32.totalorder 1, %s15
      %p170 = scmp.lt.s32.totalorder %s15, 3
      %p171 = pnand %p169, %p170
      %p172 = pneg %p171
      // Predicated region
      $region9: #{training_step.5} parent=5 // pred_check
        _
      $region10: #{training_step.5} parent=5 // pred_check_branch
        %174 = sbr.rel (%p171) target = $region12
      $region11: #{training_step.5} parent=5 // pred_region
        %s175 = ssub.s32 %s15, 1
        // Predicated region
        $region13: #{training_step.5} parent=11 // pred_check
          %p176 = pneg %p62
        $region14: #{training_step.5} parent=11 // pred_check_branch
          %178 = sbr.rel (%p176) target = $region16
        $region15: #{training_step.5} parent=11 // pred_region
          _
        $region16: #{training_step.5} parent=11 // pred_fallthru
          _
        // Predicated region
        $region17: #{training_step.5} parent=11 // pred_check
          %p179 = pneg %p83
        $region18: #{training_step.5} parent=11 // pred_check_branch
          %181 = sbr.rel (%p179) target = $region20
        $region19: #{training_step.5} parent=11 // pred_region
          _
        $region20: #{training_step.5} parent=11 // pred_fallthru
          _
      $region12: #{training_step.5} parent=5 // pred_fallthru
        _
      %p182 = scmp.lt.s32.totalorder %s15, 2
      // Predicated region
      $region21: #{training_step.5} parent=5 // pred_check
        %p183 = pneg %p182
      $region22: #{training_step.5} parent=5 // pred_check_branch
        %185 = sbr.rel (%p183) target = $region24
      $region23: #{training_step.5} parent=5 // pred_region
        // Predicated region
        $region25: #{training_step.5} parent=23 // pred_check
          %p186 = pneg %p35
        $region26: #{training_step.5} parent=23 // pred_check_branch
          %188 = sbr.rel (%p186) target = $region28
        $region27: #{training_step.5} parent=23 // pred_region
          %p189 = scmp.lt.s32.totalorder %s15, 1
          %s190 = scalar_select %p189, %s15, 1
          %s191 = smul.addr %s190, 3
          %s192 = smul.addr %s191, 4
          %s193 = scalar_lea.vmem %s0, %s192
        $region28: #{training_step.5} parent=23 // pred_fallthru
          _
        // Predicated region
        $region29: #{training_step.5} parent=23 // pred_check
          %p194 = pneg %p103
        $region30: #{training_step.5} parent=23 // pred_check_branch
          %196 = sbr.rel (%p194) target = $region32
        $region31: #{training_step.5} parent=23 // pred_region
          %p197 = scmp.lt.s32.totalorder %s15, 1
          %s198 = scalar_select %p197, %s15, 1
          %s199 = smul.addr %s198, 2
          %s200 = smul.addr %s199, 8
          %s201 = scalar_lea.vmem %s3, %s200
        $region32: #{training_step.5} parent=23 // pred_fallthru
          _
      $region24: #{training_step.5} parent=5 // pred_fallthru
        _
      %p202 = scmp.le.s32.totalorder 1, %s15
      %p203 = scmp.lt.s32.totalorder %s15, 3
      %p204 = pnand %p202, %p203
      %p205 = pneg %p204
      // Predicated region
      $region33: #{training_step.5} parent=5 // pred_check
        _
      $region34: #{training_step.5} parent=5 // pred_check_branch
        %207 = sbr.rel (%p204) target = $region36
      $region35: #{training_step.5} parent=5 // pred_region
        %s208 = ssub.s32 %s15, 1
        %p209 = scmp.lt.s32.totalorder %s20, 1
        %s210 = scalar_select %p209, %s20, 1
        %s211 = smul.addr %s210, 3
        %s212 = smul.addr %s211, 4
        %s213 = scalar_lea.vmem %s0, %s212
        %p214 = pneg %p41
        %p215 = pneg %p38
        %p216 = pneg %p62
        %p217 = pneg %p59
        %p218 = pneg %p83
        %p219 = pneg %p80
        %p220 = scmp.lt.s32.totalorder %s20, 1
        %s221 = scalar_select %p220, %s20, 1
        %s222 = smul.addr %s221, 2
        %s223 = smul.addr %s222, 8
        %s224 = scalar_lea.vmem %s3, %s223
        %p225 = pneg %p109
        %p226 = pneg %p106
        %p227 = pneg %p135
        %p228 = pneg %p132
        %s229 = sand.u32 %s122, 1
        %s230 = scalar_lea.sflag [#allocation3], %s229
        %s231 = sand.u32 %s122, 1
        %s232 = smul.addr %s231, 16
        %s233 = scalar_lea.vmem [#allocation2], %s232
        %p234 = pneg %p161
        %p235 = pneg %p158
        %p236 = scmp.lt.s32.totalorder %s20, 1
        %s237 = scalar_select %p236, %s20, 1
        %s238 = scalar_lea.vmem %s5, %s237
        %p239 = scmp.lt.s32.totalorder %s20, 1
        %s240 = scalar_select %p239, %s20, 1
        %s241 = smul.addr %s240, 3
        %s242 = smul.addr %s241, 4
        %s243 = scalar_lea.vmem %s0, %s242
        %p244 = scmp.lt.s32.totalorder %s20, 1
        %s245 = scalar_select %p244, %s20, 1
        %s246 = smul.addr %s245, 2
        %s247 = smul.addr %s246, 8
        %s248 = scalar_lea.vmem %s3, %s247
        %p249 = scmp.lt.s32.totalorder %s20, 1
        %s250 = scalar_select %p249, %s20, 1
        %s251 = scalar_lea.vmem %s5, %s250
        %v253 = vld [vmem:[%s243] sm:$0xf]
        %v254 = vld [vmem:[%s243 + $0x4] sm:$0xf]
        %v255 = vld [vmem:[%s1] sm:$0xf]
        %v256 = vld [vmem:[%s1 + $0x4] sm:$0xf]
        %v257 = vld [vmem:[%s1 + $0x8] sm:$0xf]
        %v258 = vld [vmem:[%s1 + $0xc] sm:$0xf]
        %v259 = vld [vmem:[%s1 + $0x10] sm:$0xf]
        %v260 = vld [vmem:[%s1 + $0x14] sm:$0xf]
        %v261 = vld [vmem:[%s1 + $0x18] sm:$0xf]
        %v262 = vld [vmem:[%s1 + $0x1c] sm:$0xf]
        %v263 = vld [vmem:[%s1 + $0x20] sm:$0xf]
        %v264 = vld [vmem:[%s243 + $0x8] sm:$0x1]
        %s265 = scalar_lea.vmem %s1, 36
        %v266 = vld [vmem:[%s265] sm:$0xf]
        %v267 = vld [vmem:[%s265 + $0x4] sm:$0xf]
        %v268 = vld [vmem:[%s265 + $0x8] sm:$0xf]
        %v269 = vld [vmem:[%s265 + $0xc] sm:$0xf]
        %v270 = vld [vmem:[%s265 + $0x10] sm:$0xf]
        %v271 = vld [vmem:[%s265 + $0x14] sm:$0xf]
        %v272 = vld [vmem:[%s265 + $0x18] sm:$0xf]
        %v273 = vld [vmem:[%s265 + $0x1c] sm:$0xf]
        %v274 = vld [vmem:[%s265 + $0x20] sm:$0xf]
        %v278 = vunpack.c.l.b16 %v253
        %v279 = vunpack.c.l.b16 %v254
        %v280 = vunpack.c.l.b16 %v264
        %v281 = vpack.c.b16 %v279, %v278
        %v282 = vpack.c.b16 %v280, %v280
        %vm283 = vsmask.f32 7424
        %v285 = vshrl.u32 %v281, 16
        %v287 = vshll.u32 %v281, 16
        %v289 = vrot.slane %v287, 1
        %v290 = vor.u32 %v285, %v289
        %v292 = vshll.u32 %v282, 16
        %v294 = vrot.slane %v292, 1
        %v295 = vsel %vm283, %v290, %v294
        %v305 = vunpack.c.l.b16 %v266
        %v306 = vunpack.c.l.b16 %v267
        %v307 = vunpack.c.l.b16 %v268
        %v308 = vunpack.c.l.b16 %v269
        %v309 = vunpack.c.l.b16 %v270
        %v310 = vunpack.c.l.b16 %v271
        %v311 = vunpack.c.l.b16 %v272
        %v312 = vunpack.c.l.b16 %v273
        %v313 = vunpack.c.l.b16 %v274
        %v314 = vpack.c.b16 %v306, %v305
        %v315 = vpack.c.b16 %v308, %v307
        %v316 = vpack.c.b16 %v310, %v309
        %v317 = vpack.c.b16 %v312, %v311
        %v318 = vpack.c.b16 %v313, %v313
        %vm323 = vcmask 588800
        %v325 = vsel %vm323, %v295, 0
        %vm327 = vcmask 1043456
        %v329 = vsel %vm327, %v318, 0
        %331 = vmatprep.subr.bf16.mxu0 0
        %332 = vmatpush1.bf16.msra.mxu0 %v314
        %333 = vmatprep.subr.bf16.mxu0 0
        %334 = vmatpush1.bf16.msra.mxu0 %v315
        %335 = vmatprep.subr.bf16.mxu0 0
        %336 = vmatpush1.bf16.msra.mxu0 %v316
        %337 = vmatprep.subr.bf16.mxu0 0
        %338 = vmatpush1.bf16.msra.mxu0 %v317
        %339 = vmatprep.subr.bf16.mxu0 0
        %340 = vmatpush1.bf16.msra.mxu0 %v329
        %341 = vmatprep.subr.bf16.mxu0 0
        %342 = vmatpush1.bf16.msra.mxu0 0
        %343 = vmatprep.subr.bf16.mxu0 0
        %344 = vmatpush1.bf16.msra.mxu0 0
        %345 = vmatprep.subr.bf16.mxu0 0
        %346 = vmatpush1.bf16.msra.mxu0 0
        %347 = vmatprep.subr.bf16.mxu0 0
        %348 = vmatpush1.bf16.msra.mxu0 0
        %349 = vmatprep.subr.bf16.mxu0 0
        %350 = vmatpush1.bf16.msra.mxu0 0
        %351 = vmatprep.subr.bf16.mxu0 0
        %352 = vmatpush1.bf16.msra.mxu0 0
        %353 = vmatprep.subr.bf16.mxu0 0
        %354 = vmatpush1.bf16.msra.mxu0 0
        %355 = vmatprep.subr.bf16.mxu0 0
        %356 = vmatpush1.bf16.msra.mxu0 0
        %357 = vmatprep.subr.bf16.mxu0 0
        %358 = vmatpush1.bf16.msra.mxu0 0
        %359 = vmatprep.subr.bf16.mxu0 0
        %360 = vmatpush1.bf16.msra.mxu0 0
        %361 = vmatprep.subr.bf16.mxu0 0
        %362 = vmatpush1.bf16.msra.mxu0 0
        %363 = vmatprep.mubr.bf16.mxu0 0
        %364 = vmatmul.mubr.bf16.gmra.mrb[0].mxu0 %v325
        %v365 = vpop.f32.mrb[0].mxu0
        %v366 = vadd.f32 0.0, %v365
        %v367 = vpop.f32.mrb[0].mxu0
        %v368 = vpop.f32.mrb[0].mxu0
        %v369 = vadd.f32 0.0, %v368
        %v370 = vpop.f32.mrb[0].mxu0
        %371 = vdwg.mxu0
        %v381 = vunpack.c.l.b16 %v255
        %v382 = vunpack.c.l.b16 %v256
        %v383 = vunpack.c.l.b16 %v257
        %v384 = vunpack.c.l.b16 %v258
        %v385 = vunpack.c.l.b16 %v259
        %v386 = vunpack.c.l.b16 %v260
        %v387 = vunpack.c.l.b16 %v261
        %v388 = vunpack.c.l.b16 %v262
        %v389 = vunpack.c.l.b16 %v263
        %v390 = vpack.c.b16 %v382, %v381
        %v391 = vpack.c.b16 %v384, %v383
        %v392 = vpack.c.b16 %v386, %v385
        %v393 = vpack.c.b16 %v388, %v387
        %v394 = vpack.c.b16 %v389, %v389
        %v399 = vsel %vm323, %v281, 0
        %v402 = vsel %vm327, %v394, 0
        %404 = vmatprep.subr.bf16.mxu0 0
        %405 = vmatpush1.bf16.msra.mxu0 %v390
        %406 = vmatprep.subr.bf16.mxu0 0
        %407 = vmatpush1.bf16.msra.mxu0 %v391
        %408 = vmatprep.subr.bf16.mxu0 0
        %409 = vmatpush1.bf16.msra.mxu0 %v392
        %410 = vmatprep.subr.bf16.mxu0 0
        %411 = vmatpush1.bf16.msra.mxu0 %v393
        %412 = vmatprep.subr.bf16.mxu0 0
        %413 = vmatpush1.bf16.msra.mxu0 %v402
        %414 = vmatprep.subr.bf16.mxu0 0
        %415 = vmatpush1.bf16.msra.mxu0 0
        %416 = vmatprep.subr.bf16.mxu0 0
        %417 = vmatpush1.bf16.msra.mxu0 0
        %418 = vmatprep.subr.bf16.mxu0 0
        %419 = vmatpush1.bf16.msra.mxu0 0
        %420 = vmatprep.subr.bf16.mxu0 0
        %421 = vmatpush1.bf16.msra.mxu0 0
        %422 = vmatprep.subr.bf16.mxu0 0
        %423 = vmatpush1.bf16.msra.mxu0 0
        %424 = vmatprep.subr.bf16.mxu0 0
        %425 = vmatpush1.bf16.msra.mxu0 0
        %426 = vmatprep.subr.bf16.mxu0 0
        %427 = vmatpush1.bf16.msra.mxu0 0
        %428 = vmatprep.subr.bf16.mxu0 0
        %429 = vmatpush1.bf16.msra.mxu0 0
        %430 = vmatprep.subr.bf16.mxu0 0
        %431 = vmatpush1.bf16.msra.mxu0 0
        %432 = vmatprep.subr.bf16.mxu0 0
        %433 = vmatpush1.bf16.msra.mxu0 0
        %434 = vmatprep.subr.bf16.mxu0 0
        %435 = vmatpush1.bf16.msra.mxu0 0
        %436 = vmatprep.mubr.bf16.mxu0 0
        %437 = vmatmul.mubr.bf16.gmra.mrb[0].mxu0 %v399
        %v438 = vpop.f32.mrb[0].mxu0
        %v439 = vadd.f32 %v366, %v438
        %v440 = vpop.f32.mrb[0].mxu0
        %v441 = vpop.f32.mrb[0].mxu0
        %v442 = vadd.f32 %v369, %v441
        %v443 = vpop.f32.mrb[0].mxu0
        %444 = vdwg.mxu0
        %v445 = vld [vmem:[%s243] sm:$0xe]
        %s446 = scalar_lea.vmem %s1, 72
        %v447 = vld [vmem:[%s446] sm:$0xf]
        %v448 = vld [vmem:[%s446 + $0x4] sm:$0xf]
        %v449 = vld [vmem:[%s446 + $0x8] sm:$0xf]
        %v450 = vld [vmem:[%s446 + $0xc] sm:$0xf]
        %v451 = vld [vmem:[%s446 + $0x10] sm:$0xf]
        %v452 = vld [vmem:[%s446 + $0x14] sm:$0xf]
        %v453 = vld [vmem:[%s446 + $0x18] sm:$0xf]
        %v454 = vld [vmem:[%s446 + $0x1c] sm:$0xf]
        %v455 = vld [vmem:[%s446 + $0x20] sm:$0xf]
        %v457 = vunpack.c.l.b16 %v445
        %v458 = vpack.c.b16 %v279, %v457
        %vm459 = vcmask 1046528
        %v460 = vrot.slane %v458, 1
        %v461 = vrot.slane %v282, 1
        %v462 = vsel %vm459, %v460, %v461
        %v472 = vunpack.c.l.b16 %v447
        %v473 = vunpack.c.l.b16 %v448
        %v474 = vunpack.c.l.b16 %v449
        %v475 = vunpack.c.l.b16 %v450
        %v476 = vunpack.c.l.b16 %v451
        %v477 = vunpack.c.l.b16 %v452
        %v478 = vunpack.c.l.b16 %v453
        %v479 = vunpack.c.l.b16 %v454
        %v480 = vunpack.c.l.b16 %v455
        %v481 = vpack.c.b16 %v473, %v472
        %v482 = vpack.c.b16 %v475, %v474
        %v483 = vpack.c.b16 %v477, %v476
        %v484 = vpack.c.b16 %v479, %v478
        %v485 = vpack.c.b16 %v480, %v480
        %v491 = vsel %vm323, %v462, 0
        %v494 = vsel %vm327, %v485, 0
        %496 = vmatprep.subr.bf16.mxu0 0
        %497 = vmatpush1.bf16.msra.mxu0 %v481
        %498 = vmatprep.subr.bf16.mxu0 0
        %499 = vmatpush1.bf16.msra.mxu0 %v482
        %500 = vmatprep.subr.bf16.mxu0 0
        %501 = vmatpush1.bf16.msra.mxu0 %v483
        %502 = vmatprep.subr.bf16.mxu0 0
        %503 = vmatpush1.bf16.msra.mxu0 %v484
        %504 = vmatprep.subr.bf16.mxu0 0
        %505 = vmatpush1.bf16.msra.mxu0 %v494
        %506 = vmatprep.subr.bf16.mxu0 0
        %507 = vmatpush1.bf16.msra.mxu0 0
        %508 = vmatprep.subr.bf16.mxu0 0
        %509 = vmatpush1.bf16.msra.mxu0 0
        %510 = vmatprep.subr.bf16.mxu0 0
        %511 = vmatpush1.bf16.msra.mxu0 0
        %512 = vmatprep.subr.bf16.mxu0 0
        %513 = vmatpush1.bf16.msra.mxu0 0
        %514 = vmatprep.subr.bf16.mxu0 0
        %515 = vmatpush1.bf16.msra.mxu0 0
        %516 = vmatprep.subr.bf16.mxu0 0
        %517 = vmatpush1.bf16.msra.mxu0 0
        %518 = vmatprep.subr.bf16.mxu0 0
        %519 = vmatpush1.bf16.msra.mxu0 0
        %520 = vmatprep.subr.bf16.mxu0 0
        %521 = vmatpush1.bf16.msra.mxu0 0
        %522 = vmatprep.subr.bf16.mxu0 0
        %523 = vmatpush1.bf16.msra.mxu0 0
        %524 = vmatprep.subr.bf16.mxu0 0
        %525 = vmatpush1.bf16.msra.mxu0 0
        %526 = vmatprep.subr.bf16.mxu0 0
        %527 = vmatpush1.bf16.msra.mxu0 0
        %528 = vmatprep.mubr.bf16.mxu0 0
        %529 = vmatmul.mubr.bf16.gmra.mrb[0].mxu0 %v491
        %v530 = vpop.f32.mrb[0].mxu0
        %v531 = vadd.f32 0.0, %v530
        %v532 = vpop.f32.mrb[0].mxu0
        %v533 = vpop.f32.mrb[0].mxu0
        %v534 = vadd.f32 0.0, %v533
        %v535 = vpop.f32.mrb[0].mxu0
        %536 = vdwg.mxu0
        %v537 = vadd.f32 %v439, %v531
        %v538 = vadd.f32 %v442, %v534
        %v539 = vld [vmem:[%s2] sm:$0x1]
        %v541 = vlaneseq
        %v542 = vshrl.u32 %v541, 7
        %v543 = vsub.s32 0, %v542
        %v544 = vrot.slane %v539, %v543
        %v546 = vadd.f32 %v537, %v544
        %v547 = vadd.f32 %v538, %v544
        %vm548 = vcmask 523264
        %549 = vst.msk [vmem:[%s233] sm:$0xff] %vm548, %v546
        %550 = vst.msk [vmem:[%s233 + $0x8] sm:$0xff] %vm548, %v547
        %v551 = vld [vmem:[%s248] sm:$0xff]
        %v552 = vld [vmem:[%s248 + $0x8] sm:$0xff]
        %v553 = vsub.f32 %v546, %v551
        %v554 = vsub.f32 %v547, %v552
        %v555 = vadd.f32 %v553, 1e-12
        %v556 = vadd.f32 %v554, 1e-12
        %v557 = vand.u32 2147483647, %v555
        %v558 = vand.u32 2147483647, %v556
        %v559 = vmul.f32 %v557, -2.0
        %v560 = vmul.f32 %v558, -2.0
        %v561 = vmul.f32 %v559, 1.442695
        %v562 = vpow.pop %v561
        %v563 = vmul.f32 %v560, 1.442695
        %v564 = vpow.pop %v563
        %v565 = vadd.f32 %v562, 1.0
        %v566 = vadd.f32 %v564, 1.0
        %v567 = vmul.f32 %v565, 0.5
        %v568 = vmul.f32 %v566, 0.5
        %v569 = vlog2.pop %v567
        %v570 = vmul.f32 %v569, 0.6931472
        %v571 = vlog2.pop %v568
        %v572 = vmul.f32 %v571, 0.6931472
        %v573 = vadd.f32 %v557, %v570
        %v574 = vadd.f32 %v558, %v572
        %v575 = vsel %vm548, %v573, 0.0
        %v576 = vsel %vm548, %v574, 0.0
        %v577 = vadd.f32 %v575, %v576
        %578 = vadd.xlane.f32.xlu0 %v577
        %v579 = vpop.xlane.xlu0 %578
        %v580 = vrot.slane %v579, 4
        %v581 = vadd.f32 %v579, %v580
        %v582 = vrot.slane %v581, 2
        %v583 = vadd.f32 %v581, %v582
        %v584 = vrot.slane %v583, 1
        %v585 = vadd.f32 %v583, %v584
        %s586 = vtos %v585
        %v587 = vstv %s586
        %588 = vst [vmem:[%s251] sm:$0x1] %v587
        %s589 = sand.u32 %s122, 1
        %s590 = scalar_lea.sflag [#allocation3], %s589
        %s591 = sand.u32 %s122, 1
        %s592 = smul.addr %s591, 16
        %s593 = scalar_lea.vmem [#allocation2], %s592
        %p594 = scmp.lt.s32.totalorder %s20, 1
        %s595 = scalar_select %p594, %s20, 1
        %s596 = scalar_lea.vmem %s5, %s595
        // Predicated region
        $region37: #{training_step.5} parent=35 // pred_check
          %p597 = pneg %p132
        $region38: #{training_step.5} parent=35 // pred_check_branch
          %599 = sbr.rel (%p597) target = $region40
        $region39: #{training_step.5} parent=35 // pred_region
          %s601 = ssub.s32 256, 256
          %602 = vsyncadd %s590, %s601
          %s603 = smul.addr %s20, 2
          %s604 = smul.addr %s603, 128
          %s605 = scalar_lea.hbm %s4, %s604
          %s606 = sshll.u32 %s593, 4
          %s607 = int_to_ptr.vmem [resolvable:$true] %s606
          %612 = dma.vmem_to_hbm [thread:$0]  %s607, 256, %s605, %s590, 128, 128, 8
        $region40: #{training_step.5} parent=35 // pred_fallthru
          _
        // Predicated region
        $region41: #{training_step.5} parent=35 // pred_check
          %p613 = pneg %p158
        $region42: #{training_step.5} parent=35 // pred_check_branch
          %615 = sbr.rel (%p613) target = $region44
        $region43: #{training_step.5} parent=35 // pred_region
          _
        $region44: #{training_step.5} parent=35 // pred_fallthru
          _
      $region36: #{training_step.5} parent=5 // pred_fallthru
        _
      %p616 = scmp.le.s32.totalorder 2, %s15
      // Predicated region
      $region45: #{training_step.5} parent=5 // pred_check
        %p617 = pneg %p616
      $region46: #{training_step.5} parent=5 // pred_check_branch
        %619 = sbr.rel (%p617) target = $region48
      $region47: #{training_step.5} parent=5 // pred_region
        %s620 = ssub.s32 %s15, 2
        // Predicated region
        $region49: #{training_step.5} parent=47 // pred_check
          %p621 = pneg %p138
        $region50: #{training_step.5} parent=47 // pred_check_branch
          %623 = sbr.rel (%p621) target = $region52
        $region51: #{training_step.5} parent=47 // pred_region
          %s624 = sand.u32 %s123, 1
          %s625 = scalar_lea.sflag [#allocation3], %s624
          %s626 = sand.u32 %s123, 1
          %s627 = smul.addr %s626, 16
          %s628 = scalar_lea.vmem [#allocation2], %s627
          %629 = dma.done %s625, 256
        $region52: #{training_step.5} parent=47 // pred_fallthru
          _
        // Predicated region
        $region53: #{training_step.5} parent=47 // pred_check
          %p630 = pneg %p164
        $region54: #{training_step.5} parent=47 // pred_check_branch
          %632 = sbr.rel (%p630) target = $region56
        $region55: #{training_step.5} parent=47 // pred_region
          %p633 = scmp.lt.s32.totalorder %s21, 1
          %s634 = scalar_select %p633, %s21, 1
          %s635 = scalar_lea.vmem %s5, %s634
        $region56: #{training_step.5} parent=47 // pred_fallthru
          _
      $region48: #{training_step.5} parent=5 // pred_fallthru
        _
    $region6: #{training_step.5} parent=1 // loop_footer
      %s19 = sadd.s32 1, %s15
    $region7: #{training_step.5} parent=1 // loop_footer_branch
      %14 = sbr.rel target = $region3
    $region8: #{training_step.5} parent=1 // loop_exit
      _
    %636 = vsyncpa [#allocation3], 1
    %s637 = scalar_lea.sflag [#allocation3], 1
    %638 = vsyncpa %s637, 1

</llo_original>
